<compile_context>
chip_gen: v7x
topology: tpu7x:2x2x1
jax: 0.10.0
libtpu: 0.0.40
codegen_flags: <defaults>
</compile_context>

<pallas_src>
import jax
import jax.numpy as jnp
from jax.experimental import pallas as pl
from jax.experimental.pallas import tpu as pltpu

LEAKY_SLOPE = 0.01   # torch.nn.LeakyReLU default
BN_EPS = 1e-5        # torch.nn.BatchNorm2d default

_VMEM_LIMIT = 32 * 1024 * 1024          # safe on v5e/v6e/v7x scoped-VMEM budgets
_PASS_B_BLOCK_BUDGET = 8 * 1024 * 1024  # bytes per pass-B block (x2 double buffer)


def _compiler_params():
    return pltpu.CompilerParams(dimension_semantics=("parallel",),
                                vmem_limit_bytes=_VMEM_LIMIT)


def _pick_tile_rows(rows, row_bytes, multiple):
    """Largest `multiple`-aligned divisor of `rows` that fits the per-block byte
    budget while (when the shape allows) leaving >= 2 grid steps so both of v7x's
    TensorCores get work on the "parallel" axis."""
    if rows % multiple != 0:
        return rows                                   # full-dim block is always legal
    cap = max(multiple, _PASS_B_BLOCK_BUDGET // max(row_bytes, 1))
    cap = min(cap, max(multiple, rows // 2))          # >= 2 steps when possible
    cap -= cap % multiple
    t = max(cap, multiple)
    while t >= multiple:
        if rows % t == 0:
            return t
        t -= multiple
    return rows


def _banded_conv_weight(w_hwio, W, pool_lane_order):
    """Fold the kx (width) taps of the 3x3 conv into a block-Toeplitz matrix so one
    (H, (W+2)*Cin) x ((W+2)*Cin, W*Cout) matmul per ky tap yields the conv output
    directly in the lane-dense (H, W*Cout) layout (no in-kernel relayout)."""
    Cin, Cout = w_hwio.shape[2], w_hwio.shape[3]
    kx = jnp.arange(3)[:, None, None]
    w = jnp.arange(W)[None, :, None]
    wp = jnp.arange(W + 2)[None, None, :]
    sel = (wp == w + kx).astype(w_hwio.dtype)                 # (3, W, W+2)
    b = jnp.einsum('xwp,yxic->ypiwc', sel, w_hwio)            # (3, W+2, Cin, W, Cout)
    if pool_lane_order:
        # Output lanes ordered (w-parity, w//2, cout) so the fused 2x2 max-pool can
        # split the lane axis into two contiguous halves (no lane compaction).
        order = jnp.concatenate([jnp.arange(0, W, 2), jnp.arange(1, W, 2)])
        b = b[:, :, :, order, :]
    return b.reshape(3, (W + 2) * Cin, W * Cout)


# --------------------------------------------------------------------------
# Pass A: conv (3 accumulated MXU matmuls on shifted row-windows) + per-image
# BatchNorm partial statistics.  Grid = (N,), all blocks independent.
#   xp_ref: (1, H+2, (W+2)*Cin)  bf16 padded input slab (lane-dense)
#   b_ref : (3, (W+2)*Cin, W*Cout) bf16 block-Toeplitz conv weights
#   y_ref : (1, H, W*Cout)       bf16 conv output (lane-dense; bias omitted)
#   st_ref: (1, 2, W*Cout)       f32 per-image [sum, sum-of-squares] per lane
# --------------------------------------------------------------------------
def _conv_stats_kernel(xp_ref, b_ref, y_ref, st_ref):
    H, L = y_ref.shape[1], y_ref.shape[2]
    acc = jnp.zeros((H, L), jnp.float32)
    for ky in range(3):     # unrolled: 3 MXU matmuls over shifted halo row-windows
        acc += jnp.dot(xp_ref[0, ky:ky + H, :], b_ref[ky],
                       preferred_element_type=jnp.float32)
    y_ref[0] = acc.astype(y_ref.dtype)
    st_ref[0, 0:1, :] = jnp.sum(acc, axis=0, keepdims=True)
    st_ref[0, 1:2, :] = jnp.sum(acc * acc, axis=0, keepdims=True)


# --------------------------------------------------------------------------
# Pass B (no pool): BN affine + LeakyReLU on a lane-dense (rows, W*Cout) view.
# --------------------------------------------------------------------------
def _bn_lrelu_kernel(y_ref, s_ref, t_ref, o_ref):
    z = y_ref[...].astype(jnp.float32) * s_ref[...] + t_ref[...]
    o_ref[...] = jnp.where(z >= 0.0, z, LEAKY_SLOPE * z)


# --------------------------------------------------------------------------
# Pass B (fused MaxPool2d(2)): BN affine + LeakyReLU + 2x2 max.
#   y_ref: (T, 2, 2, Wh*Cout) = (rows, h-parity, w-parity, pooled lanes)
#   s_ref/t_ref: (1, 1, 1, Wh*Cout)   o_ref: (T, Wh*Cout)
# --------------------------------------------------------------------------
def _bn_lrelu_pool_kernel(y_ref, s_ref, t_ref, o_ref):
    z = y_ref[...].astype(jnp.float32) * s_ref[...] + t_ref[...]
    z = jnp.where(z >= 0.0, z, LEAKY_SLOPE * z)
    o_ref[...] = jnp.maximum(jnp.maximum(z[:, 0, 0, :], z[:, 0, 1, :]),
                             jnp.maximum(z[:, 1, 0, :], z[:, 1, 1, :]))


# --------------------------------------------------------------------------
# ConvBlock: Conv2d(3x3,'same') -> BatchNorm2d(train stats) -> LeakyReLU
# (optionally fused with the MaxPool2d(2) that follows it in the encoder).
# --------------------------------------------------------------------------
def conv_block(x_nhwc, w, b, gamma, beta, *, pool=False):
    del b  # Conv bias cancels exactly under training-mode BatchNorm (mean subtraction).
    N, H, W, Cin = x_nhwc.shape
    Cout = w.shape[-1]
    L = W * Cout
    Lin = (W + 2) * Cin

    # TODO(synk): handle the 1-px halo inside pass A (zero-filled VMEM slab / guarded
    # edge taps) to avoid one extra HBM round-trip of the activation at large shapes.
    xp = jnp.pad(x_nhwc, ((0, 0), (1, 1), (1, 1), (0, 0)))
    xp2 = xp.reshape(N, H + 2, Lin).astype(jnp.bfloat16)   # free reshape; bf16 MXU operand
    b_mat = _banded_conv_weight(w, W, pool_lane_order=pool).astype(jnp.bfloat16)

    # ---- Pass A: conv + per-image partial BN stats --------------------------------
    y, stats = pl.pallas_call(
        _conv_stats_kernel,
        out_shape=(jax.ShapeDtypeStruct((N, H, L), jnp.bfloat16),
                   jax.ShapeDtypeStruct((N, 2, L), jnp.float32)),
        grid=(N,),
        in_specs=[
            pl.BlockSpec((1, H + 2, Lin), lambda n: (n, 0, 0)),
            pl.BlockSpec((3, Lin, L), lambda n: (0, 0, 0)),
        ],
        out_specs=(
            pl.BlockSpec((1, H, L), lambda n: (n, 0, 0)),
            pl.BlockSpec((1, 2, L), lambda n: (n, 0, 0)),
        ),
        compiler_params=_compiler_params(),
    )(xp2, b_mat)

    # ---- Tiny glue: per-lane partials -> per-channel scale/shift (lane%Cout == c) --
    total = float(N * H * W)
    s_c = jnp.sum(stats[:, 0, :].reshape(N, W, Cout), axis=(0, 1))     # (Cout,)
    ss_c = jnp.sum(stats[:, 1, :].reshape(N, W, Cout), axis=(0, 1))
    mean = s_c / total
    var = jnp.maximum(ss_c / total - mean * mean, 0.0)   # biased variance (BN train mode)
    scale = gamma * jax.lax.rsqrt(var + BN_EPS)
    shift = beta - mean * scale

    # ---- Pass B --------------------------------------------------------------------
    if pool:
        assert H % 2 == 0 and W % 2 == 0
        Hh, Wh = H // 2, W // 2
        rows, Lp = N * Hh, Wh * Cout
        # Free view: pass A stored lanes (w-parity)-major, so (rows, hp, wp, Wh*Cout).
        y4 = y.reshape(rows, 2, 2, Lp)
        scale_t = jnp.tile(scale, Wh).reshape(1, 1, 1, Lp)
        shift_t = jnp.tile(shift, Wh).reshape(1, 1, 1, Lp)
        tile_r = _pick_tile_rows(rows, row_bytes=12 * Lp, multiple=8)
        out = pl.pallas_call(
            _bn_lrelu_pool_kernel,
            out_shape=jax.ShapeDtypeStruct((rows, Lp), jnp.float32),
            grid=(rows // tile_r,),
            in_specs=[
                pl.BlockSpec((tile_r, 2, 2, Lp), lambda i: (i, 0, 0, 0)),
                pl.BlockSpec((1, 1, 1, Lp), lambda i: (0, 0, 0, 0)),
                pl.BlockSpec((1, 1, 1, Lp), lambda i: (0, 0, 0, 0)),
            ],
            out_specs=pl.BlockSpec((tile_r, Lp), lambda i: (i, 0)),
            compiler_params=_compiler_params(),
        )(y4, scale_t, shift_t)
        return out.reshape(N, Hh, Wh, Cout)

    rows = N * H
    y2 = y.reshape(rows, L)                              # free contiguous lane-dense view
    scale_t = jnp.tile(scale, W).reshape(1, L)
    shift_t = jnp.tile(shift, W).reshape(1, L)
    # multiple=16: respect bf16 sublane packing for the input block's second-minor dim.
    tile_r = _pick_tile_rows(rows, row_bytes=6 * L, multiple=16)
    out = pl.pallas_call(
        _bn_lrelu_kernel,
        out_shape=jax.ShapeDtypeStruct((rows, L), jnp.float32),
        grid=(rows // tile_r,),
        in_specs=[
            pl.BlockSpec((tile_r, L), lambda i: (i, 0)),
            pl.BlockSpec((1, L), lambda i: (0, 0)),
            pl.BlockSpec((1, L), lambda i: (0, 0)),
        ],
        out_specs=pl.BlockSpec((tile_r, L), lambda i: (i, 0)),
        compiler_params=_compiler_params(),
    )(y2, scale_t, shift_t)
    return out.reshape(N, H, W, Cout)


# --------------------------------------------------------------------------
# Parameter init (deterministic, PyTorch-shaped) and encoder forward.
# --------------------------------------------------------------------------
def init_conv_block_params(key, cin, cout):
    kw, kb = jax.random.split(key)
    w = jax.random.normal(kw, (3, 3, cin, cout), jnp.float32) / jnp.sqrt(9.0 * cin)
    b = jax.random.normal(kb, (cout,), jnp.float32) * 0.01  # unused: BN (train) cancels it
    gamma = jnp.ones((cout,), jnp.float32)    # BatchNorm2d weight init
    beta = jnp.zeros((cout,), jnp.float32)    # BatchNorm2d bias init
    return dict(w=w, b=b, gamma=gamma, beta=beta)


def init_conv_encoder_params(key, features_list):
    params = []
    for i in range(len(features_list) - 1):
        fi, fo = features_list[i], features_list[i + 1]
        key, k1, k2 = jax.random.split(key, 3)
        params.append([init_conv_block_params(k1, fi, fo),
                       init_conv_block_params(k2, fo, fo)])
    return params


def conv_encoder_forward(params, x_nchw):
    # NCHW -> NHWC
    y = jnp.transpose(x_nchw, (0, 2, 3, 1)).astype(jnp.float32)
    n_stages = len(params)
    for i, stage in enumerate(params):
        # Original module: stage i>0 starts with MaxPool2d(2); equivalently that pool
        # is fused into the epilogue of the previous stage's second ConvBlock.
        y = conv_block(y, **stage[0], pool=False)
        y = conv_block(y, **stage[1], pool=(i < n_stages - 1))
    # NHWC -> NCHW (match PyTorch output layout)
    return jnp.transpose(y, (0, 3, 1, 2))


if __name__ == "__main__":
    key = jax.random.PRNGKey(0)
    kx, kp = jax.random.split(key)

    features_list = [4, 8, 16]               # ConvEncoder([4, 8, 16]) -> 2 stages
    x = jax.random.normal(kx, (2, 4, 16, 16), jnp.float32)   # NCHW, like PyTorch

    params = init_conv_encoder_params(kp, features_list)

    fwd = jax.jit(conv_encoder_forward)
    out = jax.block_until_ready(fwd(params, x))

    # sanity: shape matches PyTorch (N, features_list[-1], H/2^(S-1), W/2^(S-1))
    assert out.shape == (2, 16, 8, 8), out.shape
    assert bool(jnp.all(jnp.isfinite(out)))

    print("KERNEL_OK")
</pallas_src>

<mosaic_0001>
module attributes {stable_mosaic.version = 11 : i64} {
  func.func @_conv_stats_kernel(%arg0: i32, %arg1: memref<1x18x72xbf16, #tpu.memory_space<vmem>>, %arg2: memref<3x72x128xbf16, #tpu.memory_space<vmem>>, %arg3: memref<1x16x128xbf16, #tpu.memory_space<vmem>>, %arg4: memref<1x2x128xf32, #tpu.memory_space<vmem>>) attributes {dimension_semantics = [#tpu.dimension_semantics<parallel>], iteration_bounds = array<i64: 2>, scalar_prefetch = 0 : i64, scratch_operands = 0 : i64, tpu.core_type = #tpu.core_type<tc>, window_params = [{transform_indices = @transform_0, window_bounds = array<i64: 1, 18, 72>}, {pipeline_mode = #tpu.pipeline_mode<synchronous>, transform_indices = @transform_1, window_bounds = array<i64: 3, 72, 128>}, {transform_indices = @transform_2, window_bounds = array<i64: 1, 16, 128>}, {transform_indices = @transform_3, window_bounds = array<i64: 1, 2, 128>}]} {
    %cst = arith.constant 0.000000e+00 : f32
    %0 = vector.broadcast %cst : f32 to vector<16x128xf32>
    %c0 = arith.constant 0 : index
    %c0_0 = arith.constant 0 : index
    %c0_1 = arith.constant 0 : index
    %1 = vector.load %arg1[%c0, %c0_0, %c0_1] : memref<1x18x72xbf16, #tpu.memory_space<vmem>>, vector<1x16x72xbf16>
    %2 = vector.shape_cast %1 : vector<1x16x72xbf16> to vector<16x72xbf16>
    %c0_2 = arith.constant 0 : index
    %c0_3 = arith.constant 0 : index
    %c0_4 = arith.constant 0 : index
    %3 = vector.load %arg2[%c0_2, %c0_3, %c0_4] : memref<3x72x128xbf16, #tpu.memory_space<vmem>>, vector<1x72x128xbf16>
    %4 = vector.shape_cast %3 : vector<1x72x128xbf16> to vector<72x128xbf16>
    %cst_5 = arith.constant dense<0.000000e+00> : vector<16x128xf32>
    %5 = tpu.matmul %2, %4, %cst_5 {dimension_numbers = #tpu.dot_dimension_numbers<[1], [0], [0], [1], [0, 0, 1, 1], [], []>} : vector<16x72xbf16>, vector<72x128xbf16>, vector<16x128xf32> -> vector<16x128xf32>
    %6 = arith.addf %0, %5 : vector<16x128xf32>
    %c0_6 = arith.constant 0 : index
    %c1 = arith.constant 1 : index
    %c0_7 = arith.constant 0 : index
    %7 = vector.load %arg1[%c0_6, %c1, %c0_7] : memref<1x18x72xbf16, #tpu.memory_space<vmem>>, vector<1x16x72xbf16>
    %8 = vector.shape_cast %7 : vector<1x16x72xbf16> to vector<16x72xbf16>
    %c1_8 = arith.constant 1 : index
    %c0_9 = arith.constant 0 : index
    %c0_10 = arith.constant 0 : index
    %9 = vector.load %arg2[%c1_8, %c0_9, %c0_10] : memref<3x72x128xbf16, #tpu.memory_space<vmem>>, vector<1x72x128xbf16>
    %10 = vector.shape_cast %9 : vector<1x72x128xbf16> to vector<72x128xbf16>
    %cst_11 = arith.constant dense<0.000000e+00> : vector<16x128xf32>
    %11 = tpu.matmul %8, %10, %cst_11 {dimension_numbers = #tpu.dot_dimension_numbers<[1], [0], [0], [1], [0, 0, 1, 1], [], []>} : vector<16x72xbf16>, vector<72x128xbf16>, vector<16x128xf32> -> vector<16x128xf32>
    %12 = arith.addf %6, %11 : vector<16x128xf32>
    %c0_12 = arith.constant 0 : index
    %c2 = arith.constant 2 : index
    %c0_13 = arith.constant 0 : index
    %13 = vector.load %arg1[%c0_12, %c2, %c0_13] : memref<1x18x72xbf16, #tpu.memory_space<vmem>>, vector<1x16x72xbf16>
    %14 = vector.shape_cast %13 : vector<1x16x72xbf16> to vector<16x72xbf16>
    %c2_14 = arith.constant 2 : index
    %c0_15 = arith.constant 0 : index
    %c0_16 = arith.constant 0 : index
    %15 = vector.load %arg2[%c2_14, %c0_15, %c0_16] : memref<3x72x128xbf16, #tpu.memory_space<vmem>>, vector<1x72x128xbf16>
    %16 = vector.shape_cast %15 : vector<1x72x128xbf16> to vector<72x128xbf16>
    %cst_17 = arith.constant dense<0.000000e+00> : vector<16x128xf32>
    %17 = tpu.matmul %14, %16, %cst_17 {dimension_numbers = #tpu.dot_dimension_numbers<[1], [0], [0], [1], [0, 0, 1, 1], [], []>} : vector<16x72xbf16>, vector<72x128xbf16>, vector<16x128xf32> -> vector<16x128xf32>
    %18 = arith.addf %12, %17 : vector<16x128xf32>
    %19 = arith.truncf %18 : vector<16x128xf32> to vector<16x128xbf16>
    %c0_18 = arith.constant 0 : index
    %c0_19 = arith.constant 0 : index
    %c0_20 = arith.constant 0 : index
    %20 = vector.load %arg3[%c0_18, %c0_19, %c0_20] : memref<1x16x128xbf16, #tpu.memory_space<vmem>>, vector<1x16x128xbf16>
    %21 = vector.shape_cast %20 : vector<1x16x128xbf16> to vector<16x128xbf16>
    %22 = vector.shape_cast %19 : vector<16x128xbf16> to vector<1x16x128xbf16>
    tpu.vector_store %arg3[%c0_18, %c0_19, %c0_20], %22 {strides = array<i32>} : memref<1x16x128xbf16, #tpu.memory_space<vmem>>, vector<1x16x128xbf16>,
    %cst_21 = arith.constant dense<0.000000e+00> : vector<128xf32>
    %23 = vector.multi_reduction <add>, %18, %cst_21 [0] : vector<16x128xf32> to vector<128xf32>
    %24 = vector.shape_cast %23 : vector<128xf32> to vector<1x128xf32>
    %c0_22 = arith.constant 0 : index
    %c0_23 = arith.constant 0 : index
    %c0_24 = arith.constant 0 : index
    %25 = vector.load %arg4[%c0_22, %c0_23, %c0_24] : memref<1x2x128xf32, #tpu.memory_space<vmem>>, vector<1x1x128xf32>
    %26 = vector.shape_cast %25 : vector<1x1x128xf32> to vector<1x128xf32>
    %27 = vector.shape_cast %24 : vector<1x128xf32> to vector<1x1x128xf32>
    tpu.vector_store %arg4[%c0_22, %c0_23, %c0_24], %27 {strides = array<i32>} : memref<1x2x128xf32, #tpu.memory_space<vmem>>, vector<1x1x128xf32>,
    %28 = arith.mulf %18, %18 : vector<16x128xf32>
    %cst_25 = arith.constant dense<0.000000e+00> : vector<128xf32>
    %29 = vector.multi_reduction <add>, %28, %cst_25 [0] : vector<16x128xf32> to vector<128xf32>
    %30 = vector.shape_cast %29 : vector<128xf32> to vector<1x128xf32>
    %c0_26 = arith.constant 0 : index
    %c1_27 = arith.constant 1 : index
    %c0_28 = arith.constant 0 : index
    %31 = vector.load %arg4[%c0_26, %c1_27, %c0_28] : memref<1x2x128xf32, #tpu.memory_space<vmem>>, vector<1x1x128xf32>
    %32 = vector.shape_cast %31 : vector<1x1x128xf32> to vector<1x128xf32>
    %33 = vector.shape_cast %30 : vector<1x128xf32> to vector<1x1x128xf32>
    tpu.vector_store %arg4[%c0_26, %c1_27, %c0_28], %33 {strides = array<i32>} : memref<1x2x128xf32, #tpu.memory_space<vmem>>, vector<1x1x128xf32>,
    return
  }
  func.func @transform_0(%arg0: i32) -> (i32, i32, i32) {
    %c0_i32 = arith.constant 0 : i32
    %c0_i32_0 = arith.constant 0 : i32
    %c0_i32_1 = arith.constant 0 : i32
    return %arg0, %c0_i32, %c0_i32_0 : i32, i32, i32
  }
  func.func @transform_1(%arg0: i32) -> (i32, i32, i32) {
    %c0_i32 = arith.constant 0 : i32
    %c0_i32_0 = arith.constant 0 : i32
    %c0_i32_1 = arith.constant 0 : i32
    %c0_i32_2 = arith.constant 0 : i32
    return %c0_i32, %c0_i32_0, %c0_i32_1 : i32, i32, i32
  }
  func.func @transform_2(%arg0: i32) -> (i32, i32, i32) {
    %c0_i32 = arith.constant 0 : i32
    %c0_i32_0 = arith.constant 0 : i32
    %c0_i32_1 = arith.constant 0 : i32
    return %arg0, %c0_i32, %c0_i32_0 : i32, i32, i32
  }
  func.func @transform_3(%arg0: i32) -> (i32, i32, i32) {
    %c0_i32 = arith.constant 0 : i32
    %c0_i32_0 = arith.constant 0 : i32
    %c0_i32_1 = arith.constant 0 : i32
    return %arg0, %c0_i32, %c0_i32_0 : i32, i32, i32
  }
}

module attributes {stable_mosaic.version = 11 : i64} {
  func.func @_bn_lrelu_kernel(%arg0: i32, %arg1: memref<16x128xbf16, #tpu.memory_space<vmem>>, %arg2: memref<1x128xf32, #tpu.memory_space<vmem>>, %arg3: memref<1x128xf32, #tpu.memory_space<vmem>>, %arg4: memref<16x128xf32, #tpu.memory_space<vmem>>) attributes {dimension_semantics = [#tpu.dimension_semantics<parallel>], iteration_bounds = array<i64: 2>, scalar_prefetch = 0 : i64, scratch_operands = 0 : i64, tpu.core_type = #tpu.core_type<tc>, window_params = [{transform_indices = @transform_0, window_bounds = array<i64: 16, 128>}, {pipeline_mode = #tpu.pipeline_mode<synchronous>, transform_indices = @transform_1, window_bounds = array<i64: 1, 128>}, {pipeline_mode = #tpu.pipeline_mode<synchronous>, transform_indices = @transform_2, window_bounds = array<i64: 1, 128>}, {transform_indices = @transform_3, window_bounds = array<i64: 16, 128>}]} {
    %c0 = arith.constant 0 : index
    %c0_0 = arith.constant 0 : index
    %0 = vector.load %arg1[%c0, %c0_0] : memref<16x128xbf16, #tpu.memory_space<vmem>>, vector<16x128xbf16>
    %1 = arith.extf %0 : vector<16x128xbf16> to vector<16x128xf32>
    %c0_1 = arith.constant 0 : index
    %c0_2 = arith.constant 0 : index
    %2 = vector.load %arg2[%c0_1, %c0_2] : memref<1x128xf32, #tpu.memory_space<vmem>>, vector<1x128xf32>
    %3 = vector.broadcast %2 : vector<1x128xf32> to vector<16x128xf32>
    %4 = arith.mulf %1, %3 : vector<16x128xf32>
    %c0_3 = arith.constant 0 : index
    %c0_4 = arith.constant 0 : index
    %5 = vector.load %arg3[%c0_3, %c0_4] : memref<1x128xf32, #tpu.memory_space<vmem>>, vector<1x128xf32>
    %6 = vector.broadcast %5 : vector<1x128xf32> to vector<16x128xf32>
    %7 = arith.addf %4, %6 : vector<16x128xf32>
    %cst = arith.constant 0.000000e+00 : f32
    %8 = vector.broadcast %cst : f32 to vector<16x128xf32>
    %9 = arith.cmpf oge, %7, %8 : vector<16x128xf32>
    %cst_5 = arith.constant 0.00999999977 : f32
    %10 = vector.broadcast %cst_5 : f32 to vector<16x128xf32>
    %11 = arith.mulf %10, %7 : vector<16x128xf32>
    %12 = arith.select %9, %7, %11 : vector<16x128xi1>, vector<16x128xf32>
    %c0_6 = arith.constant 0 : index
    %c0_7 = arith.constant 0 : index
    %13 = vector.load %arg4[%c0_6, %c0_7] : memref<16x128xf32, #tpu.memory_space<vmem>>, vector<16x128xf32>
    tpu.vector_store %arg4[%c0_6, %c0_7], %12 {strides = array<i32>} : memref<16x128xf32, #tpu.memory_space<vmem>>, vector<16x128xf32>,
    return
  }
  func.func @transform_0(%arg0: i32) -> (i32, i32) {
    %c0_i32 = arith.constant 0 : i32
    %c0_i32_0 = arith.constant 0 : i32
    return %arg0, %c0_i32 : i32, i32
  }
  func.func @transform_1(%arg0: i32) -> (i32, i32) {
    %c0_i32 = arith.constant 0 : i32
    %c0_i32_0 = arith.constant 0 : i32
    %c0_i32_1 = arith.constant 0 : i32
    return %c0_i32, %c0_i32_0 : i32, i32
  }
  func.func @transform_2(%arg0: i32) -> (i32, i32) {
    %c0_i32 = arith.constant 0 : i32
    %c0_i32_0 = arith.constant 0 : i32
    %c0_i32_1 = arith.constant 0 : i32
    return %c0_i32, %c0_i32_0 : i32, i32
  }
  func.func @transform_3(%arg0: i32) -> (i32, i32) {
    %c0_i32 = arith.constant 0 : i32
    %c0_i32_0 = arith.constant 0 : i32
    return %arg0, %c0_i32 : i32, i32
  }
}

module attributes {stable_mosaic.version = 11 : i64} {
  func.func @_conv_stats_kernel(%arg0: i32, %arg1: memref<1x18x144xbf16, #tpu.memory_space<vmem>>, %arg2: memref<3x144x128xbf16, #tpu.memory_space<vmem>>, %arg3: memref<1x16x128xbf16, #tpu.memory_space<vmem>>, %arg4: memref<1x2x128xf32, #tpu.memory_space<vmem>>) attributes {dimension_semantics = [#tpu.dimension_semantics<parallel>], iteration_bounds = array<i64: 2>, scalar_prefetch = 0 : i64, scratch_operands = 0 : i64, tpu.core_type = #tpu.core_type<tc>, window_params = [{transform_indices = @transform_0, window_bounds = array<i64: 1, 18, 144>}, {pipeline_mode = #tpu.pipeline_mode<synchronous>, transform_indices = @transform_1, window_bounds = array<i64: 3, 144, 128>}, {transform_indices = @transform_2, window_bounds = array<i64: 1, 16, 128>}, {transform_indices = @transform_3, window_bounds = array<i64: 1, 2, 128>}]} {
    %cst = arith.constant 0.000000e+00 : f32
    %0 = vector.broadcast %cst : f32 to vector<16x128xf32>
    %c0 = arith.constant 0 : index
    %c0_0 = arith.constant 0 : index
    %c0_1 = arith.constant 0 : index
    %1 = vector.load %arg1[%c0, %c0_0, %c0_1] : memref<1x18x144xbf16, #tpu.memory_space<vmem>>, vector<1x16x144xbf16>
    %2 = vector.shape_cast %1 : vector<1x16x144xbf16> to vector<16x144xbf16>
    %c0_2 = arith.constant 0 : index
    %c0_3 = arith.constant 0 : index
    %c0_4 = arith.constant 0 : index
    %3 = vector.load %arg2[%c0_2, %c0_3, %c0_4] : memref<3x144x128xbf16, #tpu.memory_space<vmem>>, vector<1x144x128xbf16>
    %4 = vector.shape_cast %3 : vector<1x144x128xbf16> to vector<144x128xbf16>
    %cst_5 = arith.constant dense<0.000000e+00> : vector<16x128xf32>
    %5 = tpu.matmul %2, %4, %cst_5 {dimension_numbers = #tpu.dot_dimension_numbers<[1], [0], [0], [1], [0, 0, 1, 1], [], []>} : vector<16x144xbf16>, vector<144x128xbf16>, vector<16x128xf32> -> vector<16x128xf32>
    %6 = arith.addf %0, %5 : vector<16x128xf32>
    %c0_6 = arith.constant 0 : index
    %c1 = arith.constant 1 : index
    %c0_7 = arith.constant 0 : index
    %7 = vector.load %arg1[%c0_6, %c1, %c0_7] : memref<1x18x144xbf16, #tpu.memory_space<vmem>>, vector<1x16x144xbf16>
    %8 = vector.shape_cast %7 : vector<1x16x144xbf16> to vector<16x144xbf16>
    %c1_8 = arith.constant 1 : index
    %c0_9 = arith.constant 0 : index
    %c0_10 = arith.constant 0 : index
    %9 = vector.load %arg2[%c1_8, %c0_9, %c0_10] : memref<3x144x128xbf16, #tpu.memory_space<vmem>>, vector<1x144x128xbf16>
    %10 = vector.shape_cast %9 : vector<1x144x128xbf16> to vector<144x128xbf16>
    %cst_11 = arith.constant dense<0.000000e+00> : vector<16x128xf32>
    %11 = tpu.matmul %8, %10, %cst_11 {dimension_numbers = #tpu.dot_dimension_numbers<[1], [0], [0], [1], [0, 0, 1, 1], [], []>} : vector<16x144xbf16>, vector<144x128xbf16>, vector<16x128xf32> -> vector<16x128xf32>
    %12 = arith.addf %6, %11 : vector<16x128xf32>
    %c0_12 = arith.constant 0 : index
    %c2 = arith.constant 2 : index
    %c0_13 = arith.constant 0 : index
    %13 = vector.load %arg1[%c0_12, %c2, %c0_13] : memref<1x18x144xbf16, #tpu.memory_space<vmem>>, vector<1x16x144xbf16>
    %14 = vector.shape_cast %13 : vector<1x16x144xbf16> to vector<16x144xbf16>
    %c2_14 = arith.constant 2 : index
    %c0_15 = arith.constant 0 : index
    %c0_16 = arith.constant 0 : index
    %15 = vector.load %arg2[%c2_14, %c0_15, %c0_16] : memref<3x144x128xbf16, #tpu.memory_space<vmem>>, vector<1x144x128xbf16>
    %16 = vector.shape_cast %15 : vector<1x144x128xbf16> to vector<144x128xbf16>
    %cst_17 = arith.constant dense<0.000000e+00> : vector<16x128xf32>
    %17 = tpu.matmul %14, %16, %cst_17 {dimension_numbers = #tpu.dot_dimension_numbers<[1], [0], [0], [1], [0, 0, 1, 1], [], []>} : vector<16x144xbf16>, vector<144x128xbf16>, vector<16x128xf32> -> vector<16x128xf32>
    %18 = arith.addf %12, %17 : vector<16x128xf32>
    %19 = arith.truncf %18 : vector<16x128xf32> to vector<16x128xbf16>
    %c0_18 = arith.constant 0 : index
    %c0_19 = arith.constant 0 : index
    %c0_20 = arith.constant 0 : index
    %20 = vector.load %arg3[%c0_18, %c0_19, %c0_20] : memref<1x16x128xbf16, #tpu.memory_space<vmem>>, vector<1x16x128xbf16>
    %21 = vector.shape_cast %20 : vector<1x16x128xbf16> to vector<16x128xbf16>
    %22 = vector.shape_cast %19 : vector<16x128xbf16> to vector<1x16x128xbf16>
    tpu.vector_store %arg3[%c0_18, %c0_19, %c0_20], %22 {strides = array<i32>} : memref<1x16x128xbf16, #tpu.memory_space<vmem>>, vector<1x16x128xbf16>,
    %cst_21 = arith.constant dense<0.000000e+00> : vector<128xf32>
    %23 = vector.multi_reduction <add>, %18, %cst_21 [0] : vector<16x128xf32> to vector<128xf32>
    %24 = vector.shape_cast %23 : vector<128xf32> to vector<1x128xf32>
    %c0_22 = arith.constant 0 : index
    %c0_23 = arith.constant 0 : index
    %c0_24 = arith.constant 0 : index
    %25 = vector.load %arg4[%c0_22, %c0_23, %c0_24] : memref<1x2x128xf32, #tpu.memory_space<vmem>>, vector<1x1x128xf32>
    %26 = vector.shape_cast %25 : vector<1x1x128xf32> to vector<1x128xf32>
    %27 = vector.shape_cast %24 : vector<1x128xf32> to vector<1x1x128xf32>
    tpu.vector_store %arg4[%c0_22, %c0_23, %c0_24], %27 {strides = array<i32>} : memref<1x2x128xf32, #tpu.memory_space<vmem>>, vector<1x1x128xf32>,
    %28 = arith.mulf %18, %18 : vector<16x128xf32>
    %cst_25 = arith.constant dense<0.000000e+00> : vector<128xf32>
    %29 = vector.multi_reduction <add>, %28, %cst_25 [0] : vector<16x128xf32> to vector<128xf32>
    %30 = vector.shape_cast %29 : vector<128xf32> to vector<1x128xf32>
    %c0_26 = arith.constant 0 : index
    %c1_27 = arith.constant 1 : index
    %c0_28 = arith.constant 0 : index
    %31 = vector.load %arg4[%c0_26, %c1_27, %c0_28] : memref<1x2x128xf32, #tpu.memory_space<vmem>>, vector<1x1x128xf32>
    %32 = vector.shape_cast %31 : vector<1x1x128xf32> to vector<1x128xf32>
    %33 = vector.shape_cast %30 : vector<1x128xf32> to vector<1x1x128xf32>
    tpu.vector_store %arg4[%c0_26, %c1_27, %c0_28], %33 {strides = array<i32>} : memref<1x2x128xf32, #tpu.memory_space<vmem>>, vector<1x1x128xf32>,
    return
  }
  func.func @transform_0(%arg0: i32) -> (i32, i32, i32) {
    %c0_i32 = arith.constant 0 : i32
    %c0_i32_0 = arith.constant 0 : i32
    %c0_i32_1 = arith.constant 0 : i32
    return %arg0, %c0_i32, %c0_i32_0 : i32, i32, i32
  }
  func.func @transform_1(%arg0: i32) -> (i32, i32, i32) {
    %c0_i32 = arith.constant 0 : i32
    %c0_i32_0 = arith.constant 0 : i32
    %c0_i32_1 = arith.constant 0 : i32
    %c0_i32_2 = arith.constant 0 : i32
    return %c0_i32, %c0_i32_0, %c0_i32_1 : i32, i32, i32
  }
  func.func @transform_2(%arg0: i32) -> (i32, i32, i32) {
    %c0_i32 = arith.constant 0 : i32
    %c0_i32_0 = arith.constant 0 : i32
    %c0_i32_1 = arith.constant 0 : i32
    return %arg0, %c0_i32, %c0_i32_0 : i32, i32, i32
  }
  func.func @transform_3(%arg0: i32) -> (i32, i32, i32) {
    %c0_i32 = arith.constant 0 : i32
    %c0_i32_0 = arith.constant 0 : i32
    %c0_i32_1 = arith.constant 0 : i32
    return %arg0, %c0_i32, %c0_i32_0 : i32, i32, i32
  }
}

module attributes {stable_mosaic.version = 11 : i64} {
  func.func @_bn_lrelu_pool_kernel(%arg0: i32, %arg1: memref<8x2x2x64xbf16, #tpu.memory_space<vmem>>, %arg2: memref<1x1x1x64xf32, #tpu.memory_space<vmem>>, %arg3: memref<1x1x1x64xf32, #tpu.memory_space<vmem>>, %arg4: memref<8x64xf32, #tpu.memory_space<vmem>>) attributes {dimension_semantics = [#tpu.dimension_semantics<parallel>], iteration_bounds = array<i64: 2>, scalar_prefetch = 0 : i64, scratch_operands = 0 : i64, tpu.core_type = #tpu.core_type<tc>, window_params = [{transform_indices = @transform_0, window_bounds = array<i64: 8, 2, 2, 64>}, {pipeline_mode = #tpu.pipeline_mode<synchronous>, transform_indices = @transform_1, window_bounds = array<i64: 1, 1, 1, 64>}, {pipeline_mode = #tpu.pipeline_mode<synchronous>, transform_indices = @transform_2, window_bounds = array<i64: 1, 1, 1, 64>}, {transform_indices = @transform_3, window_bounds = array<i64: 8, 64>}]} {
    %c0 = arith.constant 0 : index
    %c0_0 = arith.constant 0 : index
    %c0_1 = arith.constant 0 : index
    %c0_2 = arith.constant 0 : index
    %0 = vector.load %arg1[%c0, %c0_0, %c0_1, %c0_2] : memref<8x2x2x64xbf16, #tpu.memory_space<vmem>>, vector<8x2x2x64xbf16>
    %1 = arith.extf %0 : vector<8x2x2x64xbf16> to vector<8x2x2x64xf32>
    %c0_3 = arith.constant 0 : index
    %c0_4 = arith.constant 0 : index
    %c0_5 = arith.constant 0 : index
    %c0_6 = arith.constant 0 : index
    %2 = vector.load %arg2[%c0_3, %c0_4, %c0_5, %c0_6] : memref<1x1x1x64xf32, #tpu.memory_space<vmem>>, vector<1x1x1x64xf32>
    %3 = vector.broadcast %2 : vector<1x1x1x64xf32> to vector<8x2x2x64xf32>
    %4 = arith.mulf %1, %3 : vector<8x2x2x64xf32>
    %c0_7 = arith.constant 0 : index
    %c0_8 = arith.constant 0 : index
    %c0_9 = arith.constant 0 : index
    %c0_10 = arith.constant 0 : index
    %5 = vector.load %arg3[%c0_7, %c0_8, %c0_9, %c0_10] : memref<1x1x1x64xf32, #tpu.memory_space<vmem>>, vector<1x1x1x64xf32>
    %6 = vector.broadcast %5 : vector<1x1x1x64xf32> to vector<8x2x2x64xf32>
    %7 = arith.addf %4, %6 : vector<8x2x2x64xf32>
    %cst = arith.constant 0.000000e+00 : f32
    %8 = vector.broadcast %cst : f32 to vector<8x2x2x64xf32>
    %9 = arith.cmpf oge, %7, %8 : vector<8x2x2x64xf32>
    %cst_11 = arith.constant 0.00999999977 : f32
    %10 = vector.broadcast %cst_11 : f32 to vector<8x2x2x64xf32>
    %11 = arith.mulf %10, %7 : vector<8x2x2x64xf32>
    %12 = arith.select %9, %7, %11 : vector<8x2x2x64xi1>, vector<8x2x2x64xf32>
    %13 = vector.extract_strided_slice %12 {offsets = [0, 0, 0, 0], sizes = [8, 1, 1, 64], strides = [1, 1, 1, 1]} : vector<8x2x2x64xf32> to vector<8x1x1x64xf32>
    %14 = vector.shape_cast %13 : vector<8x1x1x64xf32> to vector<8x64xf32>
    %15 = vector.extract_strided_slice %12 {offsets = [0, 0, 1, 0], sizes = [8, 1, 1, 64], strides = [1, 1, 1, 1]} : vector<8x2x2x64xf32> to vector<8x1x1x64xf32>
    %16 = vector.shape_cast %15 : vector<8x1x1x64xf32> to vector<8x64xf32>
    %17 = arith.maximumf %14, %16 : vector<8x64xf32>
    %18 = vector.extract_strided_slice %12 {offsets = [0, 1, 0, 0], sizes = [8, 1, 1, 64], strides = [1, 1, 1, 1]} : vector<8x2x2x64xf32> to vector<8x1x1x64xf32>
    %19 = vector.shape_cast %18 : vector<8x1x1x64xf32> to vector<8x64xf32>
    %20 = vector.extract_strided_slice %12 {offsets = [0, 1, 1, 0], sizes = [8, 1, 1, 64], strides = [1, 1, 1, 1]} : vector<8x2x2x64xf32> to vector<8x1x1x64xf32>
    %21 = vector.shape_cast %20 : vector<8x1x1x64xf32> to vector<8x64xf32>
    %22 = arith.maximumf %19, %21 : vector<8x64xf32>
    %23 = arith.maximumf %17, %22 : vector<8x64xf32>
    %c0_12 = arith.constant 0 : index
    %c0_13 = arith.constant 0 : index
    %24 = vector.load %arg4[%c0_12, %c0_13] : memref<8x64xf32, #tpu.memory_space<vmem>>, vector<8x64xf32>
    tpu.vector_store %arg4[%c0_12, %c0_13], %23 {strides = array<i32>} : memref<8x64xf32, #tpu.memory_space<vmem>>, vector<8x64xf32>,
    return
  }
  func.func @transform_0(%arg0: i32) -> (i32, i32, i32, i32) {
    %c0_i32 = arith.constant 0 : i32
    %c0_i32_0 = arith.constant 0 : i32
    %c0_i32_1 = arith.constant 0 : i32
    %c0_i32_2 = arith.constant 0 : i32
    return %arg0, %c0_i32, %c0_i32_0, %c0_i32_1 : i32, i32, i32, i32
  }
  func.func @transform_1(%arg0: i32) -> (i32, i32, i32, i32) {
    %c0_i32 = arith.constant 0 : i32
    %c0_i32_0 = arith.constant 0 : i32
    %c0_i32_1 = arith.constant 0 : i32
    %c0_i32_2 = arith.constant 0 : i32
    %c0_i32_3 = arith.constant 0 : i32
    return %c0_i32, %c0_i32_0, %c0_i32_1, %c0_i32_2 : i32, i32, i32, i32
  }
  func.func @transform_2(%arg0: i32) -> (i32, i32, i32, i32) {
    %c0_i32 = arith.constant 0 : i32
    %c0_i32_0 = arith.constant 0 : i32
    %c0_i32_1 = arith.constant 0 : i32
    %c0_i32_2 = arith.constant 0 : i32
    %c0_i32_3 = arith.constant 0 : i32
    return %c0_i32, %c0_i32_0, %c0_i32_1, %c0_i32_2 : i32, i32, i32, i32
  }
  func.func @transform_3(%arg0: i32) -> (i32, i32) {
    %c0_i32 = arith.constant 0 : i32
    %c0_i32_0 = arith.constant 0 : i32
    return %arg0, %c0_i32 : i32, i32
  }
}

module attributes {stable_mosaic.version = 11 : i64} {
  func.func @_conv_stats_kernel(%arg0: i32, %arg1: memref<1x10x80xbf16, #tpu.memory_space<vmem>>, %arg2: memref<3x80x128xbf16, #tpu.memory_space<vmem>>, %arg3: memref<1x8x128xbf16, #tpu.memory_space<vmem>>, %arg4: memref<1x2x128xf32, #tpu.memory_space<vmem>>) attributes {dimension_semantics = [#tpu.dimension_semantics<parallel>], iteration_bounds = array<i64: 2>, scalar_prefetch = 0 : i64, scratch_operands = 0 : i64, tpu.core_type = #tpu.core_type<tc>, window_params = [{transform_indices = @transform_0, window_bounds = array<i64: 1, 10, 80>}, {pipeline_mode = #tpu.pipeline_mode<synchronous>, transform_indices = @transform_1, window_bounds = array<i64: 3, 80, 128>}, {transform_indices = @transform_2, window_bounds = array<i64: 1, 8, 128>}, {transform_indices = @transform_3, window_bounds = array<i64: 1, 2, 128>}]} {
    %cst = arith.constant 0.000000e+00 : f32
    %0 = vector.broadcast %cst : f32 to vector<8x128xf32>
    %c0 = arith.constant 0 : index
    %c0_0 = arith.constant 0 : index
    %c0_1 = arith.constant 0 : index
    %1 = vector.load %arg1[%c0, %c0_0, %c0_1] : memref<1x10x80xbf16, #tpu.memory_space<vmem>>, vector<1x8x80xbf16>
    %2 = vector.shape_cast %1 : vector<1x8x80xbf16> to vector<8x80xbf16>
    %c0_2 = arith.constant 0 : index
    %c0_3 = arith.constant 0 : index
    %c0_4 = arith.constant 0 : index
    %3 = vector.load %arg2[%c0_2, %c0_3, %c0_4] : memref<3x80x128xbf16, #tpu.memory_space<vmem>>, vector<1x80x128xbf16>
    %4 = vector.shape_cast %3 : vector<1x80x128xbf16> to vector<80x128xbf16>
    %cst_5 = arith.constant dense<0.000000e+00> : vector<8x128xf32>
    %5 = tpu.matmul %2, %4, %cst_5 {dimension_numbers = #tpu.dot_dimension_numbers<[1], [0], [0], [1], [0, 0, 1, 1], [], []>} : vector<8x80xbf16>, vector<80x128xbf16>, vector<8x128xf32> -> vector<8x128xf32>
    %6 = arith.addf %0, %5 : vector<8x128xf32>
    %c0_6 = arith.constant 0 : index
    %c1 = arith.constant 1 : index
    %c0_7 = arith.constant 0 : index
    %7 = vector.load %arg1[%c0_6, %c1, %c0_7] : memref<1x10x80xbf16, #tpu.memory_space<vmem>>, vector<1x8x80xbf16>
    %8 = vector.shape_cast %7 : vector<1x8x80xbf16> to vector<8x80xbf16>
    %c1_8 = arith.constant 1 : index
    %c0_9 = arith.constant 0 : index
    %c0_10 = arith.constant 0 : index
    %9 = vector.load %arg2[%c1_8, %c0_9, %c0_10] : memref<3x80x128xbf16, #tpu.memory_space<vmem>>, vector<1x80x128xbf16>
    %10 = vector.shape_cast %9 : vector<1x80x128xbf16> to vector<80x128xbf16>
    %cst_11 = arith.constant dense<0.000000e+00> : vector<8x128xf32>
    %11 = tpu.matmul %8, %10, %cst_11 {dimension_numbers = #tpu.dot_dimension_numbers<[1], [0], [0], [1], [0, 0, 1, 1], [], []>} : vector<8x80xbf16>, vector<80x128xbf16>, vector<8x128xf32> -> vector<8x128xf32>
    %12 = arith.addf %6, %11 : vector<8x128xf32>
    %c0_12 = arith.constant 0 : index
    %c2 = arith.constant 2 : index
    %c0_13 = arith.constant 0 : index
    %13 = vector.load %arg1[%c0_12, %c2, %c0_13] : memref<1x10x80xbf16, #tpu.memory_space<vmem>>, vector<1x8x80xbf16>
    %14 = vector.shape_cast %13 : vector<1x8x80xbf16> to vector<8x80xbf16>
    %c2_14 = arith.constant 2 : index
    %c0_15 = arith.constant 0 : index
    %c0_16 = arith.constant 0 : index
    %15 = vector.load %arg2[%c2_14, %c0_15, %c0_16] : memref<3x80x128xbf16, #tpu.memory_space<vmem>>, vector<1x80x128xbf16>
    %16 = vector.shape_cast %15 : vector<1x80x128xbf16> to vector<80x128xbf16>
    %cst_17 = arith.constant dense<0.000000e+00> : vector<8x128xf32>
    %17 = tpu.matmul %14, %16, %cst_17 {dimension_numbers = #tpu.dot_dimension_numbers<[1], [0], [0], [1], [0, 0, 1, 1], [], []>} : vector<8x80xbf16>, vector<80x128xbf16>, vector<8x128xf32> -> vector<8x128xf32>
    %18 = arith.addf %12, %17 : vector<8x128xf32>
    %19 = arith.truncf %18 : vector<8x128xf32> to vector<8x128xbf16>
    %c0_18 = arith.constant 0 : index
    %c0_19 = arith.constant 0 : index
    %c0_20 = arith.constant 0 : index
    %20 = vector.load %arg3[%c0_18, %c0_19, %c0_20] : memref<1x8x128xbf16, #tpu.memory_space<vmem>>, vector<1x8x128xbf16>
    %21 = vector.shape_cast %20 : vector<1x8x128xbf16> to vector<8x128xbf16>
    %22 = vector.shape_cast %19 : vector<8x128xbf16> to vector<1x8x128xbf16>
    tpu.vector_store %arg3[%c0_18, %c0_19, %c0_20], %22 {strides = array<i32>} : memref<1x8x128xbf16, #tpu.memory_space<vmem>>, vector<1x8x128xbf16>,
    %cst_21 = arith.constant dense<0.000000e+00> : vector<128xf32>
    %23 = vector.multi_reduction <add>, %18, %cst_21 [0] : vector<8x128xf32> to vector<128xf32>
    %24 = vector.shape_cast %23 : vector<128xf32> to vector<1x128xf32>
    %c0_22 = arith.constant 0 : index
    %c0_23 = arith.constant 0 : index
    %c0_24 = arith.constant 0 : index
    %25 = vector.load %arg4[%c0_22, %c0_23, %c0_24] : memref<1x2x128xf32, #tpu.memory_space<vmem>>, vector<1x1x128xf32>
    %26 = vector.shape_cast %25 : vector<1x1x128xf32> to vector<1x128xf32>
    %27 = vector.shape_cast %24 : vector<1x128xf32> to vector<1x1x128xf32>
    tpu.vector_store %arg4[%c0_22, %c0_23, %c0_24], %27 {strides = array<i32>} : memref<1x2x128xf32, #tpu.memory_space<vmem>>, vector<1x1x128xf32>,
    %28 = arith.mulf %18, %18 : vector<8x128xf32>
    %cst_25 = arith.constant dense<0.000000e+00> : vector<128xf32>
    %29 = vector.multi_reduction <add>, %28, %cst_25 [0] : vector<8x128xf32> to vector<128xf32>
    %30 = vector.shape_cast %29 : vector<128xf32> to vector<1x128xf32>
    %c0_26 = arith.constant 0 : index
    %c1_27 = arith.constant 1 : index
    %c0_28 = arith.constant 0 : index
    %31 = vector.load %arg4[%c0_26, %c1_27, %c0_28] : memref<1x2x128xf32, #tpu.memory_space<vmem>>, vector<1x1x128xf32>
    %32 = vector.shape_cast %31 : vector<1x1x128xf32> to vector<1x128xf32>
    %33 = vector.shape_cast %30 : vector<1x128xf32> to vector<1x1x128xf32>
    tpu.vector_store %arg4[%c0_26, %c1_27, %c0_28], %33 {strides = array<i32>} : memref<1x2x128xf32, #tpu.memory_space<vmem>>, vector<1x1x128xf32>,
    return
  }
  func.func @transform_0(%arg0: i32) -> (i32, i32, i32) {
    %c0_i32 = arith.constant 0 : i32
    %c0_i32_0 = arith.constant 0 : i32
    %c0_i32_1 = arith.constant 0 : i32
    return %arg0, %c0_i32, %c0_i32_0 : i32, i32, i32
  }
  func.func @transform_1(%arg0: i32) -> (i32, i32, i32) {
    %c0_i32 = arith.constant 0 : i32
    %c0_i32_0 = arith.constant 0 : i32
    %c0_i32_1 = arith.constant 0 : i32
    %c0_i32_2 = arith.constant 0 : i32
    return %c0_i32, %c0_i32_0, %c0_i32_1 : i32, i32, i32
  }
  func.func @transform_2(%arg0: i32) -> (i32, i32, i32) {
    %c0_i32 = arith.constant 0 : i32
    %c0_i32_0 = arith.constant 0 : i32
    %c0_i32_1 = arith.constant 0 : i32
    return %arg0, %c0_i32, %c0_i32_0 : i32, i32, i32
  }
  func.func @transform_3(%arg0: i32) -> (i32, i32, i32) {
    %c0_i32 = arith.constant 0 : i32
    %c0_i32_0 = arith.constant 0 : i32
    %c0_i32_1 = arith.constant 0 : i32
    return %arg0, %c0_i32, %c0_i32_0 : i32, i32, i32
  }
}

module attributes {stable_mosaic.version = 11 : i64} {
  func.func @_bn_lrelu_kernel(%arg0: i32, %arg1: memref<16x128xbf16, #tpu.memory_space<vmem>>, %arg2: memref<1x128xf32, #tpu.memory_space<vmem>>, %arg3: memref<1x128xf32, #tpu.memory_space<vmem>>, %arg4: memref<16x128xf32, #tpu.memory_space<vmem>>) attributes {dimension_semantics = [#tpu.dimension_semantics<parallel>], iteration_bounds = array<i64: 1>, scalar_prefetch = 0 : i64, scratch_operands = 0 : i64, tpu.core_type = #tpu.core_type<tc>, window_params = [{transform_indices = @transform_0, window_bounds = array<i64: 16, 128>}, {pipeline_mode = #tpu.pipeline_mode<synchronous>, transform_indices = @transform_1, window_bounds = array<i64: 1, 128>}, {pipeline_mode = #tpu.pipeline_mode<synchronous>, transform_indices = @transform_2, window_bounds = array<i64: 1, 128>}, {transform_indices = @transform_3, window_bounds = array<i64: 16, 128>}]} {
    %c0 = arith.constant 0 : index
    %c0_0 = arith.constant 0 : index
    %0 = vector.load %arg1[%c0, %c0_0] : memref<16x128xbf16, #tpu.memory_space<vmem>>, vector<16x128xbf16>
    %1 = arith.extf %0 : vector<16x128xbf16> to vector<16x128xf32>
    %c0_1 = arith.constant 0 : index
    %c0_2 = arith.constant 0 : index
    %2 = vector.load %arg2[%c0_1, %c0_2] : memref<1x128xf32, #tpu.memory_space<vmem>>, vector<1x128xf32>
    %3 = vector.broadcast %2 : vector<1x128xf32> to vector<16x128xf32>
    %4 = arith.mulf %1, %3 : vector<16x128xf32>
    %c0_3 = arith.constant 0 : index
    %c0_4 = arith.constant 0 : index
    %5 = vector.load %arg3[%c0_3, %c0_4] : memref<1x128xf32, #tpu.memory_space<vmem>>, vector<1x128xf32>
    %6 = vector.broadcast %5 : vector<1x128xf32> to vector<16x128xf32>
    %7 = arith.addf %4, %6 : vector<16x128xf32>
    %cst = arith.constant 0.000000e+00 : f32
    %8 = vector.broadcast %cst : f32 to vector<16x128xf32>
    %9 = arith.cmpf oge, %7, %8 : vector<16x128xf32>
    %cst_5 = arith.constant 0.00999999977 : f32
    %10 = vector.broadcast %cst_5 : f32 to vector<16x128xf32>
    %11 = arith.mulf %10, %7 : vector<16x128xf32>
    %12 = arith.select %9, %7, %11 : vector<16x128xi1>, vector<16x128xf32>
    %c0_6 = arith.constant 0 : index
    %c0_7 = arith.constant 0 : index
    %13 = vector.load %arg4[%c0_6, %c0_7] : memref<16x128xf32, #tpu.memory_space<vmem>>, vector<16x128xf32>
    tpu.vector_store %arg4[%c0_6, %c0_7], %12 {strides = array<i32>} : memref<16x128xf32, #tpu.memory_space<vmem>>, vector<16x128xf32>,
    return
  }
  func.func @transform_0(%arg0: i32) -> (i32, i32) {
    %c0_i32 = arith.constant 0 : i32
    %c0_i32_0 = arith.constant 0 : i32
    return %arg0, %c0_i32 : i32, i32
  }
  func.func @transform_1(%arg0: i32) -> (i32, i32) {
    %c0_i32 = arith.constant 0 : i32
    %c0_i32_0 = arith.constant 0 : i32
    %c0_i32_1 = arith.constant 0 : i32
    return %c0_i32, %c0_i32_0 : i32, i32
  }
  func.func @transform_2(%arg0: i32) -> (i32, i32) {
    %c0_i32 = arith.constant 0 : i32
    %c0_i32_0 = arith.constant 0 : i32
    %c0_i32_1 = arith.constant 0 : i32
    return %c0_i32, %c0_i32_0 : i32, i32
  }
  func.func @transform_3(%arg0: i32) -> (i32, i32) {
    %c0_i32 = arith.constant 0 : i32
    %c0_i32_0 = arith.constant 0 : i32
    return %arg0, %c0_i32 : i32, i32
  }
}

module attributes {stable_mosaic.version = 11 : i64} {
  func.func @_conv_stats_kernel(%arg0: i32, %arg1: memref<1x10x160xbf16, #tpu.memory_space<vmem>>, %arg2: memref<3x160x128xbf16, #tpu.memory_space<vmem>>, %arg3: memref<1x8x128xbf16, #tpu.memory_space<vmem>>, %arg4: memref<1x2x128xf32, #tpu.memory_space<vmem>>) attributes {dimension_semantics = [#tpu.dimension_semantics<parallel>], iteration_bounds = array<i64: 2>, scalar_prefetch = 0 : i64, scratch_operands = 0 : i64, tpu.core_type = #tpu.core_type<tc>, window_params = [{transform_indices = @transform_0, window_bounds = array<i64: 1, 10, 160>}, {pipeline_mode = #tpu.pipeline_mode<synchronous>, transform_indices = @transform_1, window_bounds = array<i64: 3, 160, 128>}, {transform_indices = @transform_2, window_bounds = array<i64: 1, 8, 128>}, {transform_indices = @transform_3, window_bounds = array<i64: 1, 2, 128>}]} {
    %cst = arith.constant 0.000000e+00 : f32
    %0 = vector.broadcast %cst : f32 to vector<8x128xf32>
    %c0 = arith.constant 0 : index
    %c0_0 = arith.constant 0 : index
    %c0_1 = arith.constant 0 : index
    %1 = vector.load %arg1[%c0, %c0_0, %c0_1] : memref<1x10x160xbf16, #tpu.memory_space<vmem>>, vector<1x8x160xbf16>
    %2 = vector.shape_cast %1 : vector<1x8x160xbf16> to vector<8x160xbf16>
    %c0_2 = arith.constant 0 : index
    %c0_3 = arith.constant 0 : index
    %c0_4 = arith.constant 0 : index
    %3 = vector.load %arg2[%c0_2, %c0_3, %c0_4] : memref<3x160x128xbf16, #tpu.memory_space<vmem>>, vector<1x160x128xbf16>
    %4 = vector.shape_cast %3 : vector<1x160x128xbf16> to vector<160x128xbf16>
    %cst_5 = arith.constant dense<0.000000e+00> : vector<8x128xf32>
    %5 = tpu.matmul %2, %4, %cst_5 {dimension_numbers = #tpu.dot_dimension_numbers<[1], [0], [0], [1], [0, 0, 1, 1], [], []>} : vector<8x160xbf16>, vector<160x128xbf16>, vector<8x128xf32> -> vector<8x128xf32>
    %6 = arith.addf %0, %5 : vector<8x128xf32>
    %c0_6 = arith.constant 0 : index
    %c1 = arith.constant 1 : index
    %c0_7 = arith.constant 0 : index
    %7 = vector.load %arg1[%c0_6, %c1, %c0_7] : memref<1x10x160xbf16, #tpu.memory_space<vmem>>, vector<1x8x160xbf16>
    %8 = vector.shape_cast %7 : vector<1x8x160xbf16> to vector<8x160xbf16>
    %c1_8 = arith.constant 1 : index
    %c0_9 = arith.constant 0 : index
    %c0_10 = arith.constant 0 : index
    %9 = vector.load %arg2[%c1_8, %c0_9, %c0_10] : memref<3x160x128xbf16, #tpu.memory_space<vmem>>, vector<1x160x128xbf16>
    %10 = vector.shape_cast %9 : vector<1x160x128xbf16> to vector<160x128xbf16>
    %cst_11 = arith.constant dense<0.000000e+00> : vector<8x128xf32>
    %11 = tpu.matmul %8, %10, %cst_11 {dimension_numbers = #tpu.dot_dimension_numbers<[1], [0], [0], [1], [0, 0, 1, 1], [], []>} : vector<8x160xbf16>, vector<160x128xbf16>, vector<8x128xf32> -> vector<8x128xf32>
    %12 = arith.addf %6, %11 : vector<8x128xf32>
    %c0_12 = arith.constant 0 : index
    %c2 = arith.constant 2 : index
    %c0_13 = arith.constant 0 : index
    %13 = vector.load %arg1[%c0_12, %c2, %c0_13] : memref<1x10x160xbf16, #tpu.memory_space<vmem>>, vector<1x8x160xbf16>
    %14 = vector.shape_cast %13 : vector<1x8x160xbf16> to vector<8x160xbf16>
    %c2_14 = arith.constant 2 : index
    %c0_15 = arith.constant 0 : index
    %c0_16 = arith.constant 0 : index
    %15 = vector.load %arg2[%c2_14, %c0_15, %c0_16] : memref<3x160x128xbf16, #tpu.memory_space<vmem>>, vector<1x160x128xbf16>
    %16 = vector.shape_cast %15 : vector<1x160x128xbf16> to vector<160x128xbf16>
    %cst_17 = arith.constant dense<0.000000e+00> : vector<8x128xf32>
    %17 = tpu.matmul %14, %16, %cst_17 {dimension_numbers = #tpu.dot_dimension_numbers<[1], [0], [0], [1], [0, 0, 1, 1], [], []>} : vector<8x160xbf16>, vector<160x128xbf16>, vector<8x128xf32> -> vector<8x128xf32>
    %18 = arith.addf %12, %17 : vector<8x128xf32>
    %19 = arith.truncf %18 : vector<8x128xf32> to vector<8x128xbf16>
    %c0_18 = arith.constant 0 : index
    %c0_19 = arith.constant 0 : index
    %c0_20 = arith.constant 0 : index
    %20 = vector.load %arg3[%c0_18, %c0_19, %c0_20] : memref<1x8x128xbf16, #tpu.memory_space<vmem>>, vector<1x8x128xbf16>
    %21 = vector.shape_cast %20 : vector<1x8x128xbf16> to vector<8x128xbf16>
    %22 = vector.shape_cast %19 : vector<8x128xbf16> to vector<1x8x128xbf16>
    tpu.vector_store %arg3[%c0_18, %c0_19, %c0_20], %22 {strides = array<i32>} : memref<1x8x128xbf16, #tpu.memory_space<vmem>>, vector<1x8x128xbf16>,
    %cst_21 = arith.constant dense<0.000000e+00> : vector<128xf32>
    %23 = vector.multi_reduction <add>, %18, %cst_21 [0] : vector<8x128xf32> to vector<128xf32>
    %24 = vector.shape_cast %23 : vector<128xf32> to vector<1x128xf32>
    %c0_22 = arith.constant 0 : index
    %c0_23 = arith.constant 0 : index
    %c0_24 = arith.constant 0 : index
    %25 = vector.load %arg4[%c0_22, %c0_23, %c0_24] : memref<1x2x128xf32, #tpu.memory_space<vmem>>, vector<1x1x128xf32>
    %26 = vector.shape_cast %25 : vector<1x1x128xf32> to vector<1x128xf32>
    %27 = vector.shape_cast %24 : vector<1x128xf32> to vector<1x1x128xf32>
    tpu.vector_store %arg4[%c0_22, %c0_23, %c0_24], %27 {strides = array<i32>} : memref<1x2x128xf32, #tpu.memory_space<vmem>>, vector<1x1x128xf32>,
    %28 = arith.mulf %18, %18 : vector<8x128xf32>
    %cst_25 = arith.constant dense<0.000000e+00> : vector<128xf32>
    %29 = vector.multi_reduction <add>, %28, %cst_25 [0] : vector<8x128xf32> to vector<128xf32>
    %30 = vector.shape_cast %29 : vector<128xf32> to vector<1x128xf32>
    %c0_26 = arith.constant 0 : index
    %c1_27 = arith.constant 1 : index
    %c0_28 = arith.constant 0 : index
    %31 = vector.load %arg4[%c0_26, %c1_27, %c0_28] : memref<1x2x128xf32, #tpu.memory_space<vmem>>, vector<1x1x128xf32>
    %32 = vector.shape_cast %31 : vector<1x1x128xf32> to vector<1x128xf32>
    %33 = vector.shape_cast %30 : vector<1x128xf32> to vector<1x1x128xf32>
    tpu.vector_store %arg4[%c0_26, %c1_27, %c0_28], %33 {strides = array<i32>} : memref<1x2x128xf32, #tpu.memory_space<vmem>>, vector<1x1x128xf32>,
    return
  }
  func.func @transform_0(%arg0: i32) -> (i32, i32, i32) {
    %c0_i32 = arith.constant 0 : i32
    %c0_i32_0 = arith.constant 0 : i32
    %c0_i32_1 = arith.constant 0 : i32
    return %arg0, %c0_i32, %c0_i32_0 : i32, i32, i32
  }
  func.func @transform_1(%arg0: i32) -> (i32, i32, i32) {
    %c0_i32 = arith.constant 0 : i32
    %c0_i32_0 = arith.constant 0 : i32
    %c0_i32_1 = arith.constant 0 : i32
    %c0_i32_2 = arith.constant 0 : i32
    return %c0_i32, %c0_i32_0, %c0_i32_1 : i32, i32, i32
  }
  func.func @transform_2(%arg0: i32) -> (i32, i32, i32) {
    %c0_i32 = arith.constant 0 : i32
    %c0_i32_0 = arith.constant 0 : i32
    %c0_i32_1 = arith.constant 0 : i32
    return %arg0, %c0_i32, %c0_i32_0 : i32, i32, i32
  }
  func.func @transform_3(%arg0: i32) -> (i32, i32, i32) {
    %c0_i32 = arith.constant 0 : i32
    %c0_i32_0 = arith.constant 0 : i32
    %c0_i32_1 = arith.constant 0 : i32
    return %arg0, %c0_i32, %c0_i32_0 : i32, i32, i32
  }
}

</mosaic_0001>

<llo_original>
// kernel: tile.43
$region0: #{tile.43}
  #allocation0 [shape = 's32[1]{0}', space=sflag, size = 0x4, scoped, tag = 'scoped memory for tile.43']
  %s0 = inlined_call_operand.vmem [shape: f32[8], index: 0, kind: input, shape index: {}]
  %s1 = inlined_call_operand.vmem [shape: f32[16,8], index: 1, kind: output, shape index: {}]
  // Predicated region
  $region2: #{tile.43} parent=0 // pred_check
    _
  $region3: #{tile.43} parent=0 // pred_check_branch
    %3 = sbr.rel (0) target = $region5
  $region4: #{tile.43} parent=0 // pred_region
    _
  $region5: #{tile.43} parent=0 // pred_fallthru
    _
  %v4 = vld [vmem:[%s0] ss:$0 sm:$0xff]
  %5 = vst [vmem:[%s1] sm:$0xff] %v4
  %s6 = scalar_lea.vmem %s1, 8
  %7 = vst [vmem:[%s6] sm:$0xff] %v4

// kernel: tile.44
$region0: #{tile.44}
  %s0 = inlined_call_operand.vmem [shape: f32[16,8], index: 0, kind: input, shape index: {}]
  %s1 = inlined_call_operand.vmem [shape: f32[1,128], index: 1, kind: output, shape index: {}]
  $region1: #{tile.44} parent=0
    #allocation0 [shape = 'u8[4096]{0}', space=vmem, size = 0x1000, scoped, tag = 'scoped mem for output reshape']
    %v2 = vld [vmem:[%s0] sm:$0x1]
    %vm3 = vcmask 64512
    %4 = vst.msk [vmem:[#allocation0] sm:$0x1] %vm3, %v2
    %s5 = scalar_lea.vmem %s0, 15
    %v6 = vld [vmem:[%s5] sm:$0x1]
    %7 = vrot.lane.b32.xlu0 %v6, 120
    %v8 = vpop.permute.xlu0 %7
    %vm9 = vcmask 1048512
    %10 = vst.msk [vmem:[#allocation0] sm:$0x1] %vm9, %v8
    %s11 = scalar_lea.vmem %s0, 14
    %v12 = vld [vmem:[%s11] sm:$0x1]
    %13 = vrot.lane.b32.xlu0 %v12, 112
    %v14 = vpop.permute.xlu0 %13
    %vm15 = vcmask 982912
    %16 = vst.msk [vmem:[#allocation0] sm:$0x1] %vm15, %v14
    %s17 = scalar_lea.vmem %s0, 13
    %v18 = vld [vmem:[%s17] sm:$0x1]
    %19 = vrot.lane.b32.xlu0 %v18, 104
    %v20 = vpop.permute.xlu0 %19
    %vm21 = vcmask 917312
    %22 = vst.msk [vmem:[#allocation0] sm:$0x1] %vm21, %v20
    %s23 = scalar_lea.vmem %s0, 12
    %v24 = vld [vmem:[%s23] sm:$0x1]
    %25 = vrot.lane.b32.xlu0 %v24, 96
    %v26 = vpop.permute.xlu0 %25
    %vm27 = vcmask 851712
    %28 = vst.msk [vmem:[#allocation0] sm:$0x1] %vm27, %v26
    %s29 = scalar_lea.vmem %s0, 11
    %v30 = vld [vmem:[%s29] sm:$0x1]
    %31 = vrot.lane.b32.xlu0 %v30, 88
    %v32 = vpop.permute.xlu0 %31
    %vm33 = vcmask 786112
    %34 = vst.msk [vmem:[#allocation0] sm:$0x1] %vm33, %v32
    %s35 = scalar_lea.vmem %s0, 10
    %v36 = vld [vmem:[%s35] sm:$0x1]
    %37 = vrot.lane.b32.xlu0 %v36, 80
    %v38 = vpop.permute.xlu0 %37
    %vm39 = vcmask 720512
    %40 = vst.msk [vmem:[#allocation0] sm:$0x1] %vm39, %v38
    %s41 = scalar_lea.vmem %s0, 9
    %v42 = vld [vmem:[%s41] sm:$0x1]
    %43 = vrot.lane.b32.xlu0 %v42, 72
    %v44 = vpop.permute.xlu0 %43
    %vm45 = vcmask 654912
    %46 = vst.msk [vmem:[#allocation0] sm:$0x1] %vm45, %v44
    %s47 = scalar_lea.vmem %s0, 8
    %v48 = vld [vmem:[%s47] sm:$0x1]
    %49 = vrot.lane.b32.xlu0 %v48, 64
    %v50 = vpop.permute.xlu0 %49
    %vm51 = vcmask 589312
    %52 = vst.msk [vmem:[#allocation0] sm:$0x1] %vm51, %v50
    %s53 = scalar_lea.vmem %s0, 7
    %v54 = vld [vmem:[%s53] sm:$0x1]
    %55 = vrot.lane.b32.xlu0 %v54, 56
    %v56 = vpop.permute.xlu0 %55
    %vm57 = vcmask 523712
    %58 = vst.msk [vmem:[#allocation0] sm:$0x1] %vm57, %v56
    %s59 = scalar_lea.vmem %s0, 6
    %v60 = vld [vmem:[%s59] sm:$0x1]
    %61 = vrot.lane.b32.xlu0 %v60, 48
    %v62 = vpop.permute.xlu0 %61
    %vm63 = vcmask 458112
    %64 = vst.msk [vmem:[#allocation0] sm:$0x1] %vm63, %v62
    %s65 = scalar_lea.vmem %s0, 5
    %v66 = vld [vmem:[%s65] sm:$0x1]
    %67 = vrot.lane.b32.xlu0 %v66, 40
    %v68 = vpop.permute.xlu0 %67
    %vm69 = vcmask 392512
    %70 = vst.msk [vmem:[#allocation0] sm:$0x1] %vm69, %v68
    %s71 = scalar_lea.vmem %s0, 4
    %v72 = vld [vmem:[%s71] sm:$0x1]
    %73 = vrot.lane.b32.xlu0 %v72, 32
    %v74 = vpop.permute.xlu0 %73
    %vm75 = vcmask 326912
    %76 = vst.msk [vmem:[#allocation0] sm:$0x1] %vm75, %v74
    %s77 = scalar_lea.vmem %s0, 3
    %v78 = vld [vmem:[%s77] sm:$0x1]
    %79 = vrot.lane.b32.xlu0 %v78, 24
    %v80 = vpop.permute.xlu0 %79
    %vm81 = vcmask 261312
    %82 = vst.msk [vmem:[#allocation0] sm:$0x1] %vm81, %v80
    %s83 = scalar_lea.vmem %s0, 2
    %v84 = vld [vmem:[%s83] sm:$0x1]
    %85 = vrot.lane.b32.xlu0 %v84, 16
    %v86 = vpop.permute.xlu0 %85
    %vm87 = vcmask 195712
    %88 = vst.msk [vmem:[#allocation0] sm:$0x1] %vm87, %v86
    %s89 = scalar_lea.vmem %s0, 1
    %v90 = vld [vmem:[%s89] sm:$0x1]
    %91 = vrot.lane.b32.xlu0 %v90, 8
    %v92 = vpop.permute.xlu0 %91
    %vm93 = vcmask 130112
    %94 = vst.msk [vmem:[#allocation0] sm:$0x1] %vm93, %v92
    %s96 = sshllo.u32 0, 1
    %v98 = vld [vmem:[#allocation0] sm:%s96]
    %s99 = sshllo.u32 0, 1
    %100 = vst [vmem:[%s1] sm:%s99] %v98

// kernel: conv_encoder_forward.9
$region0: #{conv_encoder_forward.9}
  #allocation0 [shape = 'u32[]', space=smem, size = 0x4, offset = 0x4, fixed_abs, tag = 'smem constant byte address 0x4 - core index']
  #allocation1 [shape = 'u32[144,128]{1,0:T(1,128)}', space=vmem, size = 0x12000, scoped, tag = 'internal scratch']
  %s0 = inlined_call_operand.vmem [shape: bf16[32,128], index: 0, kind: input, shape index: {}]
  %s1 = inlined_call_operand.vmem [shape: f32[1,128], index: 1, kind: input, shape index: {}]
  %s2 = inlined_call_operand.vmem [shape: f32[1,128], index: 2, kind: input, shape index: {}]
  %s3 = inlined_call_operand.vmem [shape: f32[32,128], index: 3, kind: output, shape index: {}]
  %s4 = sld [smem:[#allocation0]]
  $region45: #{conv_encoder_forward.9} parent=0
    _
  %s6 = ssub.s32 1, %s4
  %s7 = scalar_select 0, %s6, %s4
  loop: start=0, step=1, limit=4
  $region2: #{conv_encoder_forward.9} parent=0 // loop_pre_header
    _
  $region3: #{conv_encoder_forward.9} parent=0 // loop_header
    %s9 = sphi 0, %s13
    %p10 = scmp.ge.s32.totalorder %s9, 4
    %s19 = sphi 0, %s21
    %s22 = sphi 0, %s19
    %s23 = sphi 0, %s22
    %s39 = sphi 0, %s23
    %s43 = sphi 0, %s43
    %s45 = sphi 0, %s43
    %s46 = sphi 0, %s45
    %s60 = sphi 0, %s46
    %s64 = sphi 0, %s64
    %s66 = sphi 0, %s64
    %s67 = sphi 0, %s66
    %s81 = sphi 0, %s67
    %s87 = sphi 0, %s89
    %s90 = sphi 0, %s87
    %s91 = sphi 0, %s90
    %s107 = sphi 0, %s91
  $region4: #{conv_encoder_forward.9} parent=0 // loop_header_branch
    %12 = sbr.rel (%p10) target = $region8
  $region5: #{conv_encoder_forward.9} parent=0 // loop_body
    %s14 = ssub.s32 %s9, 1
    %s15 = ssub.s32 %s9, 2
    %s16 = sadd.s32 %s9, 1
    %s17 = ssub.s32 %s9, %s16
    %p18 = scmp.eq.s32.totalorder %s17, 0
    %s20 = sadd.s32 %s19, 1
    %s21 = scalar_select %p18, %s19, %s20
    %p24 = pneg %p18
    %p25 = scmp.eq.s32.totalorder %s9, 1
    %p26 = por %p24, %p25
    %p27 = scmp.ne.s32.totalorder %s19, %s22
    %p28 = scmp.eq.s32.totalorder %s9, 0
    %p29 = por %p27, %p28
    %p30 = scmp.ne.s32.totalorder %s19, %s22
    %p31 = scmp.eq.s32.totalorder %s14, 1
    %p32 = por %p30, %p31
    %p33 = scmp.ne.s32.totalorder %s22, %s23
    %p34 = scmp.eq.s32.totalorder %s14, 0
    %p35 = por %p33, %p34
    %p36 = scmp.ne.s32.totalorder %s22, %s23
    %p37 = scmp.eq.s32.totalorder %s15, 1
    %p38 = por %p36, %p37
    %p40 = scmp.ne.s32.totalorder %s23, %s39
    %p41 = scmp.eq.s32.totalorder %s15, 0
    %p42 = por %p40, %p41
    %s44 = sadd.s32 %s43, 1
    %p47 = scmp.eq.s32.totalorder %s9, 1
    %p48 = scmp.ne.s32.totalorder %s43, %s45
    %p49 = scmp.eq.s32.totalorder %s9, 0
    %p50 = por %p48, %p49
    %p51 = scmp.ne.s32.totalorder %s43, %s45
    %p52 = scmp.eq.s32.totalorder %s14, 1
    %p53 = por %p51, %p52
    %p54 = scmp.ne.s32.totalorder %s45, %s46
    %p55 = scmp.eq.s32.totalorder %s14, 0
    %p56 = por %p54, %p55
    %p57 = scmp.ne.s32.totalorder %s45, %s46
    %p58 = scmp.eq.s32.totalorder %s15, 1
    %p59 = por %p57, %p58
    %p61 = scmp.ne.s32.totalorder %s46, %s60
    %p62 = scmp.eq.s32.totalorder %s15, 0
    %p63 = por %p61, %p62
    %s65 = sadd.s32 %s64, 1
    %p68 = scmp.eq.s32.totalorder %s9, 1
    %p69 = scmp.ne.s32.totalorder %s64, %s66
    %p70 = scmp.eq.s32.totalorder %s9, 0
    %p71 = por %p69, %p70
    %p72 = scmp.ne.s32.totalorder %s64, %s66
    %p73 = scmp.eq.s32.totalorder %s14, 1
    %p74 = por %p72, %p73
    %p75 = scmp.ne.s32.totalorder %s66, %s67
    %p76 = scmp.eq.s32.totalorder %s14, 0
    %p77 = por %p75, %p76
    %p78 = scmp.ne.s32.totalorder %s66, %s67
    %p79 = scmp.eq.s32.totalorder %s15, 1
    %p80 = por %p78, %p79
    %p82 = scmp.ne.s32.totalorder %s67, %s81
    %p83 = scmp.eq.s32.totalorder %s15, 0
    %p84 = por %p82, %p83
    %s85 = ssub.s32 %s9, %s16
    %p86 = scmp.eq.s32.totalorder %s85, 0
    %s88 = sadd.s32 %s87, 1
    %s89 = scalar_select %p86, %s87, %s88
    %p92 = pneg %p86
    %p93 = scmp.eq.s32.totalorder %s9, 1
    %p94 = por %p92, %p93
    %p95 = scmp.ne.s32.totalorder %s87, %s90
    %p96 = scmp.eq.s32.totalorder %s9, 0
    %p97 = por %p95, %p96
    %p98 = scmp.ne.s32.totalorder %s87, %s90
    %p99 = scmp.eq.s32.totalorder %s14, 1
    %p100 = por %p98, %p99
    %p101 = scmp.ne.s32.totalorder %s90, %s91
    %p102 = scmp.eq.s32.totalorder %s14, 0
    %p103 = por %p101, %p102
    %p104 = scmp.ne.s32.totalorder %s90, %s91
    %p105 = scmp.eq.s32.totalorder %s15, 1
    %p106 = por %p104, %p105
    %p108 = scmp.ne.s32.totalorder %s91, %s107
    %p109 = scmp.eq.s32.totalorder %s15, 0
    %p110 = por %p108, %p109
    %p111 = scmp.le.s32.totalorder 1, %s9
    %p112 = scmp.lt.s32.totalorder %s9, 3
    %p113 = pnand %p111, %p112
    %p114 = pneg %p113
    // Predicated region
    $region9: #{conv_encoder_forward.9} parent=5 // pred_check
      _
    $region10: #{conv_encoder_forward.9} parent=5 // pred_check_branch
      %116 = sbr.rel (%p113) target = $region12
    $region11: #{conv_encoder_forward.9} parent=5 // pred_region
      %s117 = ssub.s32 %s9, 1
      // Predicated region
      $region13: #{conv_encoder_forward.9} parent=11 // pred_check
        %p118 = pneg %p56
      $region14: #{conv_encoder_forward.9} parent=11 // pred_check_branch
        %120 = sbr.rel (%p118) target = $region16
      $region15: #{conv_encoder_forward.9} parent=11 // pred_region
        _
      $region16: #{conv_encoder_forward.9} parent=11 // pred_fallthru
        _
      // Predicated region
      $region17: #{conv_encoder_forward.9} parent=11 // pred_check
        %p121 = pneg %p77
      $region18: #{conv_encoder_forward.9} parent=11 // pred_check_branch
        %123 = sbr.rel (%p121) target = $region20
      $region19: #{conv_encoder_forward.9} parent=11 // pred_region
        _
      $region20: #{conv_encoder_forward.9} parent=11 // pred_fallthru
        _
    $region12: #{conv_encoder_forward.9} parent=5 // pred_fallthru
      _
    %p124 = scmp.lt.s32.totalorder %s9, 2
    // Predicated region
    $region21: #{conv_encoder_forward.9} parent=5 // pred_check
      %p125 = pneg %p124
    $region22: #{conv_encoder_forward.9} parent=5 // pred_check_branch
      %127 = sbr.rel (%p125) target = $region24
    $region23: #{conv_encoder_forward.9} parent=5 // pred_region
      // Predicated region
      $region25: #{conv_encoder_forward.9} parent=23 // pred_check
        %p128 = pneg %p29
      $region26: #{conv_encoder_forward.9} parent=23 // pred_check_branch
        %130 = sbr.rel (%p128) target = $region28
      $region27: #{conv_encoder_forward.9} parent=23 // pred_region
        %s131 = smul.u32 2, %s9
        %p132 = scmp.lt.s32.totalorder %s131, 3
        %s133 = scalar_select %p132, %s131, 3
        %s134 = smul.addr %s133, 4
        %s135 = scalar_lea.vmem %s0, %s134
        %s136 = smul.u32 2, %s9
      $region28: #{conv_encoder_forward.9} parent=23 // pred_fallthru
        _
    $region24: #{conv_encoder_forward.9} parent=5 // pred_fallthru
      _
    %p137 = scmp.le.s32.totalorder 1, %s9
    %p138 = scmp.lt.s32.totalorder %s9, 3
    %p139 = pnand %p137, %p138
    %p140 = pneg %p139
    // Predicated region
    $region29: #{conv_encoder_forward.9} parent=5 // pred_check
      _
    $region30: #{conv_encoder_forward.9} parent=5 // pred_check_branch
      %142 = sbr.rel (%p139) target = $region32
    $region31: #{conv_encoder_forward.9} parent=5 // pred_region
      %s143 = ssub.s32 %s9, 1
      %s144 = smul.u32 2, %s14
      %p145 = scmp.lt.s32.totalorder %s144, 3
      %s146 = scalar_select %p145, %s144, 3
      %s147 = smul.addr %s146, 4
      %s148 = scalar_lea.vmem %s0, %s147
      %p149 = pneg %p35
      %p150 = pneg %p32
      %p151 = pneg %p56
      %p152 = pneg %p53
      %p153 = pneg %p77
      %p154 = pneg %p74
      %p155 = pneg %p103
      %p156 = pneg %p100
      %s157 = smul.u32 2, %s14
      %p158 = scmp.lt.s32.totalorder %s157, 3
      %s159 = scalar_select %p158, %s157, 3
      %s160 = smul.addr %s159, 8
      %s161 = scalar_lea.vmem %s3, %s160
      %s162 = smul.u32 2, %s14
      %p163 = scmp.lt.s32.totalorder %s162, 3
      %s164 = scalar_select %p163, %s162, 3
      %s165 = smul.addr %s164, 4
      %s166 = scalar_lea.vmem %s0, %s165
      %s167 = smul.u32 2, %s14
      %s168 = smul.u32 2, %s14
      %p169 = scmp.lt.s32.totalorder %s168, 3
      %s170 = scalar_select %p169, %s168, 3
      %s171 = smul.addr %s170, 8
      %s172 = scalar_lea.vmem %s3, %s171
      %s173 = smul.u32 2, %s14
      %v174 = vld [vmem:[%s166] sm:$0xf]
      %v175 = vld [vmem:[%s166 + $0x4] sm:$0xf]
      %v176 = vunpack.c.l.bf16 %v174
      %v177 = vunpack.c.l.bf16 %v175
      %v178 = vld [vmem:[%s1] sm:$0x1]
      %v180 = vlaneseq
      %v181 = vshrl.u32 %v180, 7
      %v182 = vsub.s32 0, %v181
      %v183 = vrot.slane %v178, %v182
      %v185 = vmul.f32 %v176, %v183
      %v186 = vmul.f32 %v177, %v183
      %v187 = vld [vmem:[%s2] sm:$0x1]
      %v189 = vlaneseq
      %v190 = vshrl.u32 %v189, 7
      %v191 = vsub.s32 0, %v190
      %v192 = vrot.slane %v187, %v191
      %v194 = vadd.f32 %v185, %v192
      %v195 = vadd.f32 %v186, %v192
      %vm196 = vcmp.ge.f32.partialorder %v194, 0.0
      %vm197 = vcmp.ge.f32.partialorder %v195, 0.0
      %v198 = vmul.f32 %v194, 0.01
      %v199 = vmul.f32 %v195, 0.01
      %v200 = vsel %vm196, %v194, %v198
      %v201 = vsel %vm197, %v195, %v199
      %202 = vst [vmem:[%s172] sm:$0xff] %v200
      %203 = vst [vmem:[%s172 + $0x8] sm:$0xff] %v201
      %s204 = smul.u32 2, %s14
      %p205 = scmp.lt.s32.totalorder %s204, 3
      %s206 = scalar_select %p205, %s204, 3
      %s207 = smul.addr %s206, 8
      %s208 = scalar_lea.vmem %s3, %s207
      // Predicated region
      $region33: #{conv_encoder_forward.9} parent=31 // pred_check
        %p209 = pneg %p100
      $region34: #{conv_encoder_forward.9} parent=31 // pred_check_branch
        %211 = sbr.rel (%p209) target = $region36
      $region35: #{conv_encoder_forward.9} parent=31 // pred_region
        %s212 = smul.u32 2, %s14
      $region36: #{conv_encoder_forward.9} parent=31 // pred_fallthru
        _
    $region32: #{conv_encoder_forward.9} parent=5 // pred_fallthru
      _
    %p213 = scmp.le.s32.totalorder 2, %s9
    // Predicated region
    $region37: #{conv_encoder_forward.9} parent=5 // pred_check
      %p214 = pneg %p213
    $region38: #{conv_encoder_forward.9} parent=5 // pred_check_branch
      %216 = sbr.rel (%p214) target = $region40
    $region39: #{conv_encoder_forward.9} parent=5 // pred_region
      %s217 = ssub.s32 %s9, 2
      // Predicated region
      $region41: #{conv_encoder_forward.9} parent=39 // pred_check
        %p218 = pneg %p106
      $region42: #{conv_encoder_forward.9} parent=39 // pred_check_branch
        %220 = sbr.rel (%p218) target = $region44
      $region43: #{conv_encoder_forward.9} parent=39 // pred_region
        %s221 = smul.u32 2, %s15
        %p222 = scmp.lt.s32.totalorder %s221, 3
        %s223 = scalar_select %p222, %s221, 3
        %s224 = smul.addr %s223, 8
        %s225 = scalar_lea.vmem %s3, %s224
      $region44: #{conv_encoder_forward.9} parent=39 // pred_fallthru
        _
    $region40: #{conv_encoder_forward.9} parent=5 // pred_fallthru
      _
  $region6: #{conv_encoder_forward.9} parent=0 // loop_footer
    %s13 = sadd.s32 1, %s9
  $region7: #{conv_encoder_forward.9} parent=0 // loop_footer_branch
    %8 = sbr.rel target = $region3
  $region8: #{conv_encoder_forward.9} parent=0 // loop_exit
    _

// kernel: conv_encoder_forward.8
$region0: #{conv_encoder_forward.8}
  #allocation0 [shape = 'u32[]', space=smem, size = 0x4, offset = 0x4, fixed_abs, tag = 'smem constant byte address 0x4 - core index']
  #allocation1 [shape = 'u32[144,128]{1,0:T(1,128)}', space=vmem, size = 0x12000, scoped, tag = 'internal scratch']
  %s0 = inlined_call_operand.vmem [shape: bf16[2,18,72], index: 0, kind: input, shape index: {}]
  %s1 = inlined_call_operand.vmem [shape: bf16[3,72,128], index: 1, kind: input, shape index: {}]
  %s2 = inlined_call_operand.vmem [shape: bf16[2,16,128], index: 2, kind: output, shape index: {0}]
  %s3 = inlined_call_operand.vmem [shape: f32[2,2,128], index: 3, kind: output, shape index: {1}]
  %4 = xla_tuple %s2, %s3
  %s5 = sld [smem:[#allocation0]]
  $region49: #{conv_encoder_forward.8} parent=0
    _
  %s7 = ssub.s32 1, %s5
  %s8 = scalar_select 0, %s7, %s5
  loop: start=0, step=1, limit=4
  $region2: #{conv_encoder_forward.8} parent=0 // loop_pre_header
    _
  $region3: #{conv_encoder_forward.8} parent=0 // loop_header
    %s10 = sphi 0, %s14
    %p11 = scmp.ge.s32.totalorder %s10, 4
    %s20 = sphi 0, %s22
    %s23 = sphi 0, %s20
    %s24 = sphi 0, %s23
    %s40 = sphi 0, %s24
    %s44 = sphi 0, %s44
    %s46 = sphi 0, %s44
    %s47 = sphi 0, %s46
    %s61 = sphi 0, %s47
    %s67 = sphi 0, %s69
    %s70 = sphi 0, %s67
    %s71 = sphi 0, %s70
    %s87 = sphi 0, %s71
    %s93 = sphi 0, %s95
    %s96 = sphi 0, %s93
    %s97 = sphi 0, %s96
    %s113 = sphi 0, %s97
  $region4: #{conv_encoder_forward.8} parent=0 // loop_header_branch
    %13 = sbr.rel (%p11) target = $region8
  $region5: #{conv_encoder_forward.8} parent=0 // loop_body
    %s15 = ssub.s32 %s10, 1
    %s16 = ssub.s32 %s10, 2
    %s17 = sadd.s32 %s10, 1
    %s18 = ssub.s32 %s10, %s17
    %p19 = scmp.eq.s32.totalorder %s18, 0
    %s21 = sadd.s32 %s20, 1
    %s22 = scalar_select %p19, %s20, %s21
    %p25 = pneg %p19
    %p26 = scmp.eq.s32.totalorder %s10, 1
    %p27 = por %p25, %p26
    %p28 = scmp.ne.s32.totalorder %s20, %s23
    %p29 = scmp.eq.s32.totalorder %s10, 0
    %p30 = por %p28, %p29
    %p31 = scmp.ne.s32.totalorder %s20, %s23
    %p32 = scmp.eq.s32.totalorder %s15, 1
    %p33 = por %p31, %p32
    %p34 = scmp.ne.s32.totalorder %s23, %s24
    %p35 = scmp.eq.s32.totalorder %s15, 0
    %p36 = por %p34, %p35
    %p37 = scmp.ne.s32.totalorder %s23, %s24
    %p38 = scmp.eq.s32.totalorder %s16, 1
    %p39 = por %p37, %p38
    %p41 = scmp.ne.s32.totalorder %s24, %s40
    %p42 = scmp.eq.s32.totalorder %s16, 0
    %p43 = por %p41, %p42
    %s45 = sadd.s32 %s44, 1
    %p48 = scmp.eq.s32.totalorder %s10, 1
    %p49 = scmp.ne.s32.totalorder %s44, %s46
    %p50 = scmp.eq.s32.totalorder %s10, 0
    %p51 = por %p49, %p50
    %p52 = scmp.ne.s32.totalorder %s44, %s46
    %p53 = scmp.eq.s32.totalorder %s15, 1
    %p54 = por %p52, %p53
    %p55 = scmp.ne.s32.totalorder %s46, %s47
    %p56 = scmp.eq.s32.totalorder %s15, 0
    %p57 = por %p55, %p56
    %p58 = scmp.ne.s32.totalorder %s46, %s47
    %p59 = scmp.eq.s32.totalorder %s16, 1
    %p60 = por %p58, %p59
    %p62 = scmp.ne.s32.totalorder %s47, %s61
    %p63 = scmp.eq.s32.totalorder %s16, 0
    %p64 = por %p62, %p63
    %s65 = ssub.s32 %s10, %s17
    %p66 = scmp.eq.s32.totalorder %s65, 0
    %s68 = sadd.s32 %s67, 1
    %s69 = scalar_select %p66, %s67, %s68
    %p72 = pneg %p66
    %p73 = scmp.eq.s32.totalorder %s10, 1
    %p74 = por %p72, %p73
    %p75 = scmp.ne.s32.totalorder %s67, %s70
    %p76 = scmp.eq.s32.totalorder %s10, 0
    %p77 = por %p75, %p76
    %p78 = scmp.ne.s32.totalorder %s67, %s70
    %p79 = scmp.eq.s32.totalorder %s15, 1
    %p80 = por %p78, %p79
    %p81 = scmp.ne.s32.totalorder %s70, %s71
    %p82 = scmp.eq.s32.totalorder %s15, 0
    %p83 = por %p81, %p82
    %p84 = scmp.ne.s32.totalorder %s70, %s71
    %p85 = scmp.eq.s32.totalorder %s16, 1
    %p86 = por %p84, %p85
    %p88 = scmp.ne.s32.totalorder %s71, %s87
    %p89 = scmp.eq.s32.totalorder %s16, 0
    %p90 = por %p88, %p89
    %s91 = ssub.s32 %s10, %s17
    %p92 = scmp.eq.s32.totalorder %s91, 0
    %s94 = sadd.s32 %s93, 1
    %s95 = scalar_select %p92, %s93, %s94
    %p98 = pneg %p92
    %p99 = scmp.eq.s32.totalorder %s10, 1
    %p100 = por %p98, %p99
    %p101 = scmp.ne.s32.totalorder %s93, %s96
    %p102 = scmp.eq.s32.totalorder %s10, 0
    %p103 = por %p101, %p102
    %p104 = scmp.ne.s32.totalorder %s93, %s96
    %p105 = scmp.eq.s32.totalorder %s15, 1
    %p106 = por %p104, %p105
    %p107 = scmp.ne.s32.totalorder %s96, %s97
    %p108 = scmp.eq.s32.totalorder %s15, 0
    %p109 = por %p107, %p108
    %p110 = scmp.ne.s32.totalorder %s96, %s97
    %p111 = scmp.eq.s32.totalorder %s16, 1
    %p112 = por %p110, %p111
    %p114 = scmp.ne.s32.totalorder %s97, %s113
    %p115 = scmp.eq.s32.totalorder %s16, 0
    %p116 = por %p114, %p115
    %p117 = scmp.le.s32.totalorder 1, %s10
    %p118 = scmp.lt.s32.totalorder %s10, 3
    %p119 = pnand %p117, %p118
    %p120 = pneg %p119
    // Predicated region
    $region9: #{conv_encoder_forward.8} parent=5 // pred_check
      _
    $region10: #{conv_encoder_forward.8} parent=5 // pred_check_branch
      %122 = sbr.rel (%p119) target = $region12
    $region11: #{conv_encoder_forward.8} parent=5 // pred_region
      %s123 = ssub.s32 %s10, 1
      // Predicated region
      $region13: #{conv_encoder_forward.8} parent=11 // pred_check
        %p124 = pneg %p57
      $region14: #{conv_encoder_forward.8} parent=11 // pred_check_branch
        %126 = sbr.rel (%p124) target = $region16
      $region15: #{conv_encoder_forward.8} parent=11 // pred_region
        _
      $region16: #{conv_encoder_forward.8} parent=11 // pred_fallthru
        _
    $region12: #{conv_encoder_forward.8} parent=5 // pred_fallthru
      _
    %p127 = scmp.lt.s32.totalorder %s10, 2
    // Predicated region
    $region17: #{conv_encoder_forward.8} parent=5 // pred_check
      %p128 = pneg %p127
    $region18: #{conv_encoder_forward.8} parent=5 // pred_check_branch
      %130 = sbr.rel (%p128) target = $region20
    $region19: #{conv_encoder_forward.8} parent=5 // pred_region
      // Predicated region
      $region21: #{conv_encoder_forward.8} parent=19 // pred_check
        %p131 = pneg %p30
      $region22: #{conv_encoder_forward.8} parent=19 // pred_check_branch
        %133 = sbr.rel (%p131) target = $region24
      $region23: #{conv_encoder_forward.8} parent=19 // pred_region
        %p134 = scmp.lt.s32.totalorder %s10, 1
        %s135 = scalar_select %p134, %s10, 1
        %s136 = smul.addr %s135, 3
        %s137 = smul.addr %s136, 4
        %s138 = scalar_lea.vmem %s0, %s137
      $region24: #{conv_encoder_forward.8} parent=19 // pred_fallthru
        _
    $region20: #{conv_encoder_forward.8} parent=5 // pred_fallthru
      _
    %p139 = scmp.le.s32.totalorder 1, %s10
    %p140 = scmp.lt.s32.totalorder %s10, 3
    %p141 = pnand %p139, %p140
    %p142 = pneg %p141
    // Predicated region
    $region25: #{conv_encoder_forward.8} parent=5 // pred_check
      _
    $region26: #{conv_encoder_forward.8} parent=5 // pred_check_branch
      %144 = sbr.rel (%p141) target = $region28
    $region27: #{conv_encoder_forward.8} parent=5 // pred_region
      %s145 = ssub.s32 %s10, 1
      %p146 = scmp.lt.s32.totalorder %s15, 1
      %s147 = scalar_select %p146, %s15, 1
      %s148 = smul.addr %s147, 3
      %s149 = smul.addr %s148, 4
      %s150 = scalar_lea.vmem %s0, %s149
      %p151 = pneg %p36
      %p152 = pneg %p33
      %p153 = pneg %p57
      %p154 = pneg %p54
      %p155 = pneg %p83
      %p156 = pneg %p80
      %p157 = scmp.lt.s32.totalorder %s15, 1
      %s158 = scalar_select %p157, %s15, 1
      %s159 = smul.addr %s158, 2
      %s160 = smul.addr %s159, 4
      %s161 = scalar_lea.vmem %s2, %s160
      %p162 = pneg %p109
      %p163 = pneg %p106
      %p164 = scmp.lt.s32.totalorder %s15, 1
      %s165 = scalar_select %p164, %s15, 1
      %s166 = smul.addr %s165, 2
      %s167 = scalar_lea.vmem %s3, %s166
      %p168 = scmp.lt.s32.totalorder %s15, 1
      %s169 = scalar_select %p168, %s15, 1
      %s170 = smul.addr %s169, 3
      %s171 = smul.addr %s170, 4
      %s172 = scalar_lea.vmem %s0, %s171
      %p173 = scmp.lt.s32.totalorder %s15, 1
      %s174 = scalar_select %p173, %s15, 1
      %s175 = smul.addr %s174, 2
      %s176 = smul.addr %s175, 4
      %s177 = scalar_lea.vmem %s2, %s176
      %p178 = scmp.lt.s32.totalorder %s15, 1
      %s179 = scalar_select %p178, %s15, 1
      %s180 = smul.addr %s179, 2
      %s181 = scalar_lea.vmem %s3, %s180
      %v183 = vld [vmem:[%s172] sm:$0xf]
      %v184 = vld [vmem:[%s172 + $0x4] sm:$0xf]
      %v185 = vld [vmem:[%s1] sm:$0xf]
      %v186 = vld [vmem:[%s1 + $0x4] sm:$0xf]
      %v187 = vld [vmem:[%s1 + $0x8] sm:$0xf]
      %v188 = vld [vmem:[%s1 + $0xc] sm:$0xf]
      %v189 = vld [vmem:[%s1 + $0x10] sm:$0xf]
      %v190 = vld [vmem:[%s1 + $0x14] sm:$0xf]
      %v191 = vld [vmem:[%s1 + $0x18] sm:$0xf]
      %v192 = vld [vmem:[%s1 + $0x1c] sm:$0xf]
      %v193 = vld [vmem:[%s1 + $0x20] sm:$0xf]
      %v194 = vld [vmem:[%s172 + $0x8] sm:$0x1]
      %s195 = scalar_lea.vmem %s1, 36
      %v196 = vld [vmem:[%s195] sm:$0xf]
      %v197 = vld [vmem:[%s195 + $0x4] sm:$0xf]
      %v198 = vld [vmem:[%s195 + $0x8] sm:$0xf]
      %v199 = vld [vmem:[%s195 + $0xc] sm:$0xf]
      %v200 = vld [vmem:[%s195 + $0x10] sm:$0xf]
      %v201 = vld [vmem:[%s195 + $0x14] sm:$0xf]
      %v202 = vld [vmem:[%s195 + $0x18] sm:$0xf]
      %v203 = vld [vmem:[%s195 + $0x1c] sm:$0xf]
      %v204 = vld [vmem:[%s195 + $0x20] sm:$0xf]
      %v208 = vunpack.c.l.b16 %v183
      %v209 = vunpack.c.l.b16 %v184
      %v210 = vunpack.c.l.b16 %v194
      %v211 = vpack.c.b16 %v209, %v208
      %v212 = vpack.c.b16 %v210, %v210
      %vm213 = vsmask.f32 7424
      %v215 = vshrl.u32 %v211, 16
      %v217 = vshll.u32 %v211, 16
      %v219 = vrot.slane %v217, 1
      %v220 = vor.u32 %v215, %v219
      %v222 = vshll.u32 %v212, 16
      %v224 = vrot.slane %v222, 1
      %v225 = vsel %vm213, %v220, %v224
      %v235 = vunpack.c.l.b16 %v196
      %v236 = vunpack.c.l.b16 %v197
      %v237 = vunpack.c.l.b16 %v198
      %v238 = vunpack.c.l.b16 %v199
      %v239 = vunpack.c.l.b16 %v200
      %v240 = vunpack.c.l.b16 %v201
      %v241 = vunpack.c.l.b16 %v202
      %v242 = vunpack.c.l.b16 %v203
      %v243 = vunpack.c.l.b16 %v204
      %v244 = vpack.c.b16 %v236, %v235
      %v245 = vpack.c.b16 %v238, %v237
      %v246 = vpack.c.b16 %v240, %v239
      %v247 = vpack.c.b16 %v242, %v241
      %v248 = vpack.c.b16 %v243, %v243
      %vm253 = vcmask 588800
      %v255 = vsel %vm253, %v225, 0
      %vm257 = vcmask 1043456
      %v259 = vsel %vm257, %v248, 0
      %261 = vmatprep.subr.bf16.mxu0 0
      %262 = vmatpush1.bf16.msra.mxu0 %v244
      %263 = vmatprep.subr.bf16.mxu0 0
      %264 = vmatpush1.bf16.msra.mxu0 %v245
      %265 = vmatprep.subr.bf16.mxu0 0
      %266 = vmatpush1.bf16.msra.mxu0 %v246
      %267 = vmatprep.subr.bf16.mxu0 0
      %268 = vmatpush1.bf16.msra.mxu0 %v247
      %269 = vmatprep.subr.bf16.mxu0 0
      %270 = vmatpush1.bf16.msra.mxu0 %v259
      %271 = vmatprep.subr.bf16.mxu0 0
      %272 = vmatpush1.bf16.msra.mxu0 0
      %273 = vmatprep.subr.bf16.mxu0 0
      %274 = vmatpush1.bf16.msra.mxu0 0
      %275 = vmatprep.subr.bf16.mxu0 0
      %276 = vmatpush1.bf16.msra.mxu0 0
      %277 = vmatprep.subr.bf16.mxu0 0
      %278 = vmatpush1.bf16.msra.mxu0 0
      %279 = vmatprep.subr.bf16.mxu0 0
      %280 = vmatpush1.bf16.msra.mxu0 0
      %281 = vmatprep.subr.bf16.mxu0 0
      %282 = vmatpush1.bf16.msra.mxu0 0
      %283 = vmatprep.subr.bf16.mxu0 0
      %284 = vmatpush1.bf16.msra.mxu0 0
      %285 = vmatprep.subr.bf16.mxu0 0
      %286 = vmatpush1.bf16.msra.mxu0 0
      %287 = vmatprep.subr.bf16.mxu0 0
      %288 = vmatpush1.bf16.msra.mxu0 0
      %289 = vmatprep.subr.bf16.mxu0 0
      %290 = vmatpush1.bf16.msra.mxu0 0
      %291 = vmatprep.subr.bf16.mxu0 0
      %292 = vmatpush1.bf16.msra.mxu0 0
      %293 = vmatprep.mubr.bf16.mxu0 0
      %294 = vmatmul.mubr.bf16.gmra.mrb[0].mxu0 %v255
      %v295 = vpop.f32.mrb[0].mxu0
      %v296 = vadd.f32 0.0, %v295
      %v297 = vpop.f32.mrb[0].mxu0
      %v298 = vpop.f32.mrb[0].mxu0
      %v299 = vadd.f32 0.0, %v298
      %v300 = vpop.f32.mrb[0].mxu0
      %301 = vdwg.mxu0
      %v311 = vunpack.c.l.b16 %v185
      %v312 = vunpack.c.l.b16 %v186
      %v313 = vunpack.c.l.b16 %v187
      %v314 = vunpack.c.l.b16 %v188
      %v315 = vunpack.c.l.b16 %v189
      %v316 = vunpack.c.l.b16 %v190
      %v317 = vunpack.c.l.b16 %v191
      %v318 = vunpack.c.l.b16 %v192
      %v319 = vunpack.c.l.b16 %v193
      %v320 = vpack.c.b16 %v312, %v311
      %v321 = vpack.c.b16 %v314, %v313
      %v322 = vpack.c.b16 %v316, %v315
      %v323 = vpack.c.b16 %v318, %v317
      %v324 = vpack.c.b16 %v319, %v319
      %v329 = vsel %vm253, %v211, 0
      %v332 = vsel %vm257, %v324, 0
      %334 = vmatprep.subr.bf16.mxu0 0
      %335 = vmatpush1.bf16.msra.mxu0 %v320
      %336 = vmatprep.subr.bf16.mxu0 0
      %337 = vmatpush1.bf16.msra.mxu0 %v321
      %338 = vmatprep.subr.bf16.mxu0 0
      %339 = vmatpush1.bf16.msra.mxu0 %v322
      %340 = vmatprep.subr.bf16.mxu0 0
      %341 = vmatpush1.bf16.msra.mxu0 %v323
      %342 = vmatprep.subr.bf16.mxu0 0
      %343 = vmatpush1.bf16.msra.mxu0 %v332
      %344 = vmatprep.subr.bf16.mxu0 0
      %345 = vmatpush1.bf16.msra.mxu0 0
      %346 = vmatprep.subr.bf16.mxu0 0
      %347 = vmatpush1.bf16.msra.mxu0 0
      %348 = vmatprep.subr.bf16.mxu0 0
      %349 = vmatpush1.bf16.msra.mxu0 0
      %350 = vmatprep.subr.bf16.mxu0 0
      %351 = vmatpush1.bf16.msra.mxu0 0
      %352 = vmatprep.subr.bf16.mxu0 0
      %353 = vmatpush1.bf16.msra.mxu0 0
      %354 = vmatprep.subr.bf16.mxu0 0
      %355 = vmatpush1.bf16.msra.mxu0 0
      %356 = vmatprep.subr.bf16.mxu0 0
      %357 = vmatpush1.bf16.msra.mxu0 0
      %358 = vmatprep.subr.bf16.mxu0 0
      %359 = vmatpush1.bf16.msra.mxu0 0
      %360 = vmatprep.subr.bf16.mxu0 0
      %361 = vmatpush1.bf16.msra.mxu0 0
      %362 = vmatprep.subr.bf16.mxu0 0
      %363 = vmatpush1.bf16.msra.mxu0 0
      %364 = vmatprep.subr.bf16.mxu0 0
      %365 = vmatpush1.bf16.msra.mxu0 0
      %366 = vmatprep.mubr.bf16.mxu0 0
      %367 = vmatmul.mubr.bf16.gmra.mrb[0].mxu0 %v329
      %v368 = vpop.f32.mrb[0].mxu0
      %v369 = vadd.f32 %v296, %v368
      %v370 = vpop.f32.mrb[0].mxu0
      %v371 = vpop.f32.mrb[0].mxu0
      %v372 = vadd.f32 %v299, %v371
      %v373 = vpop.f32.mrb[0].mxu0
      %374 = vdwg.mxu0
      %v375 = vld [vmem:[%s172] sm:$0xe]
      %s376 = scalar_lea.vmem %s1, 72
      %v377 = vld [vmem:[%s376] sm:$0xf]
      %v378 = vld [vmem:[%s376 + $0x4] sm:$0xf]
      %v379 = vld [vmem:[%s376 + $0x8] sm:$0xf]
      %v380 = vld [vmem:[%s376 + $0xc] sm:$0xf]
      %v381 = vld [vmem:[%s376 + $0x10] sm:$0xf]
      %v382 = vld [vmem:[%s376 + $0x14] sm:$0xf]
      %v383 = vld [vmem:[%s376 + $0x18] sm:$0xf]
      %v384 = vld [vmem:[%s376 + $0x1c] sm:$0xf]
      %v385 = vld [vmem:[%s376 + $0x20] sm:$0xf]
      %v387 = vunpack.c.l.b16 %v375
      %v388 = vpack.c.b16 %v209, %v387
      %vm389 = vcmask 1046528
      %v390 = vrot.slane %v388, 1
      %v391 = vrot.slane %v212, 1
      %v392 = vsel %vm389, %v390, %v391
      %v402 = vunpack.c.l.b16 %v377
      %v403 = vunpack.c.l.b16 %v378
      %v404 = vunpack.c.l.b16 %v379
      %v405 = vunpack.c.l.b16 %v380
      %v406 = vunpack.c.l.b16 %v381
      %v407 = vunpack.c.l.b16 %v382
      %v408 = vunpack.c.l.b16 %v383
      %v409 = vunpack.c.l.b16 %v384
      %v410 = vunpack.c.l.b16 %v385
      %v411 = vpack.c.b16 %v403, %v402
      %v412 = vpack.c.b16 %v405, %v404
      %v413 = vpack.c.b16 %v407, %v406
      %v414 = vpack.c.b16 %v409, %v408
      %v415 = vpack.c.b16 %v410, %v410
      %v421 = vsel %vm253, %v392, 0
      %v424 = vsel %vm257, %v415, 0
      %426 = vmatprep.subr.bf16.mxu0 0
      %427 = vmatpush1.bf16.msra.mxu0 %v411
      %428 = vmatprep.subr.bf16.mxu0 0
      %429 = vmatpush1.bf16.msra.mxu0 %v412
      %430 = vmatprep.subr.bf16.mxu0 0
      %431 = vmatpush1.bf16.msra.mxu0 %v413
      %432 = vmatprep.subr.bf16.mxu0 0
      %433 = vmatpush1.bf16.msra.mxu0 %v414
      %434 = vmatprep.subr.bf16.mxu0 0
      %435 = vmatpush1.bf16.msra.mxu0 %v424
      %436 = vmatprep.subr.bf16.mxu0 0
      %437 = vmatpush1.bf16.msra.mxu0 0
      %438 = vmatprep.subr.bf16.mxu0 0
      %439 = vmatpush1.bf16.msra.mxu0 0
      %440 = vmatprep.subr.bf16.mxu0 0
      %441 = vmatpush1.bf16.msra.mxu0 0
      %442 = vmatprep.subr.bf16.mxu0 0
      %443 = vmatpush1.bf16.msra.mxu0 0
      %444 = vmatprep.subr.bf16.mxu0 0
      %445 = vmatpush1.bf16.msra.mxu0 0
      %446 = vmatprep.subr.bf16.mxu0 0
      %447 = vmatpush1.bf16.msra.mxu0 0
      %448 = vmatprep.subr.bf16.mxu0 0
      %449 = vmatpush1.bf16.msra.mxu0 0
      %450 = vmatprep.subr.bf16.mxu0 0
      %451 = vmatpush1.bf16.msra.mxu0 0
      %452 = vmatprep.subr.bf16.mxu0 0
      %453 = vmatpush1.bf16.msra.mxu0 0
      %454 = vmatprep.subr.bf16.mxu0 0
      %455 = vmatpush1.bf16.msra.mxu0 0
      %456 = vmatprep.subr.bf16.mxu0 0
      %457 = vmatpush1.bf16.msra.mxu0 0
      %458 = vmatprep.mubr.bf16.mxu0 0
      %459 = vmatmul.mubr.bf16.gmra.mrb[0].mxu0 %v421
      %v460 = vpop.f32.mrb[0].mxu0
      %v461 = vadd.f32 0.0, %v460
      %v462 = vpop.f32.mrb[0].mxu0
      %v463 = vpop.f32.mrb[0].mxu0
      %v464 = vadd.f32 0.0, %v463
      %v465 = vpop.f32.mrb[0].mxu0
      %466 = vdwg.mxu0
      %v467 = vadd.f32 %v369, %v461
      %v468 = vadd.f32 %v372, %v464
      %v469 = vpack.c.bf16 %v468, %v467
      %v471 = vunpack.c.l.b16 %v469
      %v472 = vunpack.c.h.b16 %v469
      %v473 = vpack.c.b16 %v471, %v471
      %v474 = vpack.c.b16 %v472, %v472
      %477 = vst [vmem:[%s177] sm:$0xf] %v473
      %478 = vst [vmem:[%s177 + $0x4] sm:$0xf] %v474
      %v479 = vadd.f32 %v467, %v468
      %v480 = vrot.slane %v479, 4
      %v481 = vadd.f32 %v479, %v480
      %v482 = vrot.slane %v481, 2
      %v483 = vadd.f32 %v481, %v482
      %v484 = vrot.slane %v483, 1
      %v485 = vadd.f32 %v483, %v484
      %486 = vst [vmem:[%s181] sm:$0x1] %v485
      %v487 = vmul.f32 %v467, %v467
      %v488 = vmul.f32 %v468, %v468
      %v489 = vadd.f32 %v487, %v488
      %v490 = vrot.slane %v489, 4
      %v491 = vadd.f32 %v489, %v490
      %v492 = vrot.slane %v491, 2
      %v493 = vadd.f32 %v491, %v492
      %v494 = vrot.slane %v493, 1
      %v495 = vadd.f32 %v493, %v494
      %496 = vst [vmem:[%s181 + $0x1] sm:$0x1] %v495
      %p497 = scmp.lt.s32.totalorder %s15, 1
      %s498 = scalar_select %p497, %s15, 1
      %s499 = smul.addr %s498, 2
      %s500 = smul.addr %s499, 4
      %s501 = scalar_lea.vmem %s2, %s500
      %p502 = scmp.lt.s32.totalorder %s15, 1
      %s503 = scalar_select %p502, %s15, 1
      %s504 = smul.addr %s503, 2
      %s505 = scalar_lea.vmem %s3, %s504
      // Predicated region
      $region29: #{conv_encoder_forward.8} parent=27 // pred_check
        %p506 = pneg %p80
      $region30: #{conv_encoder_forward.8} parent=27 // pred_check_branch
        %508 = sbr.rel (%p506) target = $region32
      $region31: #{conv_encoder_forward.8} parent=27 // pred_region
        _
      $region32: #{conv_encoder_forward.8} parent=27 // pred_fallthru
        _
      // Predicated region
      $region33: #{conv_encoder_forward.8} parent=27 // pred_check
        %p509 = pneg %p106
      $region34: #{conv_encoder_forward.8} parent=27 // pred_check_branch
        %511 = sbr.rel (%p509) target = $region36
      $region35: #{conv_encoder_forward.8} parent=27 // pred_region
        _
      $region36: #{conv_encoder_forward.8} parent=27 // pred_fallthru
        _
    $region28: #{conv_encoder_forward.8} parent=5 // pred_fallthru
      _
    %p512 = scmp.le.s32.totalorder 2, %s10
    // Predicated region
    $region37: #{conv_encoder_forward.8} parent=5 // pred_check
      %p513 = pneg %p512
    $region38: #{conv_encoder_forward.8} parent=5 // pred_check_branch
      %515 = sbr.rel (%p513) target = $region40
    $region39: #{conv_encoder_forward.8} parent=5 // pred_region
      %s516 = ssub.s32 %s10, 2
      // Predicated region
      $region41: #{conv_encoder_forward.8} parent=39 // pred_check
        %p517 = pneg %p86
      $region42: #{conv_encoder_forward.8} parent=39 // pred_check_branch
        %519 = sbr.rel (%p517) target = $region44
      $region43: #{conv_encoder_forward.8} parent=39 // pred_region
        %p520 = scmp.lt.s32.totalorder %s16, 1
        %s521 = scalar_select %p520, %s16, 1
        %s522 = smul.addr %s521, 2
        %s523 = smul.addr %s522, 4
        %s524 = scalar_lea.vmem %s2, %s523
      $region44: #{conv_encoder_forward.8} parent=39 // pred_fallthru
        _
      // Predicated region
      $region45: #{conv_encoder_forward.8} parent=39 // pred_check
        %p525 = pneg %p112
      $region46: #{conv_encoder_forward.8} parent=39 // pred_check_branch
        %527 = sbr.rel (%p525) target = $region48
      $region47: #{conv_encoder_forward.8} parent=39 // pred_region
        %p528 = scmp.lt.s32.totalorder %s16, 1
        %s529 = scalar_select %p528, %s16, 1
        %s530 = smul.addr %s529, 2
        %s531 = scalar_lea.vmem %s3, %s530
      $region48: #{conv_encoder_forward.8} parent=39 // pred_fallthru
        _
    $region40: #{conv_encoder_forward.8} parent=5 // pred_fallthru
      _
  $region6: #{conv_encoder_forward.8} parent=0 // loop_footer
    %s14 = sadd.s32 1, %s10
  $region7: #{conv_encoder_forward.8} parent=0 // loop_footer_branch
    %9 = sbr.rel target = $region3
  $region8: #{conv_encoder_forward.8} parent=0 // loop_exit
    _

// kernel: conv_encoder_forward.10
$region0: #{conv_encoder_forward.10}
  #allocation0 [shape = 'u32[]', space=smem, size = 0x4, offset = 0x4, fixed_abs, tag = 'smem constant byte address 0x4 - core index']
  #allocation1 [shape = 'u32[144,128]{1,0:T(1,128)}', space=vmem, size = 0x12000, scoped, tag = 'internal scratch']
  %s0 = inlined_call_operand.vmem [shape: bf16[2,18,144], index: 0, kind: input, shape index: {}]
  %s1 = inlined_call_operand.vmem [shape: bf16[3,144,128], index: 1, kind: input, shape index: {}]
  %s2 = inlined_call_operand.vmem [shape: bf16[2,16,128], index: 2, kind: output, shape index: {0}]
  %s3 = inlined_call_operand.vmem [shape: f32[2,2,128], index: 3, kind: output, shape index: {1}]
  %4 = xla_tuple %s2, %s3
  %s5 = sld [smem:[#allocation0]]
  $region49: #{conv_encoder_forward.10} parent=0
    _
  %s7 = ssub.s32 1, %s5
  %s8 = scalar_select 0, %s7, %s5
  loop: start=0, step=1, limit=4
  $region2: #{conv_encoder_forward.10} parent=0 // loop_pre_header
    _
  $region3: #{conv_encoder_forward.10} parent=0 // loop_header
    %s10 = sphi 0, %s14
    %p11 = scmp.ge.s32.totalorder %s10, 4
    %s20 = sphi 0, %s22
    %s23 = sphi 0, %s20
    %s24 = sphi 0, %s23
    %s40 = sphi 0, %s24
    %s44 = sphi 0, %s44
    %s46 = sphi 0, %s44
    %s47 = sphi 0, %s46
    %s61 = sphi 0, %s47
    %s67 = sphi 0, %s69
    %s70 = sphi 0, %s67
    %s71 = sphi 0, %s70
    %s87 = sphi 0, %s71
    %s93 = sphi 0, %s95
    %s96 = sphi 0, %s93
    %s97 = sphi 0, %s96
    %s113 = sphi 0, %s97
  $region4: #{conv_encoder_forward.10} parent=0 // loop_header_branch
    %13 = sbr.rel (%p11) target = $region8
  $region5: #{conv_encoder_forward.10} parent=0 // loop_body
    %s15 = ssub.s32 %s10, 1
    %s16 = ssub.s32 %s10, 2
    %s17 = sadd.s32 %s10, 1
    %s18 = ssub.s32 %s10, %s17
    %p19 = scmp.eq.s32.totalorder %s18, 0
    %s21 = sadd.s32 %s20, 1
    %s22 = scalar_select %p19, %s20, %s21
    %p25 = pneg %p19
    %p26 = scmp.eq.s32.totalorder %s10, 1
    %p27 = por %p25, %p26
    %p28 = scmp.ne.s32.totalorder %s20, %s23
    %p29 = scmp.eq.s32.totalorder %s10, 0
    %p30 = por %p28, %p29
    %p31 = scmp.ne.s32.totalorder %s20, %s23
    %p32 = scmp.eq.s32.totalorder %s15, 1
    %p33 = por %p31, %p32
    %p34 = scmp.ne.s32.totalorder %s23, %s24
    %p35 = scmp.eq.s32.totalorder %s15, 0
    %p36 = por %p34, %p35
    %p37 = scmp.ne.s32.totalorder %s23, %s24
    %p38 = scmp.eq.s32.totalorder %s16, 1
    %p39 = por %p37, %p38
    %p41 = scmp.ne.s32.totalorder %s24, %s40
    %p42 = scmp.eq.s32.totalorder %s16, 0
    %p43 = por %p41, %p42
    %s45 = sadd.s32 %s44, 1
    %p48 = scmp.eq.s32.totalorder %s10, 1
    %p49 = scmp.ne.s32.totalorder %s44, %s46
    %p50 = scmp.eq.s32.totalorder %s10, 0
    %p51 = por %p49, %p50
    %p52 = scmp.ne.s32.totalorder %s44, %s46
    %p53 = scmp.eq.s32.totalorder %s15, 1
    %p54 = por %p52, %p53
    %p55 = scmp.ne.s32.totalorder %s46, %s47
    %p56 = scmp.eq.s32.totalorder %s15, 0
    %p57 = por %p55, %p56
    %p58 = scmp.ne.s32.totalorder %s46, %s47
    %p59 = scmp.eq.s32.totalorder %s16, 1
    %p60 = por %p58, %p59
    %p62 = scmp.ne.s32.totalorder %s47, %s61
    %p63 = scmp.eq.s32.totalorder %s16, 0
    %p64 = por %p62, %p63
    %s65 = ssub.s32 %s10, %s17
    %p66 = scmp.eq.s32.totalorder %s65, 0
    %s68 = sadd.s32 %s67, 1
    %s69 = scalar_select %p66, %s67, %s68
    %p72 = pneg %p66
    %p73 = scmp.eq.s32.totalorder %s10, 1
    %p74 = por %p72, %p73
    %p75 = scmp.ne.s32.totalorder %s67, %s70
    %p76 = scmp.eq.s32.totalorder %s10, 0
    %p77 = por %p75, %p76
    %p78 = scmp.ne.s32.totalorder %s67, %s70
    %p79 = scmp.eq.s32.totalorder %s15, 1
    %p80 = por %p78, %p79
    %p81 = scmp.ne.s32.totalorder %s70, %s71
    %p82 = scmp.eq.s32.totalorder %s15, 0
    %p83 = por %p81, %p82
    %p84 = scmp.ne.s32.totalorder %s70, %s71
    %p85 = scmp.eq.s32.totalorder %s16, 1
    %p86 = por %p84, %p85
    %p88 = scmp.ne.s32.totalorder %s71, %s87
    %p89 = scmp.eq.s32.totalorder %s16, 0
    %p90 = por %p88, %p89
    %s91 = ssub.s32 %s10, %s17
    %p92 = scmp.eq.s32.totalorder %s91, 0
    %s94 = sadd.s32 %s93, 1
    %s95 = scalar_select %p92, %s93, %s94
    %p98 = pneg %p92
    %p99 = scmp.eq.s32.totalorder %s10, 1
    %p100 = por %p98, %p99
    %p101 = scmp.ne.s32.totalorder %s93, %s96
    %p102 = scmp.eq.s32.totalorder %s10, 0
    %p103 = por %p101, %p102
    %p104 = scmp.ne.s32.totalorder %s93, %s96
    %p105 = scmp.eq.s32.totalorder %s15, 1
    %p106 = por %p104, %p105
    %p107 = scmp.ne.s32.totalorder %s96, %s97
    %p108 = scmp.eq.s32.totalorder %s15, 0
    %p109 = por %p107, %p108
    %p110 = scmp.ne.s32.totalorder %s96, %s97
    %p111 = scmp.eq.s32.totalorder %s16, 1
    %p112 = por %p110, %p111
    %p114 = scmp.ne.s32.totalorder %s97, %s113
    %p115 = scmp.eq.s32.totalorder %s16, 0
    %p116 = por %p114, %p115
    %p117 = scmp.le.s32.totalorder 1, %s10
    %p118 = scmp.lt.s32.totalorder %s10, 3
    %p119 = pnand %p117, %p118
    %p120 = pneg %p119
    // Predicated region
    $region9: #{conv_encoder_forward.10} parent=5 // pred_check
      _
    $region10: #{conv_encoder_forward.10} parent=5 // pred_check_branch
      %122 = sbr.rel (%p119) target = $region12
    $region11: #{conv_encoder_forward.10} parent=5 // pred_region
      %s123 = ssub.s32 %s10, 1
      // Predicated region
      $region13: #{conv_encoder_forward.10} parent=11 // pred_check
        %p124 = pneg %p57
      $region14: #{conv_encoder_forward.10} parent=11 // pred_check_branch
        %126 = sbr.rel (%p124) target = $region16
      $region15: #{conv_encoder_forward.10} parent=11 // pred_region
        _
      $region16: #{conv_encoder_forward.10} parent=11 // pred_fallthru
        _
    $region12: #{conv_encoder_forward.10} parent=5 // pred_fallthru
      _
    %p127 = scmp.lt.s32.totalorder %s10, 2
    // Predicated region
    $region17: #{conv_encoder_forward.10} parent=5 // pred_check
      %p128 = pneg %p127
    $region18: #{conv_encoder_forward.10} parent=5 // pred_check_branch
      %130 = sbr.rel (%p128) target = $region20
    $region19: #{conv_encoder_forward.10} parent=5 // pred_region
      // Predicated region
      $region21: #{conv_encoder_forward.10} parent=19 // pred_check
        %p131 = pneg %p30
      $region22: #{conv_encoder_forward.10} parent=19 // pred_check_branch
        %133 = sbr.rel (%p131) target = $region24
      $region23: #{conv_encoder_forward.10} parent=19 // pred_region
        %p134 = scmp.lt.s32.totalorder %s10, 1
        %s135 = scalar_select %p134, %s10, 1
        %s136 = smul.addr %s135, 6
        %s137 = smul.addr %s136, 4
        %s138 = scalar_lea.vmem %s0, %s137
      $region24: #{conv_encoder_forward.10} parent=19 // pred_fallthru
        _
    $region20: #{conv_encoder_forward.10} parent=5 // pred_fallthru
      _
    %p139 = scmp.le.s32.totalorder 1, %s10
    %p140 = scmp.lt.s32.totalorder %s10, 3
    %p141 = pnand %p139, %p140
    %p142 = pneg %p141
    // Predicated region
    $region25: #{conv_encoder_forward.10} parent=5 // pred_check
      _
    $region26: #{conv_encoder_forward.10} parent=5 // pred_check_branch
      %144 = sbr.rel (%p141) target = $region28
    $region27: #{conv_encoder_forward.10} parent=5 // pred_region
      %s145 = ssub.s32 %s10, 1
      %p146 = scmp.lt.s32.totalorder %s15, 1
      %s147 = scalar_select %p146, %s15, 1
      %s148 = smul.addr %s147, 6
      %s149 = smul.addr %s148, 4
      %s150 = scalar_lea.vmem %s0, %s149
      %p151 = pneg %p36
      %p152 = pneg %p33
      %p153 = pneg %p57
      %p154 = pneg %p54
      %p155 = pneg %p83
      %p156 = pneg %p80
      %p157 = scmp.lt.s32.totalorder %s15, 1
      %s158 = scalar_select %p157, %s15, 1
      %s159 = smul.addr %s158, 2
      %s160 = smul.addr %s159, 4
      %s161 = scalar_lea.vmem %s2, %s160
      %p162 = pneg %p109
      %p163 = pneg %p106
      %p164 = scmp.lt.s32.totalorder %s15, 1
      %s165 = scalar_select %p164, %s15, 1
      %s166 = smul.addr %s165, 2
      %s167 = scalar_lea.vmem %s3, %s166
      %p168 = scmp.lt.s32.totalorder %s15, 1
      %s169 = scalar_select %p168, %s15, 1
      %s170 = smul.addr %s169, 6
      %s171 = smul.addr %s170, 4
      %s172 = scalar_lea.vmem %s0, %s171
      %p173 = scmp.lt.s32.totalorder %s15, 1
      %s174 = scalar_select %p173, %s15, 1
      %s175 = smul.addr %s174, 2
      %s176 = smul.addr %s175, 4
      %s177 = scalar_lea.vmem %s2, %s176
      %p178 = scmp.lt.s32.totalorder %s15, 1
      %s179 = scalar_select %p178, %s15, 1
      %s180 = smul.addr %s179, 2
      %s181 = scalar_lea.vmem %s3, %s180
      %v183 = vld [vmem:[%s172] sm:$0xff]
      %v184 = vld [vmem:[%s172 + $0x8] sm:$0xff]
      %v185 = vld [vmem:[%s1] sm:$0xf]
      %v186 = vld [vmem:[%s1 + $0x4] sm:$0xf]
      %v187 = vld [vmem:[%s1 + $0x8] sm:$0xf]
      %v188 = vld [vmem:[%s1 + $0xc] sm:$0xf]
      %v189 = vld [vmem:[%s1 + $0x10] sm:$0xf]
      %v190 = vld [vmem:[%s1 + $0x14] sm:$0xf]
      %v191 = vld [vmem:[%s1 + $0x18] sm:$0xf]
      %v192 = vld [vmem:[%s1 + $0x1c] sm:$0xf]
      %v193 = vld [vmem:[%s1 + $0x20] sm:$0xf]
      %v194 = vld [vmem:[%s1 + $0x24] sm:$0xf]
      %v195 = vld [vmem:[%s1 + $0x28] sm:$0xf]
      %v196 = vld [vmem:[%s1 + $0x2c] sm:$0xf]
      %v197 = vld [vmem:[%s1 + $0x30] sm:$0xf]
      %v198 = vld [vmem:[%s1 + $0x34] sm:$0xf]
      %v199 = vld [vmem:[%s1 + $0x38] sm:$0xf]
      %v200 = vld [vmem:[%s1 + $0x3c] sm:$0xf]
      %v201 = vld [vmem:[%s1 + $0x40] sm:$0xf]
      %v202 = vld [vmem:[%s1 + $0x44] sm:$0xf]
      %v203 = vld [vmem:[%s172 + $0x10] sm:$0x11]
      %s204 = scalar_lea.vmem %s1, 72
      %v205 = vld [vmem:[%s204] sm:$0xf]
      %v206 = vld [vmem:[%s204 + $0x4] sm:$0xf]
      %v207 = vld [vmem:[%s204 + $0x8] sm:$0xf]
      %v208 = vld [vmem:[%s204 + $0xc] sm:$0xf]
      %v209 = vld [vmem:[%s204 + $0x10] sm:$0xf]
      %v210 = vld [vmem:[%s204 + $0x14] sm:$0xf]
      %v211 = vld [vmem:[%s204 + $0x18] sm:$0xf]
      %v212 = vld [vmem:[%s204 + $0x1c] sm:$0xf]
      %v213 = vld [vmem:[%s204 + $0x20] sm:$0xf]
      %v214 = vld [vmem:[%s204 + $0x24] sm:$0xf]
      %v215 = vld [vmem:[%s204 + $0x28] sm:$0xf]
      %v216 = vld [vmem:[%s204 + $0x2c] sm:$0xf]
      %v217 = vld [vmem:[%s204 + $0x30] sm:$0xf]
      %v218 = vld [vmem:[%s204 + $0x34] sm:$0xf]
      %v219 = vld [vmem:[%s204 + $0x38] sm:$0xf]
      %v220 = vld [vmem:[%s204 + $0x3c] sm:$0xf]
      %v221 = vld [vmem:[%s204 + $0x40] sm:$0xf]
      %v222 = vld [vmem:[%s204 + $0x44] sm:$0xf]
      %v226 = vunpack.c.l.b16 %v183
      %v227 = vunpack.c.h.b16 %v183
      %v228 = vunpack.c.l.b16 %v184
      %v229 = vunpack.c.h.b16 %v184
      %v230 = vunpack.c.l.b16 %v203
      %v231 = vunpack.c.h.b16 %v203
      %v232 = vpack.c.b16 %v228, %v226
      %v233 = vpack.c.b16 %v229, %v227
      %v234 = vpack.c.b16 %v230, %v230
      %v235 = vpack.c.b16 %v231, %v231
      %vm236 = vsmask.f32 7424
      %v238 = vshrl.u32 %v232, 16
      %v240 = vshll.u32 %v232, 16
      %v242 = vrot.slane %v240, 1
      %v243 = vor.u32 %v238, %v242
      %v245 = vshll.u32 %v234, 16
      %v247 = vrot.slane %v245, 1
      %v248 = vsel %vm236, %v243, %v247
      %v250 = vshrl.u32 %v233, 16
      %v252 = vshll.u32 %v233, 16
      %v254 = vrot.slane %v252, 1
      %v255 = vor.u32 %v250, %v254
      %v257 = vshll.u32 %v235, 16
      %v259 = vrot.slane %v257, 1
      %v260 = vsel %vm236, %v255, %v259
      %v280 = vunpack.c.l.b16 %v205
      %v281 = vunpack.c.l.b16 %v206
      %v282 = vunpack.c.l.b16 %v207
      %v283 = vunpack.c.l.b16 %v208
      %v284 = vunpack.c.l.b16 %v209
      %v285 = vunpack.c.l.b16 %v210
      %v286 = vunpack.c.l.b16 %v211
      %v287 = vunpack.c.l.b16 %v212
      %v288 = vunpack.c.l.b16 %v213
      %v289 = vunpack.c.l.b16 %v214
      %v290 = vunpack.c.l.b16 %v215
      %v291 = vunpack.c.l.b16 %v216
      %v292 = vunpack.c.l.b16 %v217
      %v293 = vunpack.c.l.b16 %v218
      %v294 = vunpack.c.l.b16 %v219
      %v295 = vunpack.c.l.b16 %v220
      %v296 = vunpack.c.l.b16 %v221
      %v297 = vunpack.c.l.b16 %v222
      %v298 = vpack.c.b16 %v281, %v280
      %v299 = vpack.c.b16 %v283, %v282
      %v300 = vpack.c.b16 %v285, %v284
      %v301 = vpack.c.b16 %v287, %v286
      %v302 = vpack.c.b16 %v289, %v288
      %v303 = vpack.c.b16 %v291, %v290
      %v304 = vpack.c.b16 %v293, %v292
      %v305 = vpack.c.b16 %v295, %v294
      %v306 = vpack.c.b16 %v297, %v296
      %vm316 = vcmask 130048
      %v318 = vsel %vm316, %v260, 0
      %320 = vmatprep.subr.bf16.mxu0 0
      %321 = vmatpush1.bf16.msra.mxu0 %v298
      %322 = vmatprep.subr.bf16.mxu0 0
      %323 = vmatpush1.bf16.msra.mxu0 %v299
      %324 = vmatprep.subr.bf16.mxu0 0
      %325 = vmatpush1.bf16.msra.mxu0 %v300
      %326 = vmatprep.subr.bf16.mxu0 0
      %327 = vmatpush1.bf16.msra.mxu0 %v301
      %328 = vmatprep.subr.bf16.mxu0 0
      %329 = vmatpush1.bf16.msra.mxu0 %v302
      %330 = vmatprep.subr.bf16.mxu0 0
      %331 = vmatpush1.bf16.msra.mxu0 %v303
      %332 = vmatprep.subr.bf16.mxu0 0
      %333 = vmatpush1.bf16.msra.mxu0 %v304
      %334 = vmatprep.subr.bf16.mxu0 0
      %335 = vmatpush1.bf16.msra.mxu0 %v305
      %336 = vmatprep.subr.bf16.mxu0 0
      %337 = vmatpush1.bf16.msra.mxu0 %v306
      %338 = vmatprep.subr.bf16.mxu0 0
      %339 = vmatpush1.bf16.msra.mxu0 0
      %340 = vmatprep.subr.bf16.mxu0 0
      %341 = vmatpush1.bf16.msra.mxu0 0
      %342 = vmatprep.subr.bf16.mxu0 0
      %343 = vmatpush1.bf16.msra.mxu0 0
      %344 = vmatprep.subr.bf16.mxu0 0
      %345 = vmatpush1.bf16.msra.mxu0 0
      %346 = vmatprep.subr.bf16.mxu0 0
      %347 = vmatpush1.bf16.msra.mxu0 0
      %348 = vmatprep.subr.bf16.mxu0 0
      %349 = vmatpush1.bf16.msra.mxu0 0
      %350 = vmatprep.subr.bf16.mxu0 0
      %351 = vmatpush1.bf16.msra.mxu0 0
      %352 = vmatprep.mubr.bf16.mxu0 %v318
      %353 = vmatmul.mubr.bf16.gmra.mrb[0].mxu0 %v248
      %v354 = vpop.f32.mrb[0].mxu0
      %v355 = vadd.f32 0.0, %v354
      %v356 = vpop.f32.mrb[0].mxu0
      %v357 = vpop.f32.mrb[0].mxu0
      %v358 = vadd.f32 0.0, %v357
      %v359 = vpop.f32.mrb[0].mxu0
      %360 = vdwg.mxu0
      %v380 = vunpack.c.l.b16 %v185
      %v381 = vunpack.c.l.b16 %v186
      %v382 = vunpack.c.l.b16 %v187
      %v383 = vunpack.c.l.b16 %v188
      %v384 = vunpack.c.l.b16 %v189
      %v385 = vunpack.c.l.b16 %v190
      %v386 = vunpack.c.l.b16 %v191
      %v387 = vunpack.c.l.b16 %v192
      %v388 = vunpack.c.l.b16 %v193
      %v389 = vunpack.c.l.b16 %v194
      %v390 = vunpack.c.l.b16 %v195
      %v391 = vunpack.c.l.b16 %v196
      %v392 = vunpack.c.l.b16 %v197
      %v393 = vunpack.c.l.b16 %v198
      %v394 = vunpack.c.l.b16 %v199
      %v395 = vunpack.c.l.b16 %v200
      %v396 = vunpack.c.l.b16 %v201
      %v397 = vunpack.c.l.b16 %v202
      %v398 = vpack.c.b16 %v381, %v380
      %v399 = vpack.c.b16 %v383, %v382
      %v400 = vpack.c.b16 %v385, %v384
      %v401 = vpack.c.b16 %v387, %v386
      %v402 = vpack.c.b16 %v389, %v388
      %v403 = vpack.c.b16 %v391, %v390
      %v404 = vpack.c.b16 %v393, %v392
      %v405 = vpack.c.b16 %v395, %v394
      %v406 = vpack.c.b16 %v397, %v396
      %v416 = vsel %vm316, %v233, 0
      %418 = vmatprep.subr.bf16.mxu0 0
      %419 = vmatpush1.bf16.msra.mxu0 %v398
      %420 = vmatprep.subr.bf16.mxu0 0
      %421 = vmatpush1.bf16.msra.mxu0 %v399
      %422 = vmatprep.subr.bf16.mxu0 0
      %423 = vmatpush1.bf16.msra.mxu0 %v400
      %424 = vmatprep.subr.bf16.mxu0 0
      %425 = vmatpush1.bf16.msra.mxu0 %v401
      %426 = vmatprep.subr.bf16.mxu0 0
      %427 = vmatpush1.bf16.msra.mxu0 %v402
      %428 = vmatprep.subr.bf16.mxu0 0
      %429 = vmatpush1.bf16.msra.mxu0 %v403
      %430 = vmatprep.subr.bf16.mxu0 0
      %431 = vmatpush1.bf16.msra.mxu0 %v404
      %432 = vmatprep.subr.bf16.mxu0 0
      %433 = vmatpush1.bf16.msra.mxu0 %v405
      %434 = vmatprep.subr.bf16.mxu0 0
      %435 = vmatpush1.bf16.msra.mxu0 %v406
      %436 = vmatprep.subr.bf16.mxu0 0
      %437 = vmatpush1.bf16.msra.mxu0 0
      %438 = vmatprep.subr.bf16.mxu0 0
      %439 = vmatpush1.bf16.msra.mxu0 0
      %440 = vmatprep.subr.bf16.mxu0 0
      %441 = vmatpush1.bf16.msra.mxu0 0
      %442 = vmatprep.subr.bf16.mxu0 0
      %443 = vmatpush1.bf16.msra.mxu0 0
      %444 = vmatprep.subr.bf16.mxu0 0
      %445 = vmatpush1.bf16.msra.mxu0 0
      %446 = vmatprep.subr.bf16.mxu0 0
      %447 = vmatpush1.bf16.msra.mxu0 0
      %448 = vmatprep.subr.bf16.mxu0 0
      %449 = vmatpush1.bf16.msra.mxu0 0
      %450 = vmatprep.mubr.bf16.mxu0 %v416
      %451 = vmatmul.mubr.bf16.gmra.mrb[0].mxu0 %v232
      %v452 = vpop.f32.mrb[0].mxu0
      %v453 = vadd.f32 %v355, %v452
      %v454 = vpop.f32.mrb[0].mxu0
      %v455 = vpop.f32.mrb[0].mxu0
      %v456 = vadd.f32 %v358, %v455
      %v457 = vpop.f32.mrb[0].mxu0
      %458 = vdwg.mxu0
      %v459 = vld [vmem:[%s172] sm:$0xee]
      %s460 = scalar_lea.vmem %s1, 144
      %v461 = vld [vmem:[%s460] sm:$0xf]
      %v462 = vld [vmem:[%s460 + $0x4] sm:$0xf]
      %v463 = vld [vmem:[%s460 + $0x8] sm:$0xf]
      %v464 = vld [vmem:[%s460 + $0xc] sm:$0xf]
      %v465 = vld [vmem:[%s460 + $0x10] sm:$0xf]
      %v466 = vld [vmem:[%s460 + $0x14] sm:$0xf]
      %v467 = vld [vmem:[%s460 + $0x18] sm:$0xf]
      %v468 = vld [vmem:[%s460 + $0x1c] sm:$0xf]
      %v469 = vld [vmem:[%s460 + $0x20] sm:$0xf]
      %v470 = vld [vmem:[%s460 + $0x24] sm:$0xf]
      %v471 = vld [vmem:[%s460 + $0x28] sm:$0xf]
      %v472 = vld [vmem:[%s460 + $0x2c] sm:$0xf]
      %v473 = vld [vmem:[%s460 + $0x30] sm:$0xf]
      %v474 = vld [vmem:[%s460 + $0x34] sm:$0xf]
      %v475 = vld [vmem:[%s460 + $0x38] sm:$0xf]
      %v476 = vld [vmem:[%s460 + $0x3c] sm:$0xf]
      %v477 = vld [vmem:[%s460 + $0x40] sm:$0xf]
      %v478 = vld [vmem:[%s460 + $0x44] sm:$0xf]
      %v480 = vunpack.c.l.b16 %v459
      %v481 = vunpack.c.h.b16 %v459
      %v482 = vpack.c.b16 %v228, %v480
      %v483 = vpack.c.b16 %v229, %v481
      %vm484 = vcmask 1046528
      %v485 = vrot.slane %v482, 1
      %v486 = vrot.slane %v234, 1
      %v487 = vsel %vm484, %v485, %v486
      %v488 = vrot.slane %v483, 1
      %v489 = vrot.slane %v235, 1
      %v490 = vsel %vm484, %v488, %v489
      %v510 = vunpack.c.l.b16 %v461
      %v511 = vunpack.c.l.b16 %v462
      %v512 = vunpack.c.l.b16 %v463
      %v513 = vunpack.c.l.b16 %v464
      %v514 = vunpack.c.l.b16 %v465
      %v515 = vunpack.c.l.b16 %v466
      %v516 = vunpack.c.l.b16 %v467
      %v517 = vunpack.c.l.b16 %v468
      %v518 = vunpack.c.l.b16 %v469
      %v519 = vunpack.c.l.b16 %v470
      %v520 = vunpack.c.l.b16 %v471
      %v521 = vunpack.c.l.b16 %v472
      %v522 = vunpack.c.l.b16 %v473
      %v523 = vunpack.c.l.b16 %v474
      %v524 = vunpack.c.l.b16 %v475
      %v525 = vunpack.c.l.b16 %v476
      %v526 = vunpack.c.l.b16 %v477
      %v527 = vunpack.c.l.b16 %v478
      %v528 = vpack.c.b16 %v511, %v510
      %v529 = vpack.c.b16 %v513, %v512
      %v530 = vpack.c.b16 %v515, %v514
      %v531 = vpack.c.b16 %v517, %v516
      %v532 = vpack.c.b16 %v519, %v518
      %v533 = vpack.c.b16 %v521, %v520
      %v534 = vpack.c.b16 %v523, %v522
      %v535 = vpack.c.b16 %v525, %v524
      %v536 = vpack.c.b16 %v527, %v526
      %v547 = vsel %vm316, %v490, 0
      %549 = vmatprep.subr.bf16.mxu0 0
      %550 = vmatpush1.bf16.msra.mxu0 %v528
      %551 = vmatprep.subr.bf16.mxu0 0
      %552 = vmatpush1.bf16.msra.mxu0 %v529
      %553 = vmatprep.subr.bf16.mxu0 0
      %554 = vmatpush1.bf16.msra.mxu0 %v530
      %555 = vmatprep.subr.bf16.mxu0 0
      %556 = vmatpush1.bf16.msra.mxu0 %v531
      %557 = vmatprep.subr.bf16.mxu0 0
      %558 = vmatpush1.bf16.msra.mxu0 %v532
      %559 = vmatprep.subr.bf16.mxu0 0
      %560 = vmatpush1.bf16.msra.mxu0 %v533
      %561 = vmatprep.subr.bf16.mxu0 0
      %562 = vmatpush1.bf16.msra.mxu0 %v534
      %563 = vmatprep.subr.bf16.mxu0 0
      %564 = vmatpush1.bf16.msra.mxu0 %v535
      %565 = vmatprep.subr.bf16.mxu0 0
      %566 = vmatpush1.bf16.msra.mxu0 %v536
      %567 = vmatprep.subr.bf16.mxu0 0
      %568 = vmatpush1.bf16.msra.mxu0 0
      %569 = vmatprep.subr.bf16.mxu0 0
      %570 = vmatpush1.bf16.msra.mxu0 0
      %571 = vmatprep.subr.bf16.mxu0 0
      %572 = vmatpush1.bf16.msra.mxu0 0
      %573 = vmatprep.subr.bf16.mxu0 0
      %574 = vmatpush1.bf16.msra.mxu0 0
      %575 = vmatprep.subr.bf16.mxu0 0
      %576 = vmatpush1.bf16.msra.mxu0 0
      %577 = vmatprep.subr.bf16.mxu0 0
      %578 = vmatpush1.bf16.msra.mxu0 0
      %579 = vmatprep.subr.bf16.mxu0 0
      %580 = vmatpush1.bf16.msra.mxu0 0
      %581 = vmatprep.mubr.bf16.mxu0 %v547
      %582 = vmatmul.mubr.bf16.gmra.mrb[0].mxu0 %v487
      %v583 = vpop.f32.mrb[0].mxu0
      %v584 = vadd.f32 0.0, %v583
      %v585 = vpop.f32.mrb[0].mxu0
      %v586 = vpop.f32.mrb[0].mxu0
      %v587 = vadd.f32 0.0, %v586
      %v588 = vpop.f32.mrb[0].mxu0
      %589 = vdwg.mxu0
      %v590 = vadd.f32 %v453, %v584
      %v591 = vadd.f32 %v456, %v587
      %v592 = vpack.c.bf16 %v591, %v590
      %v594 = vunpack.c.l.b16 %v592
      %v595 = vunpack.c.h.b16 %v592
      %v596 = vpack.c.b16 %v594, %v594
      %v597 = vpack.c.b16 %v595, %v595
      %600 = vst [vmem:[%s177] sm:$0xf] %v596
      %601 = vst [vmem:[%s177 + $0x4] sm:$0xf] %v597
      %v602 = vadd.f32 %v590, %v591
      %v603 = vrot.slane %v602, 4
      %v604 = vadd.f32 %v602, %v603
      %v605 = vrot.slane %v604, 2
      %v606 = vadd.f32 %v604, %v605
      %v607 = vrot.slane %v606, 1
      %v608 = vadd.f32 %v606, %v607
      %609 = vst [vmem:[%s181] sm:$0x1] %v608
      %v610 = vmul.f32 %v590, %v590
      %v611 = vmul.f32 %v591, %v591
      %v612 = vadd.f32 %v610, %v611
      %v613 = vrot.slane %v612, 4
      %v614 = vadd.f32 %v612, %v613
      %v615 = vrot.slane %v614, 2
      %v616 = vadd.f32 %v614, %v615
      %v617 = vrot.slane %v616, 1
      %v618 = vadd.f32 %v616, %v617
      %619 = vst [vmem:[%s181 + $0x1] sm:$0x1] %v618
      %p620 = scmp.lt.s32.totalorder %s15, 1
      %s621 = scalar_select %p620, %s15, 1
      %s622 = smul.addr %s621, 2
      %s623 = smul.addr %s622, 4
      %s624 = scalar_lea.vmem %s2, %s623
      %p625 = scmp.lt.s32.totalorder %s15, 1
      %s626 = scalar_select %p625, %s15, 1
      %s627 = smul.addr %s626, 2
      %s628 = scalar_lea.vmem %s3, %s627
      // Predicated region
      $region29: #{conv_encoder_forward.10} parent=27 // pred_check
        %p629 = pneg %p80
      $region30: #{conv_encoder_forward.10} parent=27 // pred_check_branch
        %631 = sbr.rel (%p629) target = $region32
      $region31: #{conv_encoder_forward.10} parent=27 // pred_region
        _
      $region32: #{conv_encoder_forward.10} parent=27 // pred_fallthru
        _
      // Predicated region
      $region33: #{conv_encoder_forward.10} parent=27 // pred_check
        %p632 = pneg %p106
      $region34: #{conv_encoder_forward.10} parent=27 // pred_check_branch
        %634 = sbr.rel (%p632) target = $region36
      $region35: #{conv_encoder_forward.10} parent=27 // pred_region
        _
      $region36: #{conv_encoder_forward.10} parent=27 // pred_fallthru
        _
    $region28: #{conv_encoder_forward.10} parent=5 // pred_fallthru
      _
    %p635 = scmp.le.s32.totalorder 2, %s10
    // Predicated region
    $region37: #{conv_encoder_forward.10} parent=5 // pred_check
      %p636 = pneg %p635
    $region38: #{conv_encoder_forward.10} parent=5 // pred_check_branch
      %638 = sbr.rel (%p636) target = $region40
    $region39: #{conv_encoder_forward.10} parent=5 // pred_region
      %s639 = ssub.s32 %s10, 2
      // Predicated region
      $region41: #{conv_encoder_forward.10} parent=39 // pred_check
        %p640 = pneg %p86
      $region42: #{conv_encoder_forward.10} parent=39 // pred_check_branch
        %642 = sbr.rel (%p640) target = $region44
      $region43: #{conv_encoder_forward.10} parent=39 // pred_region
        %p643 = scmp.lt.s32.totalorder %s16, 1
        %s644 = scalar_select %p643, %s16, 1
        %s645 = smul.addr %s644, 2
        %s646 = smul.addr %s645, 4
        %s647 = scalar_lea.vmem %s2, %s646
      $region44: #{conv_encoder_forward.10} parent=39 // pred_fallthru
        _
      // Predicated region
      $region45: #{conv_encoder_forward.10} parent=39 // pred_check
        %p648 = pneg %p112
      $region46: #{conv_encoder_forward.10} parent=39 // pred_check_branch
        %650 = sbr.rel (%p648) target = $region48
      $region47: #{conv_encoder_forward.10} parent=39 // pred_region
        %p651 = scmp.lt.s32.totalorder %s16, 1
        %s652 = scalar_select %p651, %s16, 1
        %s653 = smul.addr %s652, 2
        %s654 = scalar_lea.vmem %s3, %s653
      $region48: #{conv_encoder_forward.10} parent=39 // pred_fallthru
        _
    $region40: #{conv_encoder_forward.10} parent=5 // pred_fallthru
      _
  $region6: #{conv_encoder_forward.10} parent=0 // loop_footer
    %s14 = sadd.s32 1, %s10
  $region7: #{conv_encoder_forward.10} parent=0 // loop_footer_branch
    %9 = sbr.rel target = $region3
  $region8: #{conv_encoder_forward.10} parent=0 // loop_exit
    _

// kernel: tile.53
$region0: #{tile.53}
  #allocation0 [shape = 's32[1]{0}', space=sflag, size = 0x4, scoped, tag = 'scoped memory for tile.53']
  %s0 = inlined_call_operand.vmem [shape: f32[8], index: 0, kind: input, shape index: {}]
  %s1 = inlined_call_operand.vmem [shape: f32[8,8], index: 1, kind: output, shape index: {}]
  // Predicated region
  $region2: #{tile.53} parent=0 // pred_check
    _
  $region3: #{tile.53} parent=0 // pred_check_branch
    %3 = sbr.rel (0) target = $region5
  $region4: #{tile.53} parent=0 // pred_region
    _
  $region5: #{tile.53} parent=0 // pred_fallthru
    _
  %v4 = vld [vmem:[%s0] ss:$0 sm:$0xff]
  %5 = vst [vmem:[%s1] sm:$0xff] %v4

// kernel: tile.54
$region0: #{tile.54}
  %s0 = inlined_call_operand.vmem [shape: f32[8,8], index: 0, kind: input, shape index: {}]
  %s1 = inlined_call_operand.vmem [shape: f32[1,1,1,64], index: 1, kind: output, shape index: {}]
  $region1: #{tile.54} parent=0
    #allocation0 [shape = 'u8[4096]{0}', space=vmem, size = 0x1000, scoped, tag = 'scoped mem for output reshape']
    %v2 = vld [vmem:[%s0] sm:$0x1]
    %vm3 = vcmask 64512
    %4 = vst.msk [vmem:[#allocation0] sm:$0x1] %vm3, %v2
    %s5 = scalar_lea.vmem %s0, 7
    %v6 = vld [vmem:[%s5] sm:$0x1]
    %7 = vrot.lane.b32.xlu0 %v6, 56
    %v8 = vpop.permute.xlu0 %7
    %vm9 = vcmask 523712
    %10 = vst.msk [vmem:[#allocation0] sm:$0x1] %vm9, %v8
    %s11 = scalar_lea.vmem %s0, 6
    %v12 = vld [vmem:[%s11] sm:$0x1]
    %13 = vrot.lane.b32.xlu0 %v12, 48
    %v14 = vpop.permute.xlu0 %13
    %vm15 = vcmask 458112
    %16 = vst.msk [vmem:[#allocation0] sm:$0x1] %vm15, %v14
    %s17 = scalar_lea.vmem %s0, 5
    %v18 = vld [vmem:[%s17] sm:$0x1]
    %19 = vrot.lane.b32.xlu0 %v18, 40
    %v20 = vpop.permute.xlu0 %19
    %vm21 = vcmask 392512
    %22 = vst.msk [vmem:[#allocation0] sm:$0x1] %vm21, %v20
    %s23 = scalar_lea.vmem %s0, 4
    %v24 = vld [vmem:[%s23] sm:$0x1]
    %25 = vrot.lane.b32.xlu0 %v24, 32
    %v26 = vpop.permute.xlu0 %25
    %vm27 = vcmask 326912
    %28 = vst.msk [vmem:[#allocation0] sm:$0x1] %vm27, %v26
    %s29 = scalar_lea.vmem %s0, 3
    %v30 = vld [vmem:[%s29] sm:$0x1]
    %31 = vrot.lane.b32.xlu0 %v30, 24
    %v32 = vpop.permute.xlu0 %31
    %vm33 = vcmask 261312
    %34 = vst.msk [vmem:[#allocation0] sm:$0x1] %vm33, %v32
    %s35 = scalar_lea.vmem %s0, 2
    %v36 = vld [vmem:[%s35] sm:$0x1]
    %37 = vrot.lane.b32.xlu0 %v36, 16
    %v38 = vpop.permute.xlu0 %37
    %vm39 = vcmask 195712
    %40 = vst.msk [vmem:[#allocation0] sm:$0x1] %vm39, %v38
    %s41 = scalar_lea.vmem %s0, 1
    %v42 = vld [vmem:[%s41] sm:$0x1]
    %43 = vrot.lane.b32.xlu0 %v42, 8
    %v44 = vpop.permute.xlu0 %43
    %vm45 = vcmask 130112
    %46 = vst.msk [vmem:[#allocation0] sm:$0x1] %vm45, %v44
    %s48 = sshllo.u32 0, 1
    %v50 = vld [vmem:[#allocation0] sm:%s48]
    %s51 = sshllo.u32 0, 1
    %52 = vst [vmem:[%s1] sm:%s51] %v50

// kernel: conv_encoder_forward.11
$region0: #{conv_encoder_forward.11}
  #allocation0 [shape = 'u32[]', space=smem, size = 0x4, offset = 0x4, fixed_abs, tag = 'smem constant byte address 0x4 - core index']
  #allocation1 [shape = 'u32[144,128]{1,0:T(1,128)}', space=vmem, size = 0x12000, scoped, tag = 'internal scratch']
  %s0 = inlined_call_operand.vmem [shape: bf16[16,2,2,64], index: 0, kind: input, shape index: {}]
  %s1 = inlined_call_operand.vmem [shape: f32[1,1,1,64], index: 1, kind: input, shape index: {}]
  %s2 = inlined_call_operand.vmem [shape: f32[1,1,1,64], index: 2, kind: input, shape index: {}]
  %s3 = inlined_call_operand.vmem [shape: f32[16,64], index: 3, kind: output, shape index: {}]
  %s4 = sld [smem:[#allocation0]]
  $region45: #{conv_encoder_forward.11} parent=0
    _
  %s6 = ssub.s32 1, %s4
  %s7 = scalar_select 0, %s6, %s4
  loop: start=0, step=1, limit=4
  $region2: #{conv_encoder_forward.11} parent=0 // loop_pre_header
    _
  $region3: #{conv_encoder_forward.11} parent=0 // loop_header
    %s9 = sphi 0, %s13
    %p10 = scmp.ge.s32.totalorder %s9, 4
    %s19 = sphi 0, %s21
    %s22 = sphi 0, %s19
    %s23 = sphi 0, %s22
    %s39 = sphi 0, %s23
    %s43 = sphi 0, %s43
    %s45 = sphi 0, %s43
    %s46 = sphi 0, %s45
    %s60 = sphi 0, %s46
    %s64 = sphi 0, %s64
    %s66 = sphi 0, %s64
    %s67 = sphi 0, %s66
    %s81 = sphi 0, %s67
    %s87 = sphi 0, %s89
    %s90 = sphi 0, %s87
    %s91 = sphi 0, %s90
    %s107 = sphi 0, %s91
  $region4: #{conv_encoder_forward.11} parent=0 // loop_header_branch
    %12 = sbr.rel (%p10) target = $region8
  $region5: #{conv_encoder_forward.11} parent=0 // loop_body
    %s14 = ssub.s32 %s9, 1
    %s15 = ssub.s32 %s9, 2
    %s16 = sadd.s32 %s9, 1
    %s17 = ssub.s32 %s9, %s16
    %p18 = scmp.eq.s32.totalorder %s17, 0
    %s20 = sadd.s32 %s19, 1
    %s21 = scalar_select %p18, %s19, %s20
    %p24 = pneg %p18
    %p25 = scmp.eq.s32.totalorder %s9, 1
    %p26 = por %p24, %p25
    %p27 = scmp.ne.s32.totalorder %s19, %s22
    %p28 = scmp.eq.s32.totalorder %s9, 0
    %p29 = por %p27, %p28
    %p30 = scmp.ne.s32.totalorder %s19, %s22
    %p31 = scmp.eq.s32.totalorder %s14, 1
    %p32 = por %p30, %p31
    %p33 = scmp.ne.s32.totalorder %s22, %s23
    %p34 = scmp.eq.s32.totalorder %s14, 0
    %p35 = por %p33, %p34
    %p36 = scmp.ne.s32.totalorder %s22, %s23
    %p37 = scmp.eq.s32.totalorder %s15, 1
    %p38 = por %p36, %p37
    %p40 = scmp.ne.s32.totalorder %s23, %s39
    %p41 = scmp.eq.s32.totalorder %s15, 0
    %p42 = por %p40, %p41
    %s44 = sadd.s32 %s43, 1
    %p47 = scmp.eq.s32.totalorder %s9, 1
    %p48 = scmp.ne.s32.totalorder %s43, %s45
    %p49 = scmp.eq.s32.totalorder %s9, 0
    %p50 = por %p48, %p49
    %p51 = scmp.ne.s32.totalorder %s43, %s45
    %p52 = scmp.eq.s32.totalorder %s14, 1
    %p53 = por %p51, %p52
    %p54 = scmp.ne.s32.totalorder %s45, %s46
    %p55 = scmp.eq.s32.totalorder %s14, 0
    %p56 = por %p54, %p55
    %p57 = scmp.ne.s32.totalorder %s45, %s46
    %p58 = scmp.eq.s32.totalorder %s15, 1
    %p59 = por %p57, %p58
    %p61 = scmp.ne.s32.totalorder %s46, %s60
    %p62 = scmp.eq.s32.totalorder %s15, 0
    %p63 = por %p61, %p62
    %s65 = sadd.s32 %s64, 1
    %p68 = scmp.eq.s32.totalorder %s9, 1
    %p69 = scmp.ne.s32.totalorder %s64, %s66
    %p70 = scmp.eq.s32.totalorder %s9, 0
    %p71 = por %p69, %p70
    %p72 = scmp.ne.s32.totalorder %s64, %s66
    %p73 = scmp.eq.s32.totalorder %s14, 1
    %p74 = por %p72, %p73
    %p75 = scmp.ne.s32.totalorder %s66, %s67
    %p76 = scmp.eq.s32.totalorder %s14, 0
    %p77 = por %p75, %p76
    %p78 = scmp.ne.s32.totalorder %s66, %s67
    %p79 = scmp.eq.s32.totalorder %s15, 1
    %p80 = por %p78, %p79
    %p82 = scmp.ne.s32.totalorder %s67, %s81
    %p83 = scmp.eq.s32.totalorder %s15, 0
    %p84 = por %p82, %p83
    %s85 = ssub.s32 %s9, %s16
    %p86 = scmp.eq.s32.totalorder %s85, 0
    %s88 = sadd.s32 %s87, 1
    %s89 = scalar_select %p86, %s87, %s88
    %p92 = pneg %p86
    %p93 = scmp.eq.s32.totalorder %s9, 1
    %p94 = por %p92, %p93
    %p95 = scmp.ne.s32.totalorder %s87, %s90
    %p96 = scmp.eq.s32.totalorder %s9, 0
    %p97 = por %p95, %p96
    %p98 = scmp.ne.s32.totalorder %s87, %s90
    %p99 = scmp.eq.s32.totalorder %s14, 1
    %p100 = por %p98, %p99
    %p101 = scmp.ne.s32.totalorder %s90, %s91
    %p102 = scmp.eq.s32.totalorder %s14, 0
    %p103 = por %p101, %p102
    %p104 = scmp.ne.s32.totalorder %s90, %s91
    %p105 = scmp.eq.s32.totalorder %s15, 1
    %p106 = por %p104, %p105
    %p108 = scmp.ne.s32.totalorder %s91, %s107
    %p109 = scmp.eq.s32.totalorder %s15, 0
    %p110 = por %p108, %p109
    %p111 = scmp.le.s32.totalorder 1, %s9
    %p112 = scmp.lt.s32.totalorder %s9, 3
    %p113 = pnand %p111, %p112
    %p114 = pneg %p113
    // Predicated region
    $region9: #{conv_encoder_forward.11} parent=5 // pred_check
      _
    $region10: #{conv_encoder_forward.11} parent=5 // pred_check_branch
      %116 = sbr.rel (%p113) target = $region12
    $region11: #{conv_encoder_forward.11} parent=5 // pred_region
      %s117 = ssub.s32 %s9, 1
      // Predicated region
      $region13: #{conv_encoder_forward.11} parent=11 // pred_check
        %p118 = pneg %p56
      $region14: #{conv_encoder_forward.11} parent=11 // pred_check_branch
        %120 = sbr.rel (%p118) target = $region16
      $region15: #{conv_encoder_forward.11} parent=11 // pred_region
        _
      $region16: #{conv_encoder_forward.11} parent=11 // pred_fallthru
        _
      // Predicated region
      $region17: #{conv_encoder_forward.11} parent=11 // pred_check
        %p121 = pneg %p77
      $region18: #{conv_encoder_forward.11} parent=11 // pred_check_branch
        %123 = sbr.rel (%p121) target = $region20
      $region19: #{conv_encoder_forward.11} parent=11 // pred_region
        _
      $region20: #{conv_encoder_forward.11} parent=11 // pred_fallthru
        _
    $region12: #{conv_encoder_forward.11} parent=5 // pred_fallthru
      _
    %p124 = scmp.lt.s32.totalorder %s9, 2
    // Predicated region
    $region21: #{conv_encoder_forward.11} parent=5 // pred_check
      %p125 = pneg %p124
    $region22: #{conv_encoder_forward.11} parent=5 // pred_check_branch
      %127 = sbr.rel (%p125) target = $region24
    $region23: #{conv_encoder_forward.11} parent=5 // pred_region
      // Predicated region
      $region25: #{conv_encoder_forward.11} parent=23 // pred_check
        %p128 = pneg %p29
      $region26: #{conv_encoder_forward.11} parent=23 // pred_check_branch
        %130 = sbr.rel (%p128) target = $region28
      $region27: #{conv_encoder_forward.11} parent=23 // pred_region
        %s131 = smul.u32 8, %s9
        %p132 = scmp.lt.s32.totalorder %s131, 15
        %s133 = scalar_select %p132, %s131, 15
        %s134 = smul.addr %s133, 2
        %s135 = scalar_lea.vmem %s0, %s134
        %s136 = smul.u32 8, %s9
      $region28: #{conv_encoder_forward.11} parent=23 // pred_fallthru
        _
    $region24: #{conv_encoder_forward.11} parent=5 // pred_fallthru
      _
    %p137 = scmp.le.s32.totalorder 1, %s9
    %p138 = scmp.lt.s32.totalorder %s9, 3
    %p139 = pnand %p137, %p138
    %p140 = pneg %p139
    // Predicated region
    $region29: #{conv_encoder_forward.11} parent=5 // pred_check
      _
    $region30: #{conv_encoder_forward.11} parent=5 // pred_check_branch
      %142 = sbr.rel (%p139) target = $region32
    $region31: #{conv_encoder_forward.11} parent=5 // pred_region
      %s143 = ssub.s32 %s9, 1
      %s144 = smul.u32 8, %s14
      %p145 = scmp.lt.s32.totalorder %s144, 15
      %s146 = scalar_select %p145, %s144, 15
      %s147 = smul.addr %s146, 2
      %s148 = scalar_lea.vmem %s0, %s147
      %p149 = pneg %p35
      %p150 = pneg %p32
      %p151 = pneg %p56
      %p152 = pneg %p53
      %p153 = pneg %p77
      %p154 = pneg %p74
      %p155 = pneg %p103
      %p156 = pneg %p100
      %p157 = scmp.lt.s32.totalorder %s14, 1
      %s158 = scalar_select %p157, %s14, 1
      %s159 = smul.addr %s158, 8
      %s160 = scalar_lea.vmem %s3, %s159
      %s161 = smul.u32 8, %s14
      %p162 = scmp.lt.s32.totalorder %s161, 15
      %s163 = scalar_select %p162, %s161, 15
      %s164 = smul.addr %s163, 2
      %s165 = scalar_lea.vmem %s0, %s164
      %s166 = smul.u32 8, %s14
      %p167 = scmp.lt.s32.totalorder %s14, 1
      %s168 = scalar_select %p167, %s14, 1
      %s169 = smul.addr %s168, 8
      %s170 = scalar_lea.vmem %s3, %s169
      %v171 = vld [vmem:[%s165] sm:$0x1]
      %v172 = vld [vmem:[%s165 + $0x1] sm:$0x1]
      %v173 = vld [vmem:[%s165 + $0x2] sm:$0x1]
      %v174 = vld [vmem:[%s165 + $0x3] sm:$0x1]
      %v175 = vld [vmem:[%s165 + $0x4] sm:$0x1]
      %v176 = vld [vmem:[%s165 + $0x5] sm:$0x1]
      %v177 = vld [vmem:[%s165 + $0x6] sm:$0x1]
      %v178 = vld [vmem:[%s165 + $0x7] sm:$0x1]
      %v179 = vld [vmem:[%s165 + $0x8] sm:$0x1]
      %v180 = vld [vmem:[%s165 + $0x9] sm:$0x1]
      %v181 = vld [vmem:[%s165 + $0xa] sm:$0x1]
      %v182 = vld [vmem:[%s165 + $0xb] sm:$0x1]
      %v183 = vld [vmem:[%s165 + $0xc] sm:$0x1]
      %v184 = vld [vmem:[%s165 + $0xd] sm:$0x1]
      %v185 = vld [vmem:[%s165 + $0xe] sm:$0x1]
      %v186 = vld [vmem:[%s165 + $0xf] sm:$0x1]
      %v187 = vunpack.c.l.bf16 %v171
      %v188 = vunpack.c.l.bf16 %v172
      %v189 = vunpack.c.l.bf16 %v173
      %v190 = vunpack.c.l.bf16 %v174
      %v191 = vunpack.c.l.bf16 %v175
      %v192 = vunpack.c.l.bf16 %v176
      %v193 = vunpack.c.l.bf16 %v177
      %v194 = vunpack.c.l.bf16 %v178
      %v195 = vunpack.c.l.bf16 %v179
      %v196 = vunpack.c.l.bf16 %v180
      %v197 = vunpack.c.l.bf16 %v181
      %v198 = vunpack.c.l.bf16 %v182
      %v199 = vunpack.c.l.bf16 %v183
      %v200 = vunpack.c.l.bf16 %v184
      %v201 = vunpack.c.l.bf16 %v185
      %v202 = vunpack.c.l.bf16 %v186
      %v203 = vld [vmem:[%s1] sm:$0x1]
      %v205 = vlaneseq
      %v206 = vshrl.u32 %v205, 7
      %v207 = vsub.s32 0, %v206
      %v208 = vrot.slane %v203, %v207
      %v210 = vmul.f32 %v187, %v208
      %v211 = vmul.f32 %v188, %v208
      %v212 = vmul.f32 %v189, %v208
      %v213 = vmul.f32 %v190, %v208
      %v214 = vmul.f32 %v191, %v208
      %v215 = vmul.f32 %v192, %v208
      %v216 = vmul.f32 %v193, %v208
      %v217 = vmul.f32 %v194, %v208
      %v218 = vmul.f32 %v195, %v208
      %v219 = vmul.f32 %v196, %v208
      %v220 = vmul.f32 %v197, %v208
      %v221 = vmul.f32 %v198, %v208
      %v222 = vmul.f32 %v199, %v208
      %v223 = vmul.f32 %v200, %v208
      %v224 = vmul.f32 %v201, %v208
      %v225 = vmul.f32 %v202, %v208
      %v226 = vld [vmem:[%s2] sm:$0x1]
      %v228 = vlaneseq
      %v229 = vshrl.u32 %v228, 7
      %v230 = vsub.s32 0, %v229
      %v231 = vrot.slane %v226, %v230
      %v233 = vadd.f32 %v210, %v231
      %v234 = vadd.f32 %v211, %v231
      %v235 = vadd.f32 %v212, %v231
      %v236 = vadd.f32 %v213, %v231
      %v237 = vadd.f32 %v214, %v231
      %v238 = vadd.f32 %v215, %v231
      %v239 = vadd.f32 %v216, %v231
      %v240 = vadd.f32 %v217, %v231
      %v241 = vadd.f32 %v218, %v231
      %v242 = vadd.f32 %v219, %v231
      %v243 = vadd.f32 %v220, %v231
      %v244 = vadd.f32 %v221, %v231
      %v245 = vadd.f32 %v222, %v231
      %v246 = vadd.f32 %v223, %v231
      %v247 = vadd.f32 %v224, %v231
      %v248 = vadd.f32 %v225, %v231
      %vm249 = vcmp.ge.f32.partialorder %v233, 0.0
      %vm250 = vcmp.ge.f32.partialorder %v234, 0.0
      %vm251 = vcmp.ge.f32.partialorder %v235, 0.0
      %vm252 = vcmp.ge.f32.partialorder %v236, 0.0
      %vm253 = vcmp.ge.f32.partialorder %v237, 0.0
      %vm254 = vcmp.ge.f32.partialorder %v238, 0.0
      %vm255 = vcmp.ge.f32.partialorder %v239, 0.0
      %vm256 = vcmp.ge.f32.partialorder %v240, 0.0
      %vm257 = vcmp.ge.f32.partialorder %v241, 0.0
      %vm258 = vcmp.ge.f32.partialorder %v242, 0.0
      %vm259 = vcmp.ge.f32.partialorder %v243, 0.0
      %vm260 = vcmp.ge.f32.partialorder %v244, 0.0
      %vm261 = vcmp.ge.f32.partialorder %v245, 0.0
      %vm262 = vcmp.ge.f32.partialorder %v246, 0.0
      %vm263 = vcmp.ge.f32.partialorder %v247, 0.0
      %vm264 = vcmp.ge.f32.partialorder %v248, 0.0
      %v265 = vmul.f32 %v233, 0.01
      %v266 = vmul.f32 %v234, 0.01
      %v267 = vmul.f32 %v235, 0.01
      %v268 = vmul.f32 %v236, 0.01
      %v269 = vmul.f32 %v237, 0.01
      %v270 = vmul.f32 %v238, 0.01
      %v271 = vmul.f32 %v239, 0.01
      %v272 = vmul.f32 %v240, 0.01
      %v273 = vmul.f32 %v241, 0.01
      %v274 = vmul.f32 %v242, 0.01
      %v275 = vmul.f32 %v243, 0.01
      %v276 = vmul.f32 %v244, 0.01
      %v277 = vmul.f32 %v245, 0.01
      %v278 = vmul.f32 %v246, 0.01
      %v279 = vmul.f32 %v247, 0.01
      %v280 = vmul.f32 %v248, 0.01
      %v281 = vsel %vm249, %v233, %v265
      %v282 = vsel %vm250, %v234, %v266
      %v283 = vsel %vm251, %v235, %v267
      %v284 = vsel %vm252, %v236, %v268
      %v285 = vsel %vm253, %v237, %v269
      %v286 = vsel %vm254, %v238, %v270
      %v287 = vsel %vm255, %v239, %v271
      %v288 = vsel %vm256, %v240, %v272
      %v289 = vsel %vm257, %v241, %v273
      %v290 = vsel %vm258, %v242, %v274
      %v291 = vsel %vm259, %v243, %v275
      %v292 = vsel %vm260, %v244, %v276
      %v293 = vsel %vm261, %v245, %v277
      %v294 = vsel %vm262, %v246, %v278
      %v295 = vsel %vm263, %v247, %v279
      %v296 = vsel %vm264, %v248, %v280
      %v305 = vrot.slane %v281, 7
      %v306 = vrot.slane %v305, 2
      %v307 = vrot.slane %v283, 7
      %v308 = vrot.slane %v307, 2
      %v309 = vrot.slane %v285, 7
      %v310 = vrot.slane %v309, 2
      %v311 = vrot.slane %v287, 7
      %v312 = vrot.slane %v311, 2
      %v313 = vrot.slane %v289, 7
      %v314 = vrot.slane %v313, 2
      %v315 = vrot.slane %v291, 7
      %v316 = vrot.slane %v315, 2
      %v317 = vrot.slane %v293, 7
      %v318 = vrot.slane %v317, 2
      %v319 = vrot.slane %v295, 7
      %v320 = vrot.slane %v319, 2
      %v329 = vmax.f32 %v281, %v306
      %v330 = vmax.f32 %v283, %v308
      %v331 = vmax.f32 %v285, %v310
      %v332 = vmax.f32 %v287, %v312
      %v333 = vmax.f32 %v289, %v314
      %v334 = vmax.f32 %v291, %v316
      %v335 = vmax.f32 %v293, %v318
      %v336 = vmax.f32 %v295, %v320
      %v345 = vrot.slane %v282, 7
      %v346 = vrot.slane %v345, 2
      %v347 = vrot.slane %v284, 7
      %v348 = vrot.slane %v347, 2
      %v349 = vrot.slane %v286, 7
      %v350 = vrot.slane %v349, 2
      %v351 = vrot.slane %v288, 7
      %v352 = vrot.slane %v351, 2
      %v353 = vrot.slane %v290, 7
      %v354 = vrot.slane %v353, 2
      %v355 = vrot.slane %v292, 7
      %v356 = vrot.slane %v355, 2
      %v357 = vrot.slane %v294, 7
      %v358 = vrot.slane %v357, 2
      %v359 = vrot.slane %v296, 7
      %v360 = vrot.slane %v359, 2
      %v369 = vmax.f32 %v282, %v346
      %v370 = vmax.f32 %v284, %v348
      %v371 = vmax.f32 %v286, %v350
      %v372 = vmax.f32 %v288, %v352
      %v373 = vmax.f32 %v290, %v354
      %v374 = vmax.f32 %v292, %v356
      %v375 = vmax.f32 %v294, %v358
      %v376 = vmax.f32 %v296, %v360
      %v377 = vmax.f32 %v329, %v369
      %v378 = vmax.f32 %v330, %v370
      %v379 = vmax.f32 %v331, %v371
      %v380 = vmax.f32 %v332, %v372
      %v381 = vmax.f32 %v333, %v373
      %v382 = vmax.f32 %v334, %v374
      %v383 = vmax.f32 %v335, %v375
      %v384 = vmax.f32 %v336, %v376
      %v393 = vlaneseq
      %v394 = vshrl.u32 %v393, 7
      %v395 = vsub.s32 0, %v394
      %v396 = vrot.slane %v377, %v395
      %v397 = vlaneseq
      %v398 = vshrl.u32 %v397, 7
      %v399 = vsub.s32 0, %v398
      %v400 = vrot.slane %v378, %v399
      %v401 = vlaneseq
      %v402 = vshrl.u32 %v401, 7
      %v403 = vsub.s32 0, %v402
      %v404 = vrot.slane %v379, %v403
      %v405 = vlaneseq
      %v406 = vshrl.u32 %v405, 7
      %v407 = vsub.s32 0, %v406
      %v408 = vrot.slane %v380, %v407
      %v409 = vlaneseq
      %v410 = vshrl.u32 %v409, 7
      %v411 = vsub.s32 0, %v410
      %v412 = vrot.slane %v381, %v411
      %v413 = vlaneseq
      %v414 = vshrl.u32 %v413, 7
      %v415 = vsub.s32 0, %v414
      %v416 = vrot.slane %v382, %v415
      %v417 = vlaneseq
      %v418 = vshrl.u32 %v417, 7
      %v419 = vsub.s32 0, %v418
      %v420 = vrot.slane %v383, %v419
      %v421 = vlaneseq
      %v422 = vshrl.u32 %v421, 7
      %v423 = vsub.s32 0, %v422
      %v424 = vrot.slane %v384, %v423
      %vm425 = vcmask 1041409
      %v426 = vsel %vm425, %v400, %v396
      %vm427 = vcmask 1042434
      %v428 = vsel %vm427, %v404, %v426
      %vm429 = vcmask 1043459
      %v430 = vsel %vm429, %v408, %v428
      %vm431 = vcmask 1044484
      %v432 = vsel %vm431, %v412, %v430
      %vm433 = vcmask 1045509
      %v434 = vsel %vm433, %v416, %v432
      %vm435 = vcmask 1046534
      %v436 = vsel %vm435, %v420, %v434
      %vm437 = vcmask 1047559
      %v438 = vsel %vm437, %v424, %v436
      %vm440 = vcmask 523264
      %441 = vst.msk [vmem:[%s170] sm:$0xff] %vm440, %v438
      %p442 = scmp.lt.s32.totalorder %s14, 1
      %s443 = scalar_select %p442, %s14, 1
      %s444 = smul.addr %s443, 8
      %s445 = scalar_lea.vmem %s3, %s444
      // Predicated region
      $region33: #{conv_encoder_forward.11} parent=31 // pred_check
        %p446 = pneg %p100
      $region34: #{conv_encoder_forward.11} parent=31 // pred_check_branch
        %448 = sbr.rel (%p446) target = $region36
      $region35: #{conv_encoder_forward.11} parent=31 // pred_region
        _
      $region36: #{conv_encoder_forward.11} parent=31 // pred_fallthru
        _
    $region32: #{conv_encoder_forward.11} parent=5 // pred_fallthru
      _
    %p449 = scmp.le.s32.totalorder 2, %s9
    // Predicated region
    $region37: #{conv_encoder_forward.11} parent=5 // pred_check
      %p450 = pneg %p449
    $region38: #{conv_encoder_forward.11} parent=5 // pred_check_branch
      %452 = sbr.rel (%p450) target = $region40
    $region39: #{conv_encoder_forward.11} parent=5 // pred_region
      %s453 = ssub.s32 %s9, 2
      // Predicated region
      $region41: #{conv_encoder_forward.11} parent=39 // pred_check
        %p454 = pneg %p106
      $region42: #{conv_encoder_forward.11} parent=39 // pred_check_branch
        %456 = sbr.rel (%p454) target = $region44
      $region43: #{conv_encoder_forward.11} parent=39 // pred_region
        %p457 = scmp.lt.s32.totalorder %s15, 1
        %s458 = scalar_select %p457, %s15, 1
        %s459 = smul.addr %s458, 8
        %s460 = scalar_lea.vmem %s3, %s459
      $region44: #{conv_encoder_forward.11} parent=39 // pred_fallthru
        _
    $region40: #{conv_encoder_forward.11} parent=5 // pred_fallthru
      _
  $region6: #{conv_encoder_forward.11} parent=0 // loop_footer
    %s13 = sadd.s32 1, %s9
  $region7: #{conv_encoder_forward.11} parent=0 // loop_footer_branch
    %8 = sbr.rel target = $region3
  $region8: #{conv_encoder_forward.11} parent=0 // loop_exit
    _

// kernel: conv_encoder_forward.12
$region0: #{conv_encoder_forward.12}
  #allocation0 [shape = 'u32[]', space=smem, size = 0x4, offset = 0x4, fixed_abs, tag = 'smem constant byte address 0x4 - core index']
  #allocation1 [shape = 'u32[144,128]{1,0:T(1,128)}', space=vmem, size = 0x12000, scoped, tag = 'internal scratch']
  %s0 = inlined_call_operand.vmem [shape: bf16[2,10,80], index: 0, kind: input, shape index: {}]
  %s1 = inlined_call_operand.vmem [shape: bf16[3,80,128], index: 1, kind: input, shape index: {}]
  %s2 = inlined_call_operand.vmem [shape: bf16[2,8,128], index: 2, kind: output, shape index: {0}]
  %s3 = inlined_call_operand.vmem [shape: f32[2,2,128], index: 3, kind: output, shape index: {1}]
  %4 = xla_tuple %s2, %s3
  %s5 = sld [smem:[#allocation0]]
  $region49: #{conv_encoder_forward.12} parent=0
    _
  %s7 = ssub.s32 1, %s5
  %s8 = scalar_select 0, %s7, %s5
  loop: start=0, step=1, limit=4
  $region2: #{conv_encoder_forward.12} parent=0 // loop_pre_header
    _
  $region3: #{conv_encoder_forward.12} parent=0 // loop_header
    %s10 = sphi 0, %s14
    %p11 = scmp.ge.s32.totalorder %s10, 4
    %s20 = sphi 0, %s22
    %s23 = sphi 0, %s20
    %s24 = sphi 0, %s23
    %s40 = sphi 0, %s24
    %s44 = sphi 0, %s44
    %s46 = sphi 0, %s44
    %s47 = sphi 0, %s46
    %s61 = sphi 0, %s47
    %s67 = sphi 0, %s69
    %s70 = sphi 0, %s67
    %s71 = sphi 0, %s70
    %s87 = sphi 0, %s71
    %s93 = sphi 0, %s95
    %s96 = sphi 0, %s93
    %s97 = sphi 0, %s96
    %s113 = sphi 0, %s97
  $region4: #{conv_encoder_forward.12} parent=0 // loop_header_branch
    %13 = sbr.rel (%p11) target = $region8
  $region5: #{conv_encoder_forward.12} parent=0 // loop_body
    %s15 = ssub.s32 %s10, 1
    %s16 = ssub.s32 %s10, 2
    %s17 = sadd.s32 %s10, 1
    %s18 = ssub.s32 %s10, %s17
    %p19 = scmp.eq.s32.totalorder %s18, 0
    %s21 = sadd.s32 %s20, 1
    %s22 = scalar_select %p19, %s20, %s21
    %p25 = pneg %p19
    %p26 = scmp.eq.s32.totalorder %s10, 1
    %p27 = por %p25, %p26
    %p28 = scmp.ne.s32.totalorder %s20, %s23
    %p29 = scmp.eq.s32.totalorder %s10, 0
    %p30 = por %p28, %p29
    %p31 = scmp.ne.s32.totalorder %s20, %s23
    %p32 = scmp.eq.s32.totalorder %s15, 1
    %p33 = por %p31, %p32
    %p34 = scmp.ne.s32.totalorder %s23, %s24
    %p35 = scmp.eq.s32.totalorder %s15, 0
    %p36 = por %p34, %p35
    %p37 = scmp.ne.s32.totalorder %s23, %s24
    %p38 = scmp.eq.s32.totalorder %s16, 1
    %p39 = por %p37, %p38
    %p41 = scmp.ne.s32.totalorder %s24, %s40
    %p42 = scmp.eq.s32.totalorder %s16, 0
    %p43 = por %p41, %p42
    %s45 = sadd.s32 %s44, 1
    %p48 = scmp.eq.s32.totalorder %s10, 1
    %p49 = scmp.ne.s32.totalorder %s44, %s46
    %p50 = scmp.eq.s32.totalorder %s10, 0
    %p51 = por %p49, %p50
    %p52 = scmp.ne.s32.totalorder %s44, %s46
    %p53 = scmp.eq.s32.totalorder %s15, 1
    %p54 = por %p52, %p53
    %p55 = scmp.ne.s32.totalorder %s46, %s47
    %p56 = scmp.eq.s32.totalorder %s15, 0
    %p57 = por %p55, %p56
    %p58 = scmp.ne.s32.totalorder %s46, %s47
    %p59 = scmp.eq.s32.totalorder %s16, 1
    %p60 = por %p58, %p59
    %p62 = scmp.ne.s32.totalorder %s47, %s61
    %p63 = scmp.eq.s32.totalorder %s16, 0
    %p64 = por %p62, %p63
    %s65 = ssub.s32 %s10, %s17
    %p66 = scmp.eq.s32.totalorder %s65, 0
    %s68 = sadd.s32 %s67, 1
    %s69 = scalar_select %p66, %s67, %s68
    %p72 = pneg %p66
    %p73 = scmp.eq.s32.totalorder %s10, 1
    %p74 = por %p72, %p73
    %p75 = scmp.ne.s32.totalorder %s67, %s70
    %p76 = scmp.eq.s32.totalorder %s10, 0
    %p77 = por %p75, %p76
    %p78 = scmp.ne.s32.totalorder %s67, %s70
    %p79 = scmp.eq.s32.totalorder %s15, 1
    %p80 = por %p78, %p79
    %p81 = scmp.ne.s32.totalorder %s70, %s71
    %p82 = scmp.eq.s32.totalorder %s15, 0
    %p83 = por %p81, %p82
    %p84 = scmp.ne.s32.totalorder %s70, %s71
    %p85 = scmp.eq.s32.totalorder %s16, 1
    %p86 = por %p84, %p85
    %p88 = scmp.ne.s32.totalorder %s71, %s87
    %p89 = scmp.eq.s32.totalorder %s16, 0
    %p90 = por %p88, %p89
    %s91 = ssub.s32 %s10, %s17
    %p92 = scmp.eq.s32.totalorder %s91, 0
    %s94 = sadd.s32 %s93, 1
    %s95 = scalar_select %p92, %s93, %s94
    %p98 = pneg %p92
    %p99 = scmp.eq.s32.totalorder %s10, 1
    %p100 = por %p98, %p99
    %p101 = scmp.ne.s32.totalorder %s93, %s96
    %p102 = scmp.eq.s32.totalorder %s10, 0
    %p103 = por %p101, %p102
    %p104 = scmp.ne.s32.totalorder %s93, %s96
    %p105 = scmp.eq.s32.totalorder %s15, 1
    %p106 = por %p104, %p105
    %p107 = scmp.ne.s32.totalorder %s96, %s97
    %p108 = scmp.eq.s32.totalorder %s15, 0
    %p109 = por %p107, %p108
    %p110 = scmp.ne.s32.totalorder %s96, %s97
    %p111 = scmp.eq.s32.totalorder %s16, 1
    %p112 = por %p110, %p111
    %p114 = scmp.ne.s32.totalorder %s97, %s113
    %p115 = scmp.eq.s32.totalorder %s16, 0
    %p116 = por %p114, %p115
    %p117 = scmp.le.s32.totalorder 1, %s10
    %p118 = scmp.lt.s32.totalorder %s10, 3
    %p119 = pnand %p117, %p118
    %p120 = pneg %p119
    // Predicated region
    $region9: #{conv_encoder_forward.12} parent=5 // pred_check
      _
    $region10: #{conv_encoder_forward.12} parent=5 // pred_check_branch
      %122 = sbr.rel (%p119) target = $region12
    $region11: #{conv_encoder_forward.12} parent=5 // pred_region
      %s123 = ssub.s32 %s10, 1
      // Predicated region
      $region13: #{conv_encoder_forward.12} parent=11 // pred_check
        %p124 = pneg %p57
      $region14: #{conv_encoder_forward.12} parent=11 // pred_check_branch
        %126 = sbr.rel (%p124) target = $region16
      $region15: #{conv_encoder_forward.12} parent=11 // pred_region
        _
      $region16: #{conv_encoder_forward.12} parent=11 // pred_fallthru
        _
    $region12: #{conv_encoder_forward.12} parent=5 // pred_fallthru
      _
    %p127 = scmp.lt.s32.totalorder %s10, 2
    // Predicated region
    $region17: #{conv_encoder_forward.12} parent=5 // pred_check
      %p128 = pneg %p127
    $region18: #{conv_encoder_forward.12} parent=5 // pred_check_branch
      %130 = sbr.rel (%p128) target = $region20
    $region19: #{conv_encoder_forward.12} parent=5 // pred_region
      // Predicated region
      $region21: #{conv_encoder_forward.12} parent=19 // pred_check
        %p131 = pneg %p30
      $region22: #{conv_encoder_forward.12} parent=19 // pred_check_branch
        %133 = sbr.rel (%p131) target = $region24
      $region23: #{conv_encoder_forward.12} parent=19 // pred_region
        %p134 = scmp.lt.s32.totalorder %s10, 1
        %s135 = scalar_select %p134, %s10, 1
        %s136 = smul.addr %s135, 2
        %s137 = smul.addr %s136, 4
        %s138 = scalar_lea.vmem %s0, %s137
      $region24: #{conv_encoder_forward.12} parent=19 // pred_fallthru
        _
    $region20: #{conv_encoder_forward.12} parent=5 // pred_fallthru
      _
    %p139 = scmp.le.s32.totalorder 1, %s10
    %p140 = scmp.lt.s32.totalorder %s10, 3
    %p141 = pnand %p139, %p140
    %p142 = pneg %p141
    // Predicated region
    $region25: #{conv_encoder_forward.12} parent=5 // pred_check
      _
    $region26: #{conv_encoder_forward.12} parent=5 // pred_check_branch
      %144 = sbr.rel (%p141) target = $region28
    $region27: #{conv_encoder_forward.12} parent=5 // pred_region
      %s145 = ssub.s32 %s10, 1
      %p146 = scmp.lt.s32.totalorder %s15, 1
      %s147 = scalar_select %p146, %s15, 1
      %s148 = smul.addr %s147, 2
      %s149 = smul.addr %s148, 4
      %s150 = scalar_lea.vmem %s0, %s149
      %p151 = pneg %p36
      %p152 = pneg %p33
      %p153 = pneg %p57
      %p154 = pneg %p54
      %p155 = pneg %p83
      %p156 = pneg %p80
      %p157 = scmp.lt.s32.totalorder %s15, 1
      %s158 = scalar_select %p157, %s15, 1
      %s159 = smul.addr %s158, 4
      %s160 = scalar_lea.vmem %s2, %s159
      %p161 = pneg %p109
      %p162 = pneg %p106
      %p163 = scmp.lt.s32.totalorder %s15, 1
      %s164 = scalar_select %p163, %s15, 1
      %s165 = smul.addr %s164, 2
      %s166 = scalar_lea.vmem %s3, %s165
      %p167 = scmp.lt.s32.totalorder %s15, 1
      %s168 = scalar_select %p167, %s15, 1
      %s169 = smul.addr %s168, 2
      %s170 = smul.addr %s169, 4
      %s171 = scalar_lea.vmem %s0, %s170
      %p172 = scmp.lt.s32.totalorder %s15, 1
      %s173 = scalar_select %p172, %s15, 1
      %s174 = smul.addr %s173, 4
      %s175 = scalar_lea.vmem %s2, %s174
      %p176 = scmp.lt.s32.totalorder %s15, 1
      %s177 = scalar_select %p176, %s15, 1
      %s178 = smul.addr %s177, 2
      %s179 = scalar_lea.vmem %s3, %s178
      %v181 = vld [vmem:[%s171] sm:$0xf]
      %v182 = vld [vmem:[%s1] sm:$0xf]
      %v183 = vld [vmem:[%s1 + $0x4] sm:$0xf]
      %v184 = vld [vmem:[%s1 + $0x8] sm:$0xf]
      %v185 = vld [vmem:[%s1 + $0xc] sm:$0xf]
      %v186 = vld [vmem:[%s1 + $0x10] sm:$0xf]
      %v187 = vld [vmem:[%s1 + $0x14] sm:$0xf]
      %v188 = vld [vmem:[%s1 + $0x18] sm:$0xf]
      %v189 = vld [vmem:[%s1 + $0x1c] sm:$0xf]
      %v190 = vld [vmem:[%s1 + $0x20] sm:$0xf]
      %v191 = vld [vmem:[%s1 + $0x24] sm:$0xf]
      %v192 = vld [vmem:[%s171 + $0x4] sm:$0x1]
      %s193 = scalar_lea.vmem %s1, 40
      %v194 = vld [vmem:[%s193] sm:$0xf]
      %v195 = vld [vmem:[%s193 + $0x4] sm:$0xf]
      %v196 = vld [vmem:[%s193 + $0x8] sm:$0xf]
      %v197 = vld [vmem:[%s193 + $0xc] sm:$0xf]
      %v198 = vld [vmem:[%s193 + $0x10] sm:$0xf]
      %v199 = vld [vmem:[%s193 + $0x14] sm:$0xf]
      %v200 = vld [vmem:[%s193 + $0x18] sm:$0xf]
      %v201 = vld [vmem:[%s193 + $0x1c] sm:$0xf]
      %v202 = vld [vmem:[%s193 + $0x20] sm:$0xf]
      %v203 = vld [vmem:[%s193 + $0x24] sm:$0xf]
      %v206 = vunpack.c.l.b16 %v181
      %v207 = vunpack.c.l.b16 %v192
      %v208 = vpack.c.b16 %v207, %v206
      %v210 = vshrl.u32 %v208, 16
      %v212 = vshll.u32 %v208, 16
      %v214 = vrot.slane %v212, 1
      %v215 = vor.u32 %v210, %v214
      %v226 = vunpack.c.l.b16 %v194
      %v227 = vunpack.c.l.b16 %v195
      %v228 = vunpack.c.l.b16 %v196
      %v229 = vunpack.c.l.b16 %v197
      %v230 = vunpack.c.l.b16 %v198
      %v231 = vunpack.c.l.b16 %v199
      %v232 = vunpack.c.l.b16 %v200
      %v233 = vunpack.c.l.b16 %v201
      %v234 = vunpack.c.l.b16 %v202
      %v235 = vunpack.c.l.b16 %v203
      %v236 = vpack.c.b16 %v227, %v226
      %v237 = vpack.c.b16 %v229, %v228
      %v238 = vpack.c.b16 %v231, %v230
      %v239 = vpack.c.b16 %v233, %v232
      %v240 = vpack.c.b16 %v235, %v234
      %vm246 = vcmask 654336
      %v248 = vsel %vm246, %v215, 0
      %250 = vmatprep.subr.bf16.mxu0 0
      %251 = vmatpush1.bf16.msra.mxu0 %v236
      %252 = vmatprep.subr.bf16.mxu0 0
      %253 = vmatpush1.bf16.msra.mxu0 %v237
      %254 = vmatprep.subr.bf16.mxu0 0
      %255 = vmatpush1.bf16.msra.mxu0 %v238
      %256 = vmatprep.subr.bf16.mxu0 0
      %257 = vmatpush1.bf16.msra.mxu0 %v239
      %258 = vmatprep.subr.bf16.mxu0 0
      %259 = vmatpush1.bf16.msra.mxu0 %v240
      %260 = vmatprep.subr.bf16.mxu0 0
      %261 = vmatpush1.bf16.msra.mxu0 0
      %262 = vmatprep.subr.bf16.mxu0 0
      %263 = vmatpush1.bf16.msra.mxu0 0
      %264 = vmatprep.subr.bf16.mxu0 0
      %265 = vmatpush1.bf16.msra.mxu0 0
      %266 = vmatprep.subr.bf16.mxu0 0
      %267 = vmatpush1.bf16.msra.mxu0 0
      %268 = vmatprep.subr.bf16.mxu0 0
      %269 = vmatpush1.bf16.msra.mxu0 0
      %270 = vmatprep.subr.bf16.mxu0 0
      %271 = vmatpush1.bf16.msra.mxu0 0
      %272 = vmatprep.subr.bf16.mxu0 0
      %273 = vmatpush1.bf16.msra.mxu0 0
      %274 = vmatprep.subr.bf16.mxu0 0
      %275 = vmatpush1.bf16.msra.mxu0 0
      %276 = vmatprep.subr.bf16.mxu0 0
      %277 = vmatpush1.bf16.msra.mxu0 0
      %278 = vmatprep.subr.bf16.mxu0 0
      %279 = vmatpush1.bf16.msra.mxu0 0
      %280 = vmatprep.subr.bf16.mxu0 0
      %281 = vmatpush1.bf16.msra.mxu0 0
      %282 = vmatprep.mubr.bf16.mxu0 0
      %283 = vmatmul.mubr.bf16.gmra.mrb[0].mxu0 %v248
      %v284 = vpop.f32.mrb[0].mxu0
      %v285 = vadd.f32 0.0, %v284
      %v286 = vpop.f32.mrb[0].mxu0
      %v287 = vpop.f32.mrb[0].mxu0
      %v288 = vpop.f32.mrb[0].mxu0
      %289 = vdwg.mxu0
      %v300 = vunpack.c.l.b16 %v182
      %v301 = vunpack.c.l.b16 %v183
      %v302 = vunpack.c.l.b16 %v184
      %v303 = vunpack.c.l.b16 %v185
      %v304 = vunpack.c.l.b16 %v186
      %v305 = vunpack.c.l.b16 %v187
      %v306 = vunpack.c.l.b16 %v188
      %v307 = vunpack.c.l.b16 %v189
      %v308 = vunpack.c.l.b16 %v190
      %v309 = vunpack.c.l.b16 %v191
      %v310 = vpack.c.b16 %v301, %v300
      %v311 = vpack.c.b16 %v303, %v302
      %v312 = vpack.c.b16 %v305, %v304
      %v313 = vpack.c.b16 %v307, %v306
      %v314 = vpack.c.b16 %v309, %v308
      %v321 = vsel %vm246, %v181, 0
      %323 = vmatprep.subr.bf16.mxu0 0
      %324 = vmatpush1.bf16.msra.mxu0 %v310
      %325 = vmatprep.subr.bf16.mxu0 0
      %326 = vmatpush1.bf16.msra.mxu0 %v311
      %327 = vmatprep.subr.bf16.mxu0 0
      %328 = vmatpush1.bf16.msra.mxu0 %v312
      %329 = vmatprep.subr.bf16.mxu0 0
      %330 = vmatpush1.bf16.msra.mxu0 %v313
      %331 = vmatprep.subr.bf16.mxu0 0
      %332 = vmatpush1.bf16.msra.mxu0 %v314
      %333 = vmatprep.subr.bf16.mxu0 0
      %334 = vmatpush1.bf16.msra.mxu0 0
      %335 = vmatprep.subr.bf16.mxu0 0
      %336 = vmatpush1.bf16.msra.mxu0 0
      %337 = vmatprep.subr.bf16.mxu0 0
      %338 = vmatpush1.bf16.msra.mxu0 0
      %339 = vmatprep.subr.bf16.mxu0 0
      %340 = vmatpush1.bf16.msra.mxu0 0
      %341 = vmatprep.subr.bf16.mxu0 0
      %342 = vmatpush1.bf16.msra.mxu0 0
      %343 = vmatprep.subr.bf16.mxu0 0
      %344 = vmatpush1.bf16.msra.mxu0 0
      %345 = vmatprep.subr.bf16.mxu0 0
      %346 = vmatpush1.bf16.msra.mxu0 0
      %347 = vmatprep.subr.bf16.mxu0 0
      %348 = vmatpush1.bf16.msra.mxu0 0
      %349 = vmatprep.subr.bf16.mxu0 0
      %350 = vmatpush1.bf16.msra.mxu0 0
      %351 = vmatprep.subr.bf16.mxu0 0
      %352 = vmatpush1.bf16.msra.mxu0 0
      %353 = vmatprep.subr.bf16.mxu0 0
      %354 = vmatpush1.bf16.msra.mxu0 0
      %355 = vmatprep.mubr.bf16.mxu0 0
      %356 = vmatmul.mubr.bf16.gmra.mrb[0].mxu0 %v321
      %v357 = vpop.f32.mrb[0].mxu0
      %v358 = vadd.f32 %v285, %v357
      %v359 = vpop.f32.mrb[0].mxu0
      %v360 = vpop.f32.mrb[0].mxu0
      %v361 = vpop.f32.mrb[0].mxu0
      %362 = vdwg.mxu0
      %v363 = vld [vmem:[%s171] sm:$0xe]
      %s364 = scalar_lea.vmem %s1, 80
      %v365 = vld [vmem:[%s364] sm:$0xf]
      %v366 = vld [vmem:[%s364 + $0x4] sm:$0xf]
      %v367 = vld [vmem:[%s364 + $0x8] sm:$0xf]
      %v368 = vld [vmem:[%s364 + $0xc] sm:$0xf]
      %v369 = vld [vmem:[%s364 + $0x10] sm:$0xf]
      %v370 = vld [vmem:[%s364 + $0x14] sm:$0xf]
      %v371 = vld [vmem:[%s364 + $0x18] sm:$0xf]
      %v372 = vld [vmem:[%s364 + $0x1c] sm:$0xf]
      %v373 = vld [vmem:[%s364 + $0x20] sm:$0xf]
      %v374 = vld [vmem:[%s364 + $0x24] sm:$0xf]
      %v376 = vunpack.c.l.b16 %v363
      %v377 = vpack.c.b16 %v207, %v376
      %v378 = vrot.slane %v377, 1
      %v389 = vunpack.c.l.b16 %v365
      %v390 = vunpack.c.l.b16 %v366
      %v391 = vunpack.c.l.b16 %v367
      %v392 = vunpack.c.l.b16 %v368
      %v393 = vunpack.c.l.b16 %v369
      %v394 = vunpack.c.l.b16 %v370
      %v395 = vunpack.c.l.b16 %v371
      %v396 = vunpack.c.l.b16 %v372
      %v397 = vunpack.c.l.b16 %v373
      %v398 = vunpack.c.l.b16 %v374
      %v399 = vpack.c.b16 %v390, %v389
      %v400 = vpack.c.b16 %v392, %v391
      %v401 = vpack.c.b16 %v394, %v393
      %v402 = vpack.c.b16 %v396, %v395
      %v403 = vpack.c.b16 %v398, %v397
      %v410 = vsel %vm246, %v378, 0
      %412 = vmatprep.subr.bf16.mxu0 0
      %413 = vmatpush1.bf16.msra.mxu0 %v399
      %414 = vmatprep.subr.bf16.mxu0 0
      %415 = vmatpush1.bf16.msra.mxu0 %v400
      %416 = vmatprep.subr.bf16.mxu0 0
      %417 = vmatpush1.bf16.msra.mxu0 %v401
      %418 = vmatprep.subr.bf16.mxu0 0
      %419 = vmatpush1.bf16.msra.mxu0 %v402
      %420 = vmatprep.subr.bf16.mxu0 0
      %421 = vmatpush1.bf16.msra.mxu0 %v403
      %422 = vmatprep.subr.bf16.mxu0 0
      %423 = vmatpush1.bf16.msra.mxu0 0
      %424 = vmatprep.subr.bf16.mxu0 0
      %425 = vmatpush1.bf16.msra.mxu0 0
      %426 = vmatprep.subr.bf16.mxu0 0
      %427 = vmatpush1.bf16.msra.mxu0 0
      %428 = vmatprep.subr.bf16.mxu0 0
      %429 = vmatpush1.bf16.msra.mxu0 0
      %430 = vmatprep.subr.bf16.mxu0 0
      %431 = vmatpush1.bf16.msra.mxu0 0
      %432 = vmatprep.subr.bf16.mxu0 0
      %433 = vmatpush1.bf16.msra.mxu0 0
      %434 = vmatprep.subr.bf16.mxu0 0
      %435 = vmatpush1.bf16.msra.mxu0 0
      %436 = vmatprep.subr.bf16.mxu0 0
      %437 = vmatpush1.bf16.msra.mxu0 0
      %438 = vmatprep.subr.bf16.mxu0 0
      %439 = vmatpush1.bf16.msra.mxu0 0
      %440 = vmatprep.subr.bf16.mxu0 0
      %441 = vmatpush1.bf16.msra.mxu0 0
      %442 = vmatprep.subr.bf16.mxu0 0
      %443 = vmatpush1.bf16.msra.mxu0 0
      %444 = vmatprep.mubr.bf16.mxu0 0
      %445 = vmatmul.mubr.bf16.gmra.mrb[0].mxu0 %v410
      %v446 = vpop.f32.mrb[0].mxu0
      %v447 = vadd.f32 0.0, %v446
      %v448 = vpop.f32.mrb[0].mxu0
      %v449 = vpop.f32.mrb[0].mxu0
      %v450 = vpop.f32.mrb[0].mxu0
      %451 = vdwg.mxu0
      %v452 = vadd.f32 %v358, %v447
      %v453 = vpack.c.bf16 %v452, %v452
      %454 = vst [vmem:[%s175] sm:$0xf] %v453
      %v455 = vrot.slane %v452, 4
      %v456 = vadd.f32 %v452, %v455
      %v457 = vrot.slane %v456, 2
      %v458 = vadd.f32 %v456, %v457
      %v459 = vrot.slane %v458, 1
      %v460 = vadd.f32 %v458, %v459
      %461 = vst [vmem:[%s179] sm:$0x1] %v460
      %v462 = vmul.f32 %v452, %v452
      %v463 = vrot.slane %v462, 4
      %v464 = vadd.f32 %v462, %v463
      %v465 = vrot.slane %v464, 2
      %v466 = vadd.f32 %v464, %v465
      %v467 = vrot.slane %v466, 1
      %v468 = vadd.f32 %v466, %v467
      %469 = vst [vmem:[%s179 + $0x1] sm:$0x1] %v468
      %p470 = scmp.lt.s32.totalorder %s15, 1
      %s471 = scalar_select %p470, %s15, 1
      %s472 = smul.addr %s471, 4
      %s473 = scalar_lea.vmem %s2, %s472
      %p474 = scmp.lt.s32.totalorder %s15, 1
      %s475 = scalar_select %p474, %s15, 1
      %s476 = smul.addr %s475, 2
      %s477 = scalar_lea.vmem %s3, %s476
      // Predicated region
      $region29: #{conv_encoder_forward.12} parent=27 // pred_check
        %p478 = pneg %p80
      $region30: #{conv_encoder_forward.12} parent=27 // pred_check_branch
        %480 = sbr.rel (%p478) target = $region32
      $region31: #{conv_encoder_forward.12} parent=27 // pred_region
        _
      $region32: #{conv_encoder_forward.12} parent=27 // pred_fallthru
        _
      // Predicated region
      $region33: #{conv_encoder_forward.12} parent=27 // pred_check
        %p481 = pneg %p106
      $region34: #{conv_encoder_forward.12} parent=27 // pred_check_branch
        %483 = sbr.rel (%p481) target = $region36
      $region35: #{conv_encoder_forward.12} parent=27 // pred_region
        _
      $region36: #{conv_encoder_forward.12} parent=27 // pred_fallthru
        _
    $region28: #{conv_encoder_forward.12} parent=5 // pred_fallthru
      _
    %p484 = scmp.le.s32.totalorder 2, %s10
    // Predicated region
    $region37: #{conv_encoder_forward.12} parent=5 // pred_check
      %p485 = pneg %p484
    $region38: #{conv_encoder_forward.12} parent=5 // pred_check_branch
      %487 = sbr.rel (%p485) target = $region40
    $region39: #{conv_encoder_forward.12} parent=5 // pred_region
      %s488 = ssub.s32 %s10, 2
      // Predicated region
      $region41: #{conv_encoder_forward.12} parent=39 // pred_check
        %p489 = pneg %p86
      $region42: #{conv_encoder_forward.12} parent=39 // pred_check_branch
        %491 = sbr.rel (%p489) target = $region44
      $region43: #{conv_encoder_forward.12} parent=39 // pred_region
        %p492 = scmp.lt.s32.totalorder %s16, 1
        %s493 = scalar_select %p492, %s16, 1
        %s494 = smul.addr %s493, 4
        %s495 = scalar_lea.vmem %s2, %s494
      $region44: #{conv_encoder_forward.12} parent=39 // pred_fallthru
        _
      // Predicated region
      $region45: #{conv_encoder_forward.12} parent=39 // pred_check
        %p496 = pneg %p112
      $region46: #{conv_encoder_forward.12} parent=39 // pred_check_branch
        %498 = sbr.rel (%p496) target = $region48
      $region47: #{conv_encoder_forward.12} parent=39 // pred_region
        %p499 = scmp.lt.s32.totalorder %s16, 1
        %s500 = scalar_select %p499, %s16, 1
        %s501 = smul.addr %s500, 2
        %s502 = scalar_lea.vmem %s3, %s501
      $region48: #{conv_encoder_forward.12} parent=39 // pred_fallthru
        _
    $region40: #{conv_encoder_forward.12} parent=5 // pred_fallthru
      _
  $region6: #{conv_encoder_forward.12} parent=0 // loop_footer
    %s14 = sadd.s32 1, %s10
  $region7: #{conv_encoder_forward.12} parent=0 // loop_footer_branch
    %9 = sbr.rel target = $region3
  $region8: #{conv_encoder_forward.12} parent=0 // loop_exit
    _

// kernel: tile.63
$region0: #{tile.63}
  #allocation0 [shape = 's32[1]{0}', space=sflag, size = 0x4, scoped, tag = 'scoped memory for tile.63']
  %s0 = inlined_call_operand.vmem [shape: f32[16], index: 0, kind: input, shape index: {}]
  %s1 = inlined_call_operand.vmem [shape: f32[8,16], index: 1, kind: output, shape index: {}]
  // Predicated region
  $region2: #{tile.63} parent=0 // pred_check
    _
  $region3: #{tile.63} parent=0 // pred_check_branch
    %3 = sbr.rel (0) target = $region5
  $region4: #{tile.63} parent=0 // pred_region
    _
  $region5: #{tile.63} parent=0 // pred_fallthru
    _
  %v4 = vld [vmem:[%s0] ss:$0 sm:$0xff]
  %5 = vst [vmem:[%s1] sm:$0xff] %v4

// kernel: tile.64
$region0: #{tile.64}
  %s0 = inlined_call_operand.vmem [shape: f32[8,16], index: 0, kind: input, shape index: {}]
  %s1 = inlined_call_operand.vmem [shape: f32[1,128], index: 1, kind: output, shape index: {}]
  $region1: #{tile.64} parent=0
    #allocation0 [shape = 'u8[4096]{0}', space=vmem, size = 0x1000, scoped, tag = 'scoped mem for output reshape']
    %v2 = vld [vmem:[%s0] sm:$0x1]
    %vm3 = vcmask 130048
    %4 = vst.msk [vmem:[#allocation0] sm:$0x1] %vm3, %v2
    %s5 = scalar_lea.vmem %s0, 7
    %v6 = vld [vmem:[%s5] sm:$0x1]
    %7 = vrot.lane.b32.xlu0 %v6, 112
    %v8 = vpop.permute.xlu0 %7
    %vm9 = vcmask 1048448
    %10 = vst.msk [vmem:[#allocation0] sm:$0x1] %vm9, %v8
    %s11 = scalar_lea.vmem %s0, 6
    %v12 = vld [vmem:[%s11] sm:$0x1]
    %13 = vrot.lane.b32.xlu0 %v12, 96
    %v14 = vpop.permute.xlu0 %13
    %vm15 = vcmask 917248
    %16 = vst.msk [vmem:[#allocation0] sm:$0x1] %vm15, %v14
    %s17 = scalar_lea.vmem %s0, 5
    %v18 = vld [vmem:[%s17] sm:$0x1]
    %19 = vrot.lane.b32.xlu0 %v18, 80
    %v20 = vpop.permute.xlu0 %19
    %vm21 = vcmask 786048
    %22 = vst.msk [vmem:[#allocation0] sm:$0x1] %vm21, %v20
    %s23 = scalar_lea.vmem %s0, 4
    %v24 = vld [vmem:[%s23] sm:$0x1]
    %25 = vrot.lane.b32.xlu0 %v24, 64
    %v26 = vpop.permute.xlu0 %25
    %vm27 = vcmask 654848
    %28 = vst.msk [vmem:[#allocation0] sm:$0x1] %vm27, %v26
    %s29 = scalar_lea.vmem %s0, 3
    %v30 = vld [vmem:[%s29] sm:$0x1]
    %31 = vrot.lane.b32.xlu0 %v30, 48
    %v32 = vpop.permute.xlu0 %31
    %vm33 = vcmask 523648
    %34 = vst.msk [vmem:[#allocation0] sm:$0x1] %vm33, %v32
    %s35 = scalar_lea.vmem %s0, 2
    %v36 = vld [vmem:[%s35] sm:$0x1]
    %37 = vrot.lane.b32.xlu0 %v36, 32
    %v38 = vpop.permute.xlu0 %37
    %vm39 = vcmask 392448
    %40 = vst.msk [vmem:[#allocation0] sm:$0x1] %vm39, %v38
    %s41 = scalar_lea.vmem %s0, 1
    %v42 = vld [vmem:[%s41] sm:$0x1]
    %43 = vrot.lane.b32.xlu0 %v42, 16
    %v44 = vpop.permute.xlu0 %43
    %vm45 = vcmask 261248
    %46 = vst.msk [vmem:[#allocation0] sm:$0x1] %vm45, %v44
    %s48 = sshllo.u32 0, 1
    %v50 = vld [vmem:[#allocation0] sm:%s48]
    %s51 = sshllo.u32 0, 1
    %52 = vst [vmem:[%s1] sm:%s51] %v50

// kernel: conv_encoder_forward.13
$region0: #{conv_encoder_forward.13}
  #allocation0 [shape = 'u32[]', space=smem, size = 0x4, offset = 0x4, fixed_abs, tag = 'smem constant byte address 0x4 - core index']
  #allocation1 [shape = 'u32[144,128]{1,0:T(1,128)}', space=vmem, size = 0x12000, scoped, tag = 'internal scratch']
  %s0 = inlined_call_operand.vmem [shape: bf16[16,128], index: 0, kind: input, shape index: {}]
  %s1 = inlined_call_operand.vmem [shape: f32[1,128], index: 1, kind: input, shape index: {}]
  %s2 = inlined_call_operand.vmem [shape: f32[1,128], index: 2, kind: input, shape index: {}]
  %s3 = inlined_call_operand.vmem [shape: f32[16,128], index: 3, kind: output, shape index: {}]
  %s4 = sld [smem:[#allocation0]]
  $region22: #{conv_encoder_forward.13} parent=0
    _
  %s6 = ssub.s32 1, %s4
  %s7 = scalar_select 0, %s6, %s4
  // Predicated region
  $region2: #{conv_encoder_forward.13} parent=0 // pred_check
    _
  $region3: #{conv_encoder_forward.13} parent=0 // pred_check_branch
    %9 = sbr.rel (0) target = $region5
  $region4: #{conv_encoder_forward.13} parent=0 // pred_region
    _
  $region5: #{conv_encoder_forward.13} parent=0 // pred_fallthru
    _
  // Predicated region
  $region6: #{conv_encoder_forward.13} parent=0 // pred_check
    _
  $region7: #{conv_encoder_forward.13} parent=0 // pred_check_branch
    %11 = sbr.rel (0) target = $region9
  $region8: #{conv_encoder_forward.13} parent=0 // pred_region
    _
  $region9: #{conv_encoder_forward.13} parent=0 // pred_fallthru
    _
  // Predicated region
  $region10: #{conv_encoder_forward.13} parent=0 // pred_check
    _
  $region11: #{conv_encoder_forward.13} parent=0 // pred_check_branch
    %13 = sbr.rel (0) target = $region13
  $region12: #{conv_encoder_forward.13} parent=0 // pred_region
    _
  $region13: #{conv_encoder_forward.13} parent=0 // pred_fallthru
    _
  %v14 = vld [vmem:[%s0] sm:$0xf]
  %v15 = vld [vmem:[%s0 + $0x4] sm:$0xf]
  %v16 = vunpack.c.l.bf16 %v14
  %v17 = vunpack.c.l.bf16 %v15
  %v18 = vld [vmem:[%s1] sm:$0x1]
  %v20 = vlaneseq
  %v21 = vshrl.u32 %v20, 7
  %v22 = vsub.s32 0, %v21
  %v23 = vrot.slane %v18, %v22
  %v25 = vmul.f32 %v16, %v23
  %v26 = vmul.f32 %v17, %v23
  %v27 = vld [vmem:[%s2] sm:$0x1]
  %v29 = vlaneseq
  %v30 = vshrl.u32 %v29, 7
  %v31 = vsub.s32 0, %v30
  %v32 = vrot.slane %v27, %v31
  %v34 = vadd.f32 %v25, %v32
  %v35 = vadd.f32 %v26, %v32
  %vm36 = vcmp.ge.f32.partialorder %v34, 0.0
  %vm37 = vcmp.ge.f32.partialorder %v35, 0.0
  %v38 = vmul.f32 %v34, 0.01
  %v39 = vmul.f32 %v35, 0.01
  %v40 = vsel %vm36, %v34, %v38
  %v41 = vsel %vm37, %v35, %v39
  %42 = vst [vmem:[%s3] sm:$0xff] %v40
  %43 = vst [vmem:[%s3 + $0x8] sm:$0xff] %v41
  // Predicated region
  $region14: #{conv_encoder_forward.13} parent=0 // pred_check
    _
  $region15: #{conv_encoder_forward.13} parent=0 // pred_check_branch
    %45 = sbr.rel (0) target = $region17
  $region16: #{conv_encoder_forward.13} parent=0 // pred_region
    _
  $region17: #{conv_encoder_forward.13} parent=0 // pred_fallthru
    _
  // Predicated region
  $region18: #{conv_encoder_forward.13} parent=0 // pred_check
    _
  $region19: #{conv_encoder_forward.13} parent=0 // pred_check_branch
    %47 = sbr.rel (0) target = $region21
  $region20: #{conv_encoder_forward.13} parent=0 // pred_region
    _
  $region21: #{conv_encoder_forward.13} parent=0 // pred_fallthru
    _

// kernel: conv_encoder_forward.14
$region0: #{conv_encoder_forward.14}
  #allocation0 [shape = 'u32[]', space=smem, size = 0x4, offset = 0x4, fixed_abs, tag = 'smem constant byte address 0x4 - core index']
  #allocation1 [shape = 'u32[144,128]{1,0:T(1,128)}', space=vmem, size = 0x12000, scoped, tag = 'internal scratch']
  %s0 = inlined_call_operand.vmem [shape: bf16[2,10,160], index: 0, kind: input, shape index: {}]
  %s1 = inlined_call_operand.vmem [shape: bf16[3,160,128], index: 1, kind: input, shape index: {}]
  %s2 = inlined_call_operand.vmem [shape: bf16[2,8,128], index: 2, kind: output, shape index: {0}]
  %s3 = inlined_call_operand.vmem [shape: f32[2,2,128], index: 3, kind: output, shape index: {1}]
  %4 = xla_tuple %s2, %s3
  %s5 = sld [smem:[#allocation0]]
  $region49: #{conv_encoder_forward.14} parent=0
    _
  %s7 = ssub.s32 1, %s5
  %s8 = scalar_select 0, %s7, %s5
  loop: start=0, step=1, limit=4
  $region2: #{conv_encoder_forward.14} parent=0 // loop_pre_header
    _
  $region3: #{conv_encoder_forward.14} parent=0 // loop_header
    %s10 = sphi 0, %s14
    %p11 = scmp.ge.s32.totalorder %s10, 4
    %s20 = sphi 0, %s22
    %s23 = sphi 0, %s20
    %s24 = sphi 0, %s23
    %s40 = sphi 0, %s24
    %s44 = sphi 0, %s44
    %s46 = sphi 0, %s44
    %s47 = sphi 0, %s46
    %s61 = sphi 0, %s47
    %s67 = sphi 0, %s69
    %s70 = sphi 0, %s67
    %s71 = sphi 0, %s70
    %s87 = sphi 0, %s71
    %s93 = sphi 0, %s95
    %s96 = sphi 0, %s93
    %s97 = sphi 0, %s96
    %s113 = sphi 0, %s97
  $region4: #{conv_encoder_forward.14} parent=0 // loop_header_branch
    %13 = sbr.rel (%p11) target = $region8
  $region5: #{conv_encoder_forward.14} parent=0 // loop_body
    %s15 = ssub.s32 %s10, 1
    %s16 = ssub.s32 %s10, 2
    %s17 = sadd.s32 %s10, 1
    %s18 = ssub.s32 %s10, %s17
    %p19 = scmp.eq.s32.totalorder %s18, 0
    %s21 = sadd.s32 %s20, 1
    %s22 = scalar_select %p19, %s20, %s21
    %p25 = pneg %p19
    %p26 = scmp.eq.s32.totalorder %s10, 1
    %p27 = por %p25, %p26
    %p28 = scmp.ne.s32.totalorder %s20, %s23
    %p29 = scmp.eq.s32.totalorder %s10, 0
    %p30 = por %p28, %p29
    %p31 = scmp.ne.s32.totalorder %s20, %s23
    %p32 = scmp.eq.s32.totalorder %s15, 1
    %p33 = por %p31, %p32
    %p34 = scmp.ne.s32.totalorder %s23, %s24
    %p35 = scmp.eq.s32.totalorder %s15, 0
    %p36 = por %p34, %p35
    %p37 = scmp.ne.s32.totalorder %s23, %s24
    %p38 = scmp.eq.s32.totalorder %s16, 1
    %p39 = por %p37, %p38
    %p41 = scmp.ne.s32.totalorder %s24, %s40
    %p42 = scmp.eq.s32.totalorder %s16, 0
    %p43 = por %p41, %p42
    %s45 = sadd.s32 %s44, 1
    %p48 = scmp.eq.s32.totalorder %s10, 1
    %p49 = scmp.ne.s32.totalorder %s44, %s46
    %p50 = scmp.eq.s32.totalorder %s10, 0
    %p51 = por %p49, %p50
    %p52 = scmp.ne.s32.totalorder %s44, %s46
    %p53 = scmp.eq.s32.totalorder %s15, 1
    %p54 = por %p52, %p53
    %p55 = scmp.ne.s32.totalorder %s46, %s47
    %p56 = scmp.eq.s32.totalorder %s15, 0
    %p57 = por %p55, %p56
    %p58 = scmp.ne.s32.totalorder %s46, %s47
    %p59 = scmp.eq.s32.totalorder %s16, 1
    %p60 = por %p58, %p59
    %p62 = scmp.ne.s32.totalorder %s47, %s61
    %p63 = scmp.eq.s32.totalorder %s16, 0
    %p64 = por %p62, %p63
    %s65 = ssub.s32 %s10, %s17
    %p66 = scmp.eq.s32.totalorder %s65, 0
    %s68 = sadd.s32 %s67, 1
    %s69 = scalar_select %p66, %s67, %s68
    %p72 = pneg %p66
    %p73 = scmp.eq.s32.totalorder %s10, 1
    %p74 = por %p72, %p73
    %p75 = scmp.ne.s32.totalorder %s67, %s70
    %p76 = scmp.eq.s32.totalorder %s10, 0
    %p77 = por %p75, %p76
    %p78 = scmp.ne.s32.totalorder %s67, %s70
    %p79 = scmp.eq.s32.totalorder %s15, 1
    %p80 = por %p78, %p79
    %p81 = scmp.ne.s32.totalorder %s70, %s71
    %p82 = scmp.eq.s32.totalorder %s15, 0
    %p83 = por %p81, %p82
    %p84 = scmp.ne.s32.totalorder %s70, %s71
    %p85 = scmp.eq.s32.totalorder %s16, 1
    %p86 = por %p84, %p85
    %p88 = scmp.ne.s32.totalorder %s71, %s87
    %p89 = scmp.eq.s32.totalorder %s16, 0
    %p90 = por %p88, %p89
    %s91 = ssub.s32 %s10, %s17
    %p92 = scmp.eq.s32.totalorder %s91, 0
    %s94 = sadd.s32 %s93, 1
    %s95 = scalar_select %p92, %s93, %s94
    %p98 = pneg %p92
    %p99 = scmp.eq.s32.totalorder %s10, 1
    %p100 = por %p98, %p99
    %p101 = scmp.ne.s32.totalorder %s93, %s96
    %p102 = scmp.eq.s32.totalorder %s10, 0
    %p103 = por %p101, %p102
    %p104 = scmp.ne.s32.totalorder %s93, %s96
    %p105 = scmp.eq.s32.totalorder %s15, 1
    %p106 = por %p104, %p105
    %p107 = scmp.ne.s32.totalorder %s96, %s97
    %p108 = scmp.eq.s32.totalorder %s15, 0
    %p109 = por %p107, %p108
    %p110 = scmp.ne.s32.totalorder %s96, %s97
    %p111 = scmp.eq.s32.totalorder %s16, 1
    %p112 = por %p110, %p111
    %p114 = scmp.ne.s32.totalorder %s97, %s113
    %p115 = scmp.eq.s32.totalorder %s16, 0
    %p116 = por %p114, %p115
    %p117 = scmp.le.s32.totalorder 1, %s10
    %p118 = scmp.lt.s32.totalorder %s10, 3
    %p119 = pnand %p117, %p118
    %p120 = pneg %p119
    // Predicated region
    $region9: #{conv_encoder_forward.14} parent=5 // pred_check
      _
    $region10: #{conv_encoder_forward.14} parent=5 // pred_check_branch
      %122 = sbr.rel (%p119) target = $region12
    $region11: #{conv_encoder_forward.14} parent=5 // pred_region
      %s123 = ssub.s32 %s10, 1
      // Predicated region
      $region13: #{conv_encoder_forward.14} parent=11 // pred_check
        %p124 = pneg %p57
      $region14: #{conv_encoder_forward.14} parent=11 // pred_check_branch
        %126 = sbr.rel (%p124) target = $region16
      $region15: #{conv_encoder_forward.14} parent=11 // pred_region
        _
      $region16: #{conv_encoder_forward.14} parent=11 // pred_fallthru
        _
    $region12: #{conv_encoder_forward.14} parent=5 // pred_fallthru
      _
    %p127 = scmp.lt.s32.totalorder %s10, 2
    // Predicated region
    $region17: #{conv_encoder_forward.14} parent=5 // pred_check
      %p128 = pneg %p127
    $region18: #{conv_encoder_forward.14} parent=5 // pred_check_branch
      %130 = sbr.rel (%p128) target = $region20
    $region19: #{conv_encoder_forward.14} parent=5 // pred_region
      // Predicated region
      $region21: #{conv_encoder_forward.14} parent=19 // pred_check
        %p131 = pneg %p30
      $region22: #{conv_encoder_forward.14} parent=19 // pred_check_branch
        %133 = sbr.rel (%p131) target = $region24
      $region23: #{conv_encoder_forward.14} parent=19 // pred_region
        %p134 = scmp.lt.s32.totalorder %s10, 1
        %s135 = scalar_select %p134, %s10, 1
        %s136 = smul.addr %s135, 4
        %s137 = smul.addr %s136, 4
        %s138 = scalar_lea.vmem %s0, %s137
      $region24: #{conv_encoder_forward.14} parent=19 // pred_fallthru
        _
    $region20: #{conv_encoder_forward.14} parent=5 // pred_fallthru
      _
    %p139 = scmp.le.s32.totalorder 1, %s10
    %p140 = scmp.lt.s32.totalorder %s10, 3
    %p141 = pnand %p139, %p140
    %p142 = pneg %p141
    // Predicated region
    $region25: #{conv_encoder_forward.14} parent=5 // pred_check
      _
    $region26: #{conv_encoder_forward.14} parent=5 // pred_check_branch
      %144 = sbr.rel (%p141) target = $region28
    $region27: #{conv_encoder_forward.14} parent=5 // pred_region
      %s145 = ssub.s32 %s10, 1
      %p146 = scmp.lt.s32.totalorder %s15, 1
      %s147 = scalar_select %p146, %s15, 1
      %s148 = smul.addr %s147, 4
      %s149 = smul.addr %s148, 4
      %s150 = scalar_lea.vmem %s0, %s149
      %p151 = pneg %p36
      %p152 = pneg %p33
      %p153 = pneg %p57
      %p154 = pneg %p54
      %p155 = pneg %p83
      %p156 = pneg %p80
      %p157 = scmp.lt.s32.totalorder %s15, 1
      %s158 = scalar_select %p157, %s15, 1
      %s159 = smul.addr %s158, 4
      %s160 = scalar_lea.vmem %s2, %s159
      %p161 = pneg %p109
      %p162 = pneg %p106
      %p163 = scmp.lt.s32.totalorder %s15, 1
      %s164 = scalar_select %p163, %s15, 1
      %s165 = smul.addr %s164, 2
      %s166 = scalar_lea.vmem %s3, %s165
      %p167 = scmp.lt.s32.totalorder %s15, 1
      %s168 = scalar_select %p167, %s15, 1
      %s169 = smul.addr %s168, 4
      %s170 = smul.addr %s169, 4
      %s171 = scalar_lea.vmem %s0, %s170
      %p172 = scmp.lt.s32.totalorder %s15, 1
      %s173 = scalar_select %p172, %s15, 1
      %s174 = smul.addr %s173, 4
      %s175 = scalar_lea.vmem %s2, %s174
      %p176 = scmp.lt.s32.totalorder %s15, 1
      %s177 = scalar_select %p176, %s15, 1
      %s178 = smul.addr %s177, 2
      %s179 = scalar_lea.vmem %s3, %s178
      %v181 = vld [vmem:[%s171] sm:$0xff]
      %v182 = vld [vmem:[%s1] sm:$0xf]
      %v183 = vld [vmem:[%s1 + $0x4] sm:$0xf]
      %v184 = vld [vmem:[%s1 + $0x8] sm:$0xf]
      %v185 = vld [vmem:[%s1 + $0xc] sm:$0xf]
      %v186 = vld [vmem:[%s1 + $0x10] sm:$0xf]
      %v187 = vld [vmem:[%s1 + $0x14] sm:$0xf]
      %v188 = vld [vmem:[%s1 + $0x18] sm:$0xf]
      %v189 = vld [vmem:[%s1 + $0x1c] sm:$0xf]
      %v190 = vld [vmem:[%s1 + $0x20] sm:$0xf]
      %v191 = vld [vmem:[%s1 + $0x24] sm:$0xf]
      %v192 = vld [vmem:[%s1 + $0x28] sm:$0xf]
      %v193 = vld [vmem:[%s1 + $0x2c] sm:$0xf]
      %v194 = vld [vmem:[%s1 + $0x30] sm:$0xf]
      %v195 = vld [vmem:[%s1 + $0x34] sm:$0xf]
      %v196 = vld [vmem:[%s1 + $0x38] sm:$0xf]
      %v197 = vld [vmem:[%s1 + $0x3c] sm:$0xf]
      %v198 = vld [vmem:[%s1 + $0x40] sm:$0xf]
      %v199 = vld [vmem:[%s1 + $0x44] sm:$0xf]
      %v200 = vld [vmem:[%s1 + $0x48] sm:$0xf]
      %v201 = vld [vmem:[%s1 + $0x4c] sm:$0xf]
      %v202 = vld [vmem:[%s171 + $0x8] sm:$0x11]
      %s203 = scalar_lea.vmem %s1, 80
      %v204 = vld [vmem:[%s203] sm:$0xf]
      %v205 = vld [vmem:[%s203 + $0x4] sm:$0xf]
      %v206 = vld [vmem:[%s203 + $0x8] sm:$0xf]
      %v207 = vld [vmem:[%s203 + $0xc] sm:$0xf]
      %v208 = vld [vmem:[%s203 + $0x10] sm:$0xf]
      %v209 = vld [vmem:[%s203 + $0x14] sm:$0xf]
      %v210 = vld [vmem:[%s203 + $0x18] sm:$0xf]
      %v211 = vld [vmem:[%s203 + $0x1c] sm:$0xf]
      %v212 = vld [vmem:[%s203 + $0x20] sm:$0xf]
      %v213 = vld [vmem:[%s203 + $0x24] sm:$0xf]
      %v214 = vld [vmem:[%s203 + $0x28] sm:$0xf]
      %v215 = vld [vmem:[%s203 + $0x2c] sm:$0xf]
      %v216 = vld [vmem:[%s203 + $0x30] sm:$0xf]
      %v217 = vld [vmem:[%s203 + $0x34] sm:$0xf]
      %v218 = vld [vmem:[%s203 + $0x38] sm:$0xf]
      %v219 = vld [vmem:[%s203 + $0x3c] sm:$0xf]
      %v220 = vld [vmem:[%s203 + $0x40] sm:$0xf]
      %v221 = vld [vmem:[%s203 + $0x44] sm:$0xf]
      %v222 = vld [vmem:[%s203 + $0x48] sm:$0xf]
      %v223 = vld [vmem:[%s203 + $0x4c] sm:$0xf]
      %v226 = vunpack.c.l.b16 %v181
      %v227 = vunpack.c.h.b16 %v181
      %v228 = vunpack.c.l.b16 %v202
      %v229 = vunpack.c.h.b16 %v202
      %v230 = vpack.c.b16 %v228, %v226
      %v231 = vpack.c.b16 %v229, %v227
      %v233 = vshrl.u32 %v230, 16
      %v235 = vshll.u32 %v230, 16
      %v237 = vrot.slane %v235, 1
      %v238 = vor.u32 %v233, %v237
      %v240 = vshrl.u32 %v231, 16
      %v242 = vshll.u32 %v231, 16
      %v244 = vrot.slane %v242, 1
      %v245 = vor.u32 %v240, %v244
      %v267 = vunpack.c.l.b16 %v204
      %v268 = vunpack.c.l.b16 %v205
      %v269 = vunpack.c.l.b16 %v206
      %v270 = vunpack.c.l.b16 %v207
      %v271 = vunpack.c.l.b16 %v208
      %v272 = vunpack.c.l.b16 %v209
      %v273 = vunpack.c.l.b16 %v210
      %v274 = vunpack.c.l.b16 %v211
      %v275 = vunpack.c.l.b16 %v212
      %v276 = vunpack.c.l.b16 %v213
      %v277 = vunpack.c.l.b16 %v214
      %v278 = vunpack.c.l.b16 %v215
      %v279 = vunpack.c.l.b16 %v216
      %v280 = vunpack.c.l.b16 %v217
      %v281 = vunpack.c.l.b16 %v218
      %v282 = vunpack.c.l.b16 %v219
      %v283 = vunpack.c.l.b16 %v220
      %v284 = vunpack.c.l.b16 %v221
      %v285 = vunpack.c.l.b16 %v222
      %v286 = vunpack.c.l.b16 %v223
      %v287 = vpack.c.b16 %v268, %v267
      %v288 = vpack.c.b16 %v270, %v269
      %v289 = vpack.c.b16 %v272, %v271
      %v290 = vpack.c.b16 %v274, %v273
      %v291 = vpack.c.b16 %v276, %v275
      %v292 = vpack.c.b16 %v278, %v277
      %v293 = vpack.c.b16 %v280, %v279
      %v294 = vpack.c.b16 %v282, %v281
      %v295 = vpack.c.b16 %v284, %v283
      %v296 = vpack.c.b16 %v286, %v285
      %vm307 = vcmask 261120
      %v309 = vsel %vm307, %v245, 0
      %311 = vmatprep.subr.bf16.mxu0 0
      %312 = vmatpush1.bf16.msra.mxu0 %v287
      %313 = vmatprep.subr.bf16.mxu0 0
      %314 = vmatpush1.bf16.msra.mxu0 %v288
      %315 = vmatprep.subr.bf16.mxu0 0
      %316 = vmatpush1.bf16.msra.mxu0 %v289
      %317 = vmatprep.subr.bf16.mxu0 0
      %318 = vmatpush1.bf16.msra.mxu0 %v290
      %319 = vmatprep.subr.bf16.mxu0 0
      %320 = vmatpush1.bf16.msra.mxu0 %v291
      %321 = vmatprep.subr.bf16.mxu0 0
      %322 = vmatpush1.bf16.msra.mxu0 %v292
      %323 = vmatprep.subr.bf16.mxu0 0
      %324 = vmatpush1.bf16.msra.mxu0 %v293
      %325 = vmatprep.subr.bf16.mxu0 0
      %326 = vmatpush1.bf16.msra.mxu0 %v294
      %327 = vmatprep.subr.bf16.mxu0 0
      %328 = vmatpush1.bf16.msra.mxu0 %v295
      %329 = vmatprep.subr.bf16.mxu0 0
      %330 = vmatpush1.bf16.msra.mxu0 %v296
      %331 = vmatprep.subr.bf16.mxu0 0
      %332 = vmatpush1.bf16.msra.mxu0 0
      %333 = vmatprep.subr.bf16.mxu0 0
      %334 = vmatpush1.bf16.msra.mxu0 0
      %335 = vmatprep.subr.bf16.mxu0 0
      %336 = vmatpush1.bf16.msra.mxu0 0
      %337 = vmatprep.subr.bf16.mxu0 0
      %338 = vmatpush1.bf16.msra.mxu0 0
      %339 = vmatprep.subr.bf16.mxu0 0
      %340 = vmatpush1.bf16.msra.mxu0 0
      %341 = vmatprep.subr.bf16.mxu0 0
      %342 = vmatpush1.bf16.msra.mxu0 0
      %343 = vmatprep.mubr.bf16.mxu0 %v309
      %344 = vmatmul.mubr.bf16.gmra.mrb[0].mxu0 %v238
      %v345 = vpop.f32.mrb[0].mxu0
      %v346 = vadd.f32 0.0, %v345
      %v347 = vpop.f32.mrb[0].mxu0
      %v348 = vpop.f32.mrb[0].mxu0
      %v349 = vpop.f32.mrb[0].mxu0
      %350 = vdwg.mxu0
      %v351 = vpack.c.b16 %v226, %v226
      %v352 = vpack.c.b16 %v227, %v227
      %v374 = vunpack.c.l.b16 %v182
      %v375 = vunpack.c.l.b16 %v183
      %v376 = vunpack.c.l.b16 %v184
      %v377 = vunpack.c.l.b16 %v185
      %v378 = vunpack.c.l.b16 %v186
      %v379 = vunpack.c.l.b16 %v187
      %v380 = vunpack.c.l.b16 %v188
      %v381 = vunpack.c.l.b16 %v189
      %v382 = vunpack.c.l.b16 %v190
      %v383 = vunpack.c.l.b16 %v191
      %v384 = vunpack.c.l.b16 %v192
      %v385 = vunpack.c.l.b16 %v193
      %v386 = vunpack.c.l.b16 %v194
      %v387 = vunpack.c.l.b16 %v195
      %v388 = vunpack.c.l.b16 %v196
      %v389 = vunpack.c.l.b16 %v197
      %v390 = vunpack.c.l.b16 %v198
      %v391 = vunpack.c.l.b16 %v199
      %v392 = vunpack.c.l.b16 %v200
      %v393 = vunpack.c.l.b16 %v201
      %v394 = vpack.c.b16 %v375, %v374
      %v395 = vpack.c.b16 %v377, %v376
      %v396 = vpack.c.b16 %v379, %v378
      %v397 = vpack.c.b16 %v381, %v380
      %v398 = vpack.c.b16 %v383, %v382
      %v399 = vpack.c.b16 %v385, %v384
      %v400 = vpack.c.b16 %v387, %v386
      %v401 = vpack.c.b16 %v389, %v388
      %v402 = vpack.c.b16 %v391, %v390
      %v403 = vpack.c.b16 %v393, %v392
      %v415 = vsel %vm307, %v352, 0
      %417 = vmatprep.subr.bf16.mxu0 0
      %418 = vmatpush1.bf16.msra.mxu0 %v394
      %419 = vmatprep.subr.bf16.mxu0 0
      %420 = vmatpush1.bf16.msra.mxu0 %v395
      %421 = vmatprep.subr.bf16.mxu0 0
      %422 = vmatpush1.bf16.msra.mxu0 %v396
      %423 = vmatprep.subr.bf16.mxu0 0
      %424 = vmatpush1.bf16.msra.mxu0 %v397
      %425 = vmatprep.subr.bf16.mxu0 0
      %426 = vmatpush1.bf16.msra.mxu0 %v398
      %427 = vmatprep.subr.bf16.mxu0 0
      %428 = vmatpush1.bf16.msra.mxu0 %v399
      %429 = vmatprep.subr.bf16.mxu0 0
      %430 = vmatpush1.bf16.msra.mxu0 %v400
      %431 = vmatprep.subr.bf16.mxu0 0
      %432 = vmatpush1.bf16.msra.mxu0 %v401
      %433 = vmatprep.subr.bf16.mxu0 0
      %434 = vmatpush1.bf16.msra.mxu0 %v402
      %435 = vmatprep.subr.bf16.mxu0 0
      %436 = vmatpush1.bf16.msra.mxu0 %v403
      %437 = vmatprep.subr.bf16.mxu0 0
      %438 = vmatpush1.bf16.msra.mxu0 0
      %439 = vmatprep.subr.bf16.mxu0 0
      %440 = vmatpush1.bf16.msra.mxu0 0
      %441 = vmatprep.subr.bf16.mxu0 0
      %442 = vmatpush1.bf16.msra.mxu0 0
      %443 = vmatprep.subr.bf16.mxu0 0
      %444 = vmatpush1.bf16.msra.mxu0 0
      %445 = vmatprep.subr.bf16.mxu0 0
      %446 = vmatpush1.bf16.msra.mxu0 0
      %447 = vmatprep.subr.bf16.mxu0 0
      %448 = vmatpush1.bf16.msra.mxu0 0
      %449 = vmatprep.mubr.bf16.mxu0 %v415
      %450 = vmatmul.mubr.bf16.gmra.mrb[0].mxu0 %v351
      %v451 = vpop.f32.mrb[0].mxu0
      %v452 = vadd.f32 %v346, %v451
      %v453 = vpop.f32.mrb[0].mxu0
      %v454 = vpop.f32.mrb[0].mxu0
      %v455 = vpop.f32.mrb[0].mxu0
      %456 = vdwg.mxu0
      %v457 = vld [vmem:[%s171] sm:$0xee]
      %s458 = scalar_lea.vmem %s1, 160
      %v459 = vld [vmem:[%s458] sm:$0xf]
      %v460 = vld [vmem:[%s458 + $0x4] sm:$0xf]
      %v461 = vld [vmem:[%s458 + $0x8] sm:$0xf]
      %v462 = vld [vmem:[%s458 + $0xc] sm:$0xf]
      %v463 = vld [vmem:[%s458 + $0x10] sm:$0xf]
      %v464 = vld [vmem:[%s458 + $0x14] sm:$0xf]
      %v465 = vld [vmem:[%s458 + $0x18] sm:$0xf]
      %v466 = vld [vmem:[%s458 + $0x1c] sm:$0xf]
      %v467 = vld [vmem:[%s458 + $0x20] sm:$0xf]
      %v468 = vld [vmem:[%s458 + $0x24] sm:$0xf]
      %v469 = vld [vmem:[%s458 + $0x28] sm:$0xf]
      %v470 = vld [vmem:[%s458 + $0x2c] sm:$0xf]
      %v471 = vld [vmem:[%s458 + $0x30] sm:$0xf]
      %v472 = vld [vmem:[%s458 + $0x34] sm:$0xf]
      %v473 = vld [vmem:[%s458 + $0x38] sm:$0xf]
      %v474 = vld [vmem:[%s458 + $0x3c] sm:$0xf]
      %v475 = vld [vmem:[%s458 + $0x40] sm:$0xf]
      %v476 = vld [vmem:[%s458 + $0x44] sm:$0xf]
      %v477 = vld [vmem:[%s458 + $0x48] sm:$0xf]
      %v478 = vld [vmem:[%s458 + $0x4c] sm:$0xf]
      %v480 = vunpack.c.l.b16 %v457
      %v481 = vunpack.c.h.b16 %v457
      %v482 = vpack.c.b16 %v228, %v480
      %v483 = vpack.c.b16 %v229, %v481
      %v484 = vrot.slane %v482, 1
      %v485 = vrot.slane %v483, 1
      %v507 = vunpack.c.l.b16 %v459
      %v508 = vunpack.c.l.b16 %v460
      %v509 = vunpack.c.l.b16 %v461
      %v510 = vunpack.c.l.b16 %v462
      %v511 = vunpack.c.l.b16 %v463
      %v512 = vunpack.c.l.b16 %v464
      %v513 = vunpack.c.l.b16 %v465
      %v514 = vunpack.c.l.b16 %v466
      %v515 = vunpack.c.l.b16 %v467
      %v516 = vunpack.c.l.b16 %v468
      %v517 = vunpack.c.l.b16 %v469
      %v518 = vunpack.c.l.b16 %v470
      %v519 = vunpack.c.l.b16 %v471
      %v520 = vunpack.c.l.b16 %v472
      %v521 = vunpack.c.l.b16 %v473
      %v522 = vunpack.c.l.b16 %v474
      %v523 = vunpack.c.l.b16 %v475
      %v524 = vunpack.c.l.b16 %v476
      %v525 = vunpack.c.l.b16 %v477
      %v526 = vunpack.c.l.b16 %v478
      %v527 = vpack.c.b16 %v508, %v507
      %v528 = vpack.c.b16 %v510, %v509
      %v529 = vpack.c.b16 %v512, %v511
      %v530 = vpack.c.b16 %v514, %v513
      %v531 = vpack.c.b16 %v516, %v515
      %v532 = vpack.c.b16 %v518, %v517
      %v533 = vpack.c.b16 %v520, %v519
      %v534 = vpack.c.b16 %v522, %v521
      %v535 = vpack.c.b16 %v524, %v523
      %v536 = vpack.c.b16 %v526, %v525
      %v548 = vsel %vm307, %v485, 0
      %550 = vmatprep.subr.bf16.mxu0 0
      %551 = vmatpush1.bf16.msra.mxu0 %v527
      %552 = vmatprep.subr.bf16.mxu0 0
      %553 = vmatpush1.bf16.msra.mxu0 %v528
      %554 = vmatprep.subr.bf16.mxu0 0
      %555 = vmatpush1.bf16.msra.mxu0 %v529
      %556 = vmatprep.subr.bf16.mxu0 0
      %557 = vmatpush1.bf16.msra.mxu0 %v530
      %558 = vmatprep.subr.bf16.mxu0 0
      %559 = vmatpush1.bf16.msra.mxu0 %v531
      %560 = vmatprep.subr.bf16.mxu0 0
      %561 = vmatpush1.bf16.msra.mxu0 %v532
      %562 = vmatprep.subr.bf16.mxu0 0
      %563 = vmatpush1.bf16.msra.mxu0 %v533
      %564 = vmatprep.subr.bf16.mxu0 0
      %565 = vmatpush1.bf16.msra.mxu0 %v534
      %566 = vmatprep.subr.bf16.mxu0 0
      %567 = vmatpush1.bf16.msra.mxu0 %v535
      %568 = vmatprep.subr.bf16.mxu0 0
      %569 = vmatpush1.bf16.msra.mxu0 %v536
      %570 = vmatprep.subr.bf16.mxu0 0
      %571 = vmatpush1.bf16.msra.mxu0 0
      %572 = vmatprep.subr.bf16.mxu0 0
      %573 = vmatpush1.bf16.msra.mxu0 0
      %574 = vmatprep.subr.bf16.mxu0 0
      %575 = vmatpush1.bf16.msra.mxu0 0
      %576 = vmatprep.subr.bf16.mxu0 0
      %577 = vmatpush1.bf16.msra.mxu0 0
      %578 = vmatprep.subr.bf16.mxu0 0
      %579 = vmatpush1.bf16.msra.mxu0 0
      %580 = vmatprep.subr.bf16.mxu0 0
      %581 = vmatpush1.bf16.msra.mxu0 0
      %582 = vmatprep.mubr.bf16.mxu0 %v548
      %583 = vmatmul.mubr.bf16.gmra.mrb[0].mxu0 %v484
      %v584 = vpop.f32.mrb[0].mxu0
      %v585 = vadd.f32 0.0, %v584
      %v586 = vpop.f32.mrb[0].mxu0
      %v587 = vpop.f32.mrb[0].mxu0
      %v588 = vpop.f32.mrb[0].mxu0
      %589 = vdwg.mxu0
      %v590 = vadd.f32 %v452, %v585
      %v591 = vpack.c.bf16 %v590, %v590
      %592 = vst [vmem:[%s175] sm:$0xf] %v591
      %v593 = vrot.slane %v590, 4
      %v594 = vadd.f32 %v590, %v593
      %v595 = vrot.slane %v594, 2
      %v596 = vadd.f32 %v594, %v595
      %v597 = vrot.slane %v596, 1
      %v598 = vadd.f32 %v596, %v597
      %599 = vst [vmem:[%s179] sm:$0x1] %v598
      %v600 = vmul.f32 %v590, %v590
      %v601 = vrot.slane %v600, 4
      %v602 = vadd.f32 %v600, %v601
      %v603 = vrot.slane %v602, 2
      %v604 = vadd.f32 %v602, %v603
      %v605 = vrot.slane %v604, 1
      %v606 = vadd.f32 %v604, %v605
      %607 = vst [vmem:[%s179 + $0x1] sm:$0x1] %v606
      %p608 = scmp.lt.s32.totalorder %s15, 1
      %s609 = scalar_select %p608, %s15, 1
      %s610 = smul.addr %s609, 4
      %s611 = scalar_lea.vmem %s2, %s610
      %p612 = scmp.lt.s32.totalorder %s15, 1
      %s613 = scalar_select %p612, %s15, 1
      %s614 = smul.addr %s613, 2
      %s615 = scalar_lea.vmem %s3, %s614
      // Predicated region
      $region29: #{conv_encoder_forward.14} parent=27 // pred_check
        %p616 = pneg %p80
      $region30: #{conv_encoder_forward.14} parent=27 // pred_check_branch
        %618 = sbr.rel (%p616) target = $region32
      $region31: #{conv_encoder_forward.14} parent=27 // pred_region
        _
      $region32: #{conv_encoder_forward.14} parent=27 // pred_fallthru
        _
      // Predicated region
      $region33: #{conv_encoder_forward.14} parent=27 // pred_check
        %p619 = pneg %p106
      $region34: #{conv_encoder_forward.14} parent=27 // pred_check_branch
        %621 = sbr.rel (%p619) target = $region36
      $region35: #{conv_encoder_forward.14} parent=27 // pred_region
        _
      $region36: #{conv_encoder_forward.14} parent=27 // pred_fallthru
        _
    $region28: #{conv_encoder_forward.14} parent=5 // pred_fallthru
      _
    %p622 = scmp.le.s32.totalorder 2, %s10
    // Predicated region
    $region37: #{conv_encoder_forward.14} parent=5 // pred_check
      %p623 = pneg %p622
    $region38: #{conv_encoder_forward.14} parent=5 // pred_check_branch
      %625 = sbr.rel (%p623) target = $region40
    $region39: #{conv_encoder_forward.14} parent=5 // pred_region
      %s626 = ssub.s32 %s10, 2
      // Predicated region
      $region41: #{conv_encoder_forward.14} parent=39 // pred_check
        %p627 = pneg %p86
      $region42: #{conv_encoder_forward.14} parent=39 // pred_check_branch
        %629 = sbr.rel (%p627) target = $region44
      $region43: #{conv_encoder_forward.14} parent=39 // pred_region
        %p630 = scmp.lt.s32.totalorder %s16, 1
        %s631 = scalar_select %p630, %s16, 1
        %s632 = smul.addr %s631, 4
        %s633 = scalar_lea.vmem %s2, %s632
      $region44: #{conv_encoder_forward.14} parent=39 // pred_fallthru
        _
      // Predicated region
      $region45: #{conv_encoder_forward.14} parent=39 // pred_check
        %p634 = pneg %p112
      $region46: #{conv_encoder_forward.14} parent=39 // pred_check_branch
        %636 = sbr.rel (%p634) target = $region48
      $region47: #{conv_encoder_forward.14} parent=39 // pred_region
        %p637 = scmp.lt.s32.totalorder %s16, 1
        %s638 = scalar_select %p637, %s16, 1
        %s639 = smul.addr %s638, 2
        %s640 = scalar_lea.vmem %s3, %s639
      $region48: #{conv_encoder_forward.14} parent=39 // pred_fallthru
        _
    $region40: #{conv_encoder_forward.14} parent=5 // pred_fallthru
      _
  $region6: #{conv_encoder_forward.14} parent=0 // loop_footer
    %s14 = sadd.s32 1, %s10
  $region7: #{conv_encoder_forward.14} parent=0 // loop_footer_branch
    %9 = sbr.rel target = $region3
  $region8: #{conv_encoder_forward.14} parent=0 // loop_exit
    _

</llo_original>
